<compile_context>
chip_gen: v7x
topology: tpu7x:2x2x1
jax: 0.10.0
libtpu: 0.0.40
codegen_flags: <defaults>
</compile_context>

<pallas_src>
import functools

import jax
import jax.numpy as jnp
from jax import lax
from jax.experimental import pallas as pl
from jax.experimental.pallas import tpu as pltpu

VMEM_SPEC = pl.BlockSpec(memory_space=pltpu.MemorySpace.VMEM)

NUM_LAYERS = 5

# MXU operand dtype.  float32 keeps exact parity with the PyTorch reference;
# on v6e / v7x set to jnp.bfloat16 for full-rate MXU and halved VMEM footprint
# (accumulation stays f32 via preferred_element_type on every dot).
MXU_DTYPE = jnp.float32


def _mxu_dot(a, b):
    return jnp.dot(a.astype(MXU_DTYPE), b.astype(MXU_DTYPE),
                   preferred_element_type=jnp.float32)


# ---------------------------------------------------------------------------
# Fused kernel: 5-layer hetero SAGE encoder + label gather + EdgeDecoder MLP
# ---------------------------------------------------------------------------
def _fused_model_kernel(adj_ta_ref, adj_at_ref, xa_ref, xt_ref, row_ref, col_ref,
                        enc_w_ref, enc_b_ref, dec_w_ref, dec_tail_ref, out_ref,
                        *, n_layers, hidden):
    h = hidden
    adj_ta = adj_ta_ref[...]          # [n_topic,  n_author]  mean-aggr author->topic
    adj_at = adj_at_ref[...]          # [n_author, n_topic ]  mean-aggr topic->author
    xa = xa_ref[...]                  # [n_author, h]  (features zero-padded to h)
    xt = xt_ref[...]                  # [n_topic,  h]

    # ---- encoder: 5 hetero SAGE layers; 4 MXU pushes / layer --------------
    # (adj @ x) @ Wl == adj @ (x @ Wl); the two weights sharing LHS x are
    # pre-concatenated along the output dim, so x @ [Wl|Wr] yields both the
    # outgoing-message projection and the root/self term in one matmul.
    for l in range(n_layers):
        pa = _mxu_dot(xa, enc_w_ref[2 * l])        # [n_author, 2h]
        pt = _mxu_dot(xt, enc_w_ref[2 * l + 1])    # [n_topic,  2h]
        # dst = topic   (edge type author -> topic)
        new_t = (_mxu_dot(adj_ta, pa[:, :h]) + pt[:, h:]
                 + enc_b_ref[2 * l:2 * l + 1, :])
        # dst = author  (ToUndirected reverse edge type topic -> author)
        new_a = (_mxu_dot(adj_at, pt[:, :h]) + pa[:, h:]
                 + enc_b_ref[2 * l + 1:2 * l + 2, :])
        if l < n_layers - 1:                       # ReLU after layers 1..4 only
            new_t = jnp.maximum(new_t, 0.0)
            new_a = jnp.maximum(new_a, 0.0)
        xa, xt = new_a, new_t

    # ---- label-edge gather: one-hot selection matmuls on the MXU ----------
    n_author, n_topic = xa.shape[0], xt.shape[0]
    e = row_ref.shape[0]
    sel_a = (lax.broadcasted_iota(jnp.int32, (e, n_author), 1)
             == row_ref[...]).astype(MXU_DTYPE)           # [E, n_author]
    sel_t = (lax.broadcasted_iota(jnp.int32, (e, n_topic), 1)
             == col_ref[...]).astype(MXU_DTYPE)           # [E, n_topic]
    za = _mxu_dot(sel_a, xa)                              # z_author[row]  [E, h]
    zt = _mxu_dot(sel_t, xt)                              # z_topic[col]   [E, h]
    # TODO(synk): replace the O(E*N) one-hot gather with a scalar-prefetch /
    # dynamic-slice gather once E or the node counts grow.

    # ---- EdgeDecoder MLP (W1 pre-split, no in-kernel concatenate) ----------
    z = _mxu_dot(za, dec_w_ref[0]) + _mxu_dot(zt, dec_w_ref[1]) + dec_tail_ref[0:1, :]
    z = jnp.maximum(z, 0.0)
    for k in range(2, 5):                                 # lin2..lin4 + ReLU
        z = jnp.maximum(_mxu_dot(z, dec_w_ref[k]) + dec_tail_ref[k - 1:k, :], 0.0)
    # lin5: contract hidden dim; emit lane-dense (1, E)
    w5 = dec_tail_ref[4:5, :]
    b5 = dec_tail_ref[5:6, 0:1]
    out = lax.dot_general(w5.astype(MXU_DTYPE), z.astype(MXU_DTYPE),
                          (((1,), (1,)), ((), ())),
                          preferred_element_type=jnp.float32)
    out_ref[...] = out + b5


# ---------------------------------------------------------------------------
# Wrapper / glue
# ---------------------------------------------------------------------------
def build_mean_adj(src_idx, dst_idx, n_dst, n_src):
    """Dense row-normalized adjacency adj[dst, src] implementing mean aggr.
    Duplicate edges counted with multiplicity (matches PyG message multiset);
    isolated destinations aggregate to zero (deg clamped to 1)."""
    a = jnp.zeros((n_dst, n_src), jnp.float32).at[dst_idx, src_idx].add(1.0)
    deg = jnp.maximum(a.sum(axis=1, keepdims=True), 1.0)
    return a / deg


def model_forward(prepped, x_author, x_topic, edge_index_at, edge_label_index):
    n_author, n_topic = x_author.shape[0], x_topic.shape[0]
    h = prepped["enc_b"].shape[-1]
    in_pad = prepped["enc_w"].shape[1]

    # Zero-pad node features to the stacked-weight input width (exact: padded
    # feature columns meet padded zero weight rows).
    xa = jnp.pad(x_author.astype(jnp.float32),
                 ((0, 0), (0, in_pad - x_author.shape[1])))
    xt = jnp.pad(x_topic.astype(jnp.float32),
                 ((0, 0), (0, in_pad - x_topic.shape[1])))

    src_a, dst_t = edge_index_at[0], edge_index_at[1]
    # ToUndirected: reverse edge type topic -> author with the same pairs.
    adj_ta = build_mean_adj(src_a, dst_t, n_topic, n_author)   # topic  <- author
    adj_at = build_mean_adj(dst_t, src_a, n_author, n_topic)   # author <- topic

    # Pad E up to a lane multiple so the (1, E) output store is a full vst.
    e = edge_label_index.shape[1]
    e_pad = ((e + 127) // 128) * 128
    row = jnp.zeros((e_pad, 1), jnp.int32).at[:e, 0].set(
        edge_label_index[0].astype(jnp.int32))
    col = jnp.zeros((e_pad, 1), jnp.int32).at[:e, 0].set(
        edge_label_index[1].astype(jnp.int32))

    operands = (adj_ta, adj_at, xa, xt, row, col,
                prepped["enc_w"], prepped["enc_b"],
                prepped["dec_w"], prepped["dec_tail"])

    flops = (NUM_LAYERS * (2 * (n_author + n_topic) * in_pad * 2 * h
                           + 4 * n_author * n_topic * h)
             + 2 * e_pad * (n_author + n_topic) * h
             + 10 * e_pad * h * h + 2 * e_pad * h)
    bytes_accessed = sum(int(a.size) * a.dtype.itemsize for a in operands) + 4 * e_pad
    cost = pl.CostEstimate(flops=int(flops), transcendentals=0,
                           bytes_accessed=int(bytes_accessed))

    out = pl.pallas_call(
        functools.partial(_fused_model_kernel, n_layers=NUM_LAYERS, hidden=h),
        out_shape=jax.ShapeDtypeStruct((1, e_pad), jnp.float32),
        in_specs=[VMEM_SPEC] * len(operands),
        out_specs=VMEM_SPEC,
        cost_estimate=cost,
    )(*operands)
    return out.reshape(-1)[:e]   # == z.view(-1)


# ---------------------------------------------------------------------------
# Parameters (deterministic, PyTorch-style uniform(-1/sqrt(fan_in), ...))
# ---------------------------------------------------------------------------
def _linear(key, out_f, in_f, bias=True):
    kw, kb = jax.random.split(key)
    bound = 1.0 / (in_f ** 0.5)
    w = jax.random.uniform(kw, (out_f, in_f), jnp.float32, -bound, bound)
    b = (jax.random.uniform(kb, (out_f,), jnp.float32, -bound, bound)
         if bias else None)
    return w, b


def init_params(key, f_author, f_topic, hidden):
    keys = jax.random.split(key, 64)
    ki = iter(keys)
    enc = {"a2t": [], "t2a": []}
    for layer in range(NUM_LAYERS):
        in_a = f_author if layer == 0 else hidden
        in_t = f_topic if layer == 0 else hidden
        # edge type author -> topic (dst = topic)
        wl, bl = _linear(next(ki), hidden, in_a, bias=True)
        wr, _ = _linear(next(ki), hidden, in_t, bias=False)
        enc["a2t"].append({"wl": wl, "bl": bl, "wr": wr})
        # edge type topic -> author (dst = author)
        wl, bl = _linear(next(ki), hidden, in_t, bias=True)
        wr, _ = _linear(next(ki), hidden, in_a, bias=False)
        enc["t2a"].append({"wl": wl, "bl": bl, "wr": wr})

    dec = {}
    dec["w1"], dec["b1"] = _linear(next(ki), hidden, 2 * hidden)
    dec["w2"], dec["b2"] = _linear(next(ki), hidden, hidden)
    dec["w3"], dec["b3"] = _linear(next(ki), hidden, hidden)
    dec["w4"], dec["b4"] = _linear(next(ki), hidden, hidden)
    dec["w5"], dec["b5"] = _linear(next(ki), 1, hidden)
    return {"encoder": enc, "decoder": dec}


def prepare_params(params):
    """One-time weight prep (outside jit):
      * transpose every Linear weight to [in, out];
      * per layer, concatenate the two weights that share the same LHS along
        the output dim and zero-pad the input dim to `hidden` so all 5 layers
        stack into one slab;
      * stack biases / decoder weights into dense slabs (few DMA descriptors)."""
    enc, dec = params["encoder"], params["decoder"]
    h = dec["w2"].shape[0]
    in_pad = h
    w_stack, b_stack = [], []
    for l in range(NUM_LAYERS):
        p_at, p_ta = enc["a2t"][l], enc["t2a"][l]
        wa = jnp.concatenate([p_at["wl"].T, p_ta["wr"].T], axis=1)   # [in_a, 2h]
        wt = jnp.concatenate([p_ta["wl"].T, p_at["wr"].T], axis=1)   # [in_t, 2h]
        # TODO(synk): if feature dims ever exceed hidden, keep layer-0 weights
        # un-stacked instead of zero-padding.
        assert wa.shape[0] <= in_pad and wt.shape[0] <= in_pad
        w_stack.append(jnp.pad(wa, ((0, in_pad - wa.shape[0]), (0, 0))))
        w_stack.append(jnp.pad(wt, ((0, in_pad - wt.shape[0]), (0, 0))))
        b_stack.append(p_at["bl"])     # bias for dst = topic
        b_stack.append(p_ta["bl"])     # bias for dst = author
    enc_w = jnp.stack(w_stack)         # [2L, h, 2h]
    enc_b = jnp.stack(b_stack)         # [2L, h]

    dec_w = jnp.stack([dec["w1"][:, :h].T, dec["w1"][:, h:].T,
                       dec["w2"].T, dec["w3"].T, dec["w4"].T])       # [5, h, h]
    b5_row = jnp.zeros((h,), jnp.float32).at[0].set(dec["b5"][0])
    dec_tail = jnp.stack([dec["b1"], dec["b2"], dec["b3"], dec["b4"],
                          dec["w5"].reshape(-1), b5_row])            # [6, h]
    return {"enc_w": enc_w, "enc_b": enc_b, "dec_w": dec_w, "dec_tail": dec_tail}


# ---------------------------------------------------------------------------
# Pure-JAX reference (mirrors the PyTorch forward exactly) — correctness check
# ---------------------------------------------------------------------------
def reference_forward(params, x_author, x_topic, edge_index_at, edge_label_index):
    enc, dec = params["encoder"], params["decoder"]
    n_author, n_topic = x_author.shape[0], x_topic.shape[0]
    adj_ta = build_mean_adj(edge_index_at[0], edge_index_at[1], n_topic, n_author)
    adj_at = build_mean_adj(edge_index_at[1], edge_index_at[0], n_author, n_topic)
    xa, xt = x_author, x_topic
    for l in range(NUM_LAYERS):
        p_at, p_ta = enc["a2t"][l], enc["t2a"][l]
        new_t = (adj_ta @ xa) @ p_at["wl"].T + p_at["bl"] + xt @ p_at["wr"].T
        new_a = (adj_at @ xt) @ p_ta["wl"].T + p_ta["bl"] + xa @ p_ta["wr"].T
        if l < NUM_LAYERS - 1:
            new_t, new_a = jnp.maximum(new_t, 0.0), jnp.maximum(new_a, 0.0)
        xa, xt = new_a, new_t
    row, col = edge_label_index
    z = jnp.concatenate([xa[row], xt[col]], axis=-1)
    z = jnp.maximum(z @ dec["w1"].T + dec["b1"], 0.0)
    z = jnp.maximum(z @ dec["w2"].T + dec["b2"], 0.0)
    z = jnp.maximum(z @ dec["w3"].T + dec["b3"], 0.0)
    z = jnp.maximum(z @ dec["w4"].T + dec["b4"], 0.0)
    z = z @ dec["w5"].T + dec["b5"]
    return z.reshape(-1)


# ---------------------------------------------------------------------------
if __name__ == "__main__":
    HIDDEN = 32
    F_AUTHOR, F_TOPIC = 16, 24
    N_AUTHOR, N_TOPIC = 12, 20
    N_EDGES, N_LABEL = 48, 8

    key = jax.random.PRNGKey(0)
    k_par, k_xa, k_xt, k_es, k_ed, k_lr, k_lc = jax.random.split(key, 7)

    params = init_params(k_par, F_AUTHOR, F_TOPIC, HIDDEN)
    prepped = prepare_params(params)          # transposes/stacking done once, outside jit
    x_author = jax.random.normal(k_xa, (N_AUTHOR, F_AUTHOR), jnp.float32)
    x_topic = jax.random.normal(k_xt, (N_TOPIC, F_TOPIC), jnp.float32)
    edge_index_at = jnp.stack([
        jax.random.randint(k_es, (N_EDGES,), 0, N_AUTHOR),
        jax.random.randint(k_ed, (N_EDGES,), 0, N_TOPIC),
    ])
    edge_label_index = jnp.stack([
        jax.random.randint(k_lr, (N_LABEL,), 0, N_AUTHOR),
        jax.random.randint(k_lc, (N_LABEL,), 0, N_TOPIC),
    ])

    out = jax.jit(model_forward)(prepped, x_author, x_topic,
                                 edge_index_at, edge_label_index)
    out = jax.block_until_ready(out)
    assert out.shape == (N_LABEL,) and out.dtype == jnp.float32

    ref = reference_forward(params, x_author, x_topic,
                            edge_index_at, edge_label_index)
    assert jnp.allclose(out, ref, rtol=2e-3, atol=2e-3), (out, ref)
    print("KERNEL_OK")
</pallas_src>

<mosaic_0001>
module attributes {stable_mosaic.version = 11 : i64} {
  func.func private @main(%arg0: i32) attributes {dimension_semantics = [#tpu.dimension_semantics<core_parallel>], iteration_bounds = array<i64: 2>, tpu.core_type = #tpu.core_type<sc_scalar_subcore>, window_params = []} {
    return
  }
}

module attributes {stable_mosaic.version = 11 : i64} {
  func.func private @main(%arg0: i32) attributes {dimension_semantics = [#tpu.dimension_semantics<core_parallel>], iteration_bounds = array<i64: 2>, tpu.core_type = #tpu.core_type<sc_scalar_subcore>, window_params = []} {
    return
  }
}

module attributes {stable_mosaic.version = 11 : i64} {
  func.func @_fused_model_kernel(%arg0: memref<20x12xf32, #tpu.memory_space<vmem>>, %arg1: memref<12x20xf32, #tpu.memory_space<vmem>>, %arg2: memref<12x32xf32, #tpu.memory_space<vmem>>, %arg3: memref<20x32xf32, #tpu.memory_space<vmem>>, %arg4: memref<128x1xi32, #tpu.memory_space<vmem>>, %arg5: memref<128x1xi32, #tpu.memory_space<vmem>>, %arg6: memref<10x32x64xf32, #tpu.memory_space<vmem>>, %arg7: memref<10x32xf32, #tpu.memory_space<vmem>>, %arg8: memref<5x32x32xf32, #tpu.memory_space<vmem>>, %arg9: memref<6x32xf32, #tpu.memory_space<vmem>>, %arg10: memref<1x128xf32, #tpu.memory_space<vmem>>) attributes {dimension_semantics = [], scalar_prefetch = 0 : i64, scratch_operands = 0 : i64, tpu.core_type = #tpu.core_type<tc>} {
    %c0 = arith.constant 0 : index
    %c0_0 = arith.constant 0 : index
    %0 = vector.load %arg0[%c0, %c0_0] : memref<20x12xf32, #tpu.memory_space<vmem>>, vector<20x12xf32>
    %c0_1 = arith.constant 0 : index
    %c0_2 = arith.constant 0 : index
    %1 = vector.load %arg1[%c0_1, %c0_2] : memref<12x20xf32, #tpu.memory_space<vmem>>, vector<12x20xf32>
    %c0_3 = arith.constant 0 : index
    %c0_4 = arith.constant 0 : index
    %2 = vector.load %arg2[%c0_3, %c0_4] : memref<12x32xf32, #tpu.memory_space<vmem>>, vector<12x32xf32>
    %c0_5 = arith.constant 0 : index
    %c0_6 = arith.constant 0 : index
    %3 = vector.load %arg3[%c0_5, %c0_6] : memref<20x32xf32, #tpu.memory_space<vmem>>, vector<20x32xf32>
    %c0_7 = arith.constant 0 : index
    %c0_8 = arith.constant 0 : index
    %c0_9 = arith.constant 0 : index
    %4 = vector.load %arg6[%c0_7, %c0_8, %c0_9] : memref<10x32x64xf32, #tpu.memory_space<vmem>>, vector<1x32x64xf32>
    %5 = vector.shape_cast %4 : vector<1x32x64xf32> to vector<32x64xf32>
    %cst = arith.constant dense<0.000000e+00> : vector<12x64xf32>
    %6 = tpu.matmul %2, %5, %cst {dimension_numbers = #tpu.dot_dimension_numbers<[1], [0], [0], [1], [0, 0, 1, 1], [], []>} : vector<12x32xf32>, vector<32x64xf32>, vector<12x64xf32> -> vector<12x64xf32>
    %c1 = arith.constant 1 : index
    %c0_10 = arith.constant 0 : index
    %c0_11 = arith.constant 0 : index
    %7 = vector.load %arg6[%c1, %c0_10, %c0_11] : memref<10x32x64xf32, #tpu.memory_space<vmem>>, vector<1x32x64xf32>
    %8 = vector.shape_cast %7 : vector<1x32x64xf32> to vector<32x64xf32>
    %cst_12 = arith.constant dense<0.000000e+00> : vector<20x64xf32>
    %9 = tpu.matmul %3, %8, %cst_12 {dimension_numbers = #tpu.dot_dimension_numbers<[1], [0], [0], [1], [0, 0, 1, 1], [], []>} : vector<20x32xf32>, vector<32x64xf32>, vector<20x64xf32> -> vector<20x64xf32>
    %10 = vector.extract_strided_slice %6 {offsets = [0, 0], sizes = [12, 32], strides = [1, 1]} : vector<12x64xf32> to vector<12x32xf32>
    %cst_13 = arith.constant dense<0.000000e+00> : vector<20x32xf32>
    %11 = tpu.matmul %0, %10, %cst_13 {dimension_numbers = #tpu.dot_dimension_numbers<[1], [0], [0], [1], [0, 0, 1, 1], [], []>} : vector<20x12xf32>, vector<12x32xf32>, vector<20x32xf32> -> vector<20x32xf32>
    %12 = vector.extract_strided_slice %9 {offsets = [0, 32], sizes = [20, 32], strides = [1, 1]} : vector<20x64xf32> to vector<20x32xf32>
    %13 = arith.addf %11, %12 : vector<20x32xf32>
    %c0_14 = arith.constant 0 : index
    %c0_15 = arith.constant 0 : index
    %14 = vector.load %arg7[%c0_14, %c0_15] : memref<10x32xf32, #tpu.memory_space<vmem>>, vector<1x32xf32>
    %15 = vector.broadcast %14 : vector<1x32xf32> to vector<20x32xf32>
    %16 = arith.addf %13, %15 : vector<20x32xf32>
    %17 = vector.extract_strided_slice %9 {offsets = [0, 0], sizes = [20, 32], strides = [1, 1]} : vector<20x64xf32> to vector<20x32xf32>
    %cst_16 = arith.constant dense<0.000000e+00> : vector<12x32xf32>
    %18 = tpu.matmul %1, %17, %cst_16 {dimension_numbers = #tpu.dot_dimension_numbers<[1], [0], [0], [1], [0, 0, 1, 1], [], []>} : vector<12x20xf32>, vector<20x32xf32>, vector<12x32xf32> -> vector<12x32xf32>
    %19 = vector.extract_strided_slice %6 {offsets = [0, 32], sizes = [12, 32], strides = [1, 1]} : vector<12x64xf32> to vector<12x32xf32>
    %20 = arith.addf %18, %19 : vector<12x32xf32>
    %c1_17 = arith.constant 1 : index
    %c0_18 = arith.constant 0 : index
    %21 = vector.load %arg7[%c1_17, %c0_18] : memref<10x32xf32, #tpu.memory_space<vmem>>, vector<1x32xf32>
    %22 = vector.broadcast %21 : vector<1x32xf32> to vector<12x32xf32>
    %23 = arith.addf %20, %22 : vector<12x32xf32>
    %cst_19 = arith.constant 0.000000e+00 : f32
    %24 = vector.broadcast %cst_19 : f32 to vector<20x32xf32>
    %25 = arith.maximumf %16, %24 : vector<20x32xf32>
    %cst_20 = arith.constant 0.000000e+00 : f32
    %26 = vector.broadcast %cst_20 : f32 to vector<12x32xf32>
    %27 = arith.maximumf %23, %26 : vector<12x32xf32>
    %c2 = arith.constant 2 : index
    %c0_21 = arith.constant 0 : index
    %c0_22 = arith.constant 0 : index
    %28 = vector.load %arg6[%c2, %c0_21, %c0_22] : memref<10x32x64xf32, #tpu.memory_space<vmem>>, vector<1x32x64xf32>
    %29 = vector.shape_cast %28 : vector<1x32x64xf32> to vector<32x64xf32>
    %cst_23 = arith.constant dense<0.000000e+00> : vector<12x64xf32>
    %30 = tpu.matmul %27, %29, %cst_23 {dimension_numbers = #tpu.dot_dimension_numbers<[1], [0], [0], [1], [0, 0, 1, 1], [], []>} : vector<12x32xf32>, vector<32x64xf32>, vector<12x64xf32> -> vector<12x64xf32>
    %c3 = arith.constant 3 : index
    %c0_24 = arith.constant 0 : index
    %c0_25 = arith.constant 0 : index
    %31 = vector.load %arg6[%c3, %c0_24, %c0_25] : memref<10x32x64xf32, #tpu.memory_space<vmem>>, vector<1x32x64xf32>
    %32 = vector.shape_cast %31 : vector<1x32x64xf32> to vector<32x64xf32>
    %cst_26 = arith.constant dense<0.000000e+00> : vector<20x64xf32>
    %33 = tpu.matmul %25, %32, %cst_26 {dimension_numbers = #tpu.dot_dimension_numbers<[1], [0], [0], [1], [0, 0, 1, 1], [], []>} : vector<20x32xf32>, vector<32x64xf32>, vector<20x64xf32> -> vector<20x64xf32>
    %34 = vector.extract_strided_slice %30 {offsets = [0, 0], sizes = [12, 32], strides = [1, 1]} : vector<12x64xf32> to vector<12x32xf32>
    %cst_27 = arith.constant dense<0.000000e+00> : vector<20x32xf32>
    %35 = tpu.matmul %0, %34, %cst_27 {dimension_numbers = #tpu.dot_dimension_numbers<[1], [0], [0], [1], [0, 0, 1, 1], [], []>} : vector<20x12xf32>, vector<12x32xf32>, vector<20x32xf32> -> vector<20x32xf32>
    %36 = vector.extract_strided_slice %33 {offsets = [0, 32], sizes = [20, 32], strides = [1, 1]} : vector<20x64xf32> to vector<20x32xf32>
    %37 = arith.addf %35, %36 : vector<20x32xf32>
    %c2_28 = arith.constant 2 : index
    %c0_29 = arith.constant 0 : index
    %38 = vector.load %arg7[%c2_28, %c0_29] : memref<10x32xf32, #tpu.memory_space<vmem>>, vector<1x32xf32>
    %39 = vector.broadcast %38 : vector<1x32xf32> to vector<20x32xf32>
    %40 = arith.addf %37, %39 : vector<20x32xf32>
    %41 = vector.extract_strided_slice %33 {offsets = [0, 0], sizes = [20, 32], strides = [1, 1]} : vector<20x64xf32> to vector<20x32xf32>
    %cst_30 = arith.constant dense<0.000000e+00> : vector<12x32xf32>
    %42 = tpu.matmul %1, %41, %cst_30 {dimension_numbers = #tpu.dot_dimension_numbers<[1], [0], [0], [1], [0, 0, 1, 1], [], []>} : vector<12x20xf32>, vector<20x32xf32>, vector<12x32xf32> -> vector<12x32xf32>
    %43 = vector.extract_strided_slice %30 {offsets = [0, 32], sizes = [12, 32], strides = [1, 1]} : vector<12x64xf32> to vector<12x32xf32>
    %44 = arith.addf %42, %43 : vector<12x32xf32>
    %c3_31 = arith.constant 3 : index
    %c0_32 = arith.constant 0 : index
    %45 = vector.load %arg7[%c3_31, %c0_32] : memref<10x32xf32, #tpu.memory_space<vmem>>, vector<1x32xf32>
    %46 = vector.broadcast %45 : vector<1x32xf32> to vector<12x32xf32>
    %47 = arith.addf %44, %46 : vector<12x32xf32>
    %cst_33 = arith.constant 0.000000e+00 : f32
    %48 = vector.broadcast %cst_33 : f32 to vector<20x32xf32>
    %49 = arith.maximumf %40, %48 : vector<20x32xf32>
    %cst_34 = arith.constant 0.000000e+00 : f32
    %50 = vector.broadcast %cst_34 : f32 to vector<12x32xf32>
    %51 = arith.maximumf %47, %50 : vector<12x32xf32>
    %c4 = arith.constant 4 : index
    %c0_35 = arith.constant 0 : index
    %c0_36 = arith.constant 0 : index
    %52 = vector.load %arg6[%c4, %c0_35, %c0_36] : memref<10x32x64xf32, #tpu.memory_space<vmem>>, vector<1x32x64xf32>
    %53 = vector.shape_cast %52 : vector<1x32x64xf32> to vector<32x64xf32>
    %cst_37 = arith.constant dense<0.000000e+00> : vector<12x64xf32>
    %54 = tpu.matmul %51, %53, %cst_37 {dimension_numbers = #tpu.dot_dimension_numbers<[1], [0], [0], [1], [0, 0, 1, 1], [], []>} : vector<12x32xf32>, vector<32x64xf32>, vector<12x64xf32> -> vector<12x64xf32>
    %c5 = arith.constant 5 : index
    %c0_38 = arith.constant 0 : index
    %c0_39 = arith.constant 0 : index
    %55 = vector.load %arg6[%c5, %c0_38, %c0_39] : memref<10x32x64xf32, #tpu.memory_space<vmem>>, vector<1x32x64xf32>
    %56 = vector.shape_cast %55 : vector<1x32x64xf32> to vector<32x64xf32>
    %cst_40 = arith.constant dense<0.000000e+00> : vector<20x64xf32>
    %57 = tpu.matmul %49, %56, %cst_40 {dimension_numbers = #tpu.dot_dimension_numbers<[1], [0], [0], [1], [0, 0, 1, 1], [], []>} : vector<20x32xf32>, vector<32x64xf32>, vector<20x64xf32> -> vector<20x64xf32>
    %58 = vector.extract_strided_slice %54 {offsets = [0, 0], sizes = [12, 32], strides = [1, 1]} : vector<12x64xf32> to vector<12x32xf32>
    %cst_41 = arith.constant dense<0.000000e+00> : vector<20x32xf32>
    %59 = tpu.matmul %0, %58, %cst_41 {dimension_numbers = #tpu.dot_dimension_numbers<[1], [0], [0], [1], [0, 0, 1, 1], [], []>} : vector<20x12xf32>, vector<12x32xf32>, vector<20x32xf32> -> vector<20x32xf32>
    %60 = vector.extract_strided_slice %57 {offsets = [0, 32], sizes = [20, 32], strides = [1, 1]} : vector<20x64xf32> to vector<20x32xf32>
    %61 = arith.addf %59, %60 : vector<20x32xf32>
    %c4_42 = arith.constant 4 : index
    %c0_43 = arith.constant 0 : index
    %62 = vector.load %arg7[%c4_42, %c0_43] : memref<10x32xf32, #tpu.memory_space<vmem>>, vector<1x32xf32>
    %63 = vector.broadcast %62 : vector<1x32xf32> to vector<20x32xf32>
    %64 = arith.addf %61, %63 : vector<20x32xf32>
    %65 = vector.extract_strided_slice %57 {offsets = [0, 0], sizes = [20, 32], strides = [1, 1]} : vector<20x64xf32> to vector<20x32xf32>
    %cst_44 = arith.constant dense<0.000000e+00> : vector<12x32xf32>
    %66 = tpu.matmul %1, %65, %cst_44 {dimension_numbers = #tpu.dot_dimension_numbers<[1], [0], [0], [1], [0, 0, 1, 1], [], []>} : vector<12x20xf32>, vector<20x32xf32>, vector<12x32xf32> -> vector<12x32xf32>
    %67 = vector.extract_strided_slice %54 {offsets = [0, 32], sizes = [12, 32], strides = [1, 1]} : vector<12x64xf32> to vector<12x32xf32>
    %68 = arith.addf %66, %67 : vector<12x32xf32>
    %c5_45 = arith.constant 5 : index
    %c0_46 = arith.constant 0 : index
    %69 = vector.load %arg7[%c5_45, %c0_46] : memref<10x32xf32, #tpu.memory_space<vmem>>, vector<1x32xf32>
    %70 = vector.broadcast %69 : vector<1x32xf32> to vector<12x32xf32>
    %71 = arith.addf %68, %70 : vector<12x32xf32>
    %cst_47 = arith.constant 0.000000e+00 : f32
    %72 = vector.broadcast %cst_47 : f32 to vector<20x32xf32>
    %73 = arith.maximumf %64, %72 : vector<20x32xf32>
    %cst_48 = arith.constant 0.000000e+00 : f32
    %74 = vector.broadcast %cst_48 : f32 to vector<12x32xf32>
    %75 = arith.maximumf %71, %74 : vector<12x32xf32>
    %c6 = arith.constant 6 : index
    %c0_49 = arith.constant 0 : index
    %c0_50 = arith.constant 0 : index
    %76 = vector.load %arg6[%c6, %c0_49, %c0_50] : memref<10x32x64xf32, #tpu.memory_space<vmem>>, vector<1x32x64xf32>
    %77 = vector.shape_cast %76 : vector<1x32x64xf32> to vector<32x64xf32>
    %cst_51 = arith.constant dense<0.000000e+00> : vector<12x64xf32>
    %78 = tpu.matmul %75, %77, %cst_51 {dimension_numbers = #tpu.dot_dimension_numbers<[1], [0], [0], [1], [0, 0, 1, 1], [], []>} : vector<12x32xf32>, vector<32x64xf32>, vector<12x64xf32> -> vector<12x64xf32>
    %c7 = arith.constant 7 : index
    %c0_52 = arith.constant 0 : index
    %c0_53 = arith.constant 0 : index
    %79 = vector.load %arg6[%c7, %c0_52, %c0_53] : memref<10x32x64xf32, #tpu.memory_space<vmem>>, vector<1x32x64xf32>
    %80 = vector.shape_cast %79 : vector<1x32x64xf32> to vector<32x64xf32>
    %cst_54 = arith.constant dense<0.000000e+00> : vector<20x64xf32>
    %81 = tpu.matmul %73, %80, %cst_54 {dimension_numbers = #tpu.dot_dimension_numbers<[1], [0], [0], [1], [0, 0, 1, 1], [], []>} : vector<20x32xf32>, vector<32x64xf32>, vector<20x64xf32> -> vector<20x64xf32>
    %82 = vector.extract_strided_slice %78 {offsets = [0, 0], sizes = [12, 32], strides = [1, 1]} : vector<12x64xf32> to vector<12x32xf32>
    %cst_55 = arith.constant dense<0.000000e+00> : vector<20x32xf32>
    %83 = tpu.matmul %0, %82, %cst_55 {dimension_numbers = #tpu.dot_dimension_numbers<[1], [0], [0], [1], [0, 0, 1, 1], [], []>} : vector<20x12xf32>, vector<12x32xf32>, vector<20x32xf32> -> vector<20x32xf32>
    %84 = vector.extract_strided_slice %81 {offsets = [0, 32], sizes = [20, 32], strides = [1, 1]} : vector<20x64xf32> to vector<20x32xf32>
    %85 = arith.addf %83, %84 : vector<20x32xf32>
    %c6_56 = arith.constant 6 : index
    %c0_57 = arith.constant 0 : index
    %86 = vector.load %arg7[%c6_56, %c0_57] : memref<10x32xf32, #tpu.memory_space<vmem>>, vector<1x32xf32>
    %87 = vector.broadcast %86 : vector<1x32xf32> to vector<20x32xf32>
    %88 = arith.addf %85, %87 : vector<20x32xf32>
    %89 = vector.extract_strided_slice %81 {offsets = [0, 0], sizes = [20, 32], strides = [1, 1]} : vector<20x64xf32> to vector<20x32xf32>
    %cst_58 = arith.constant dense<0.000000e+00> : vector<12x32xf32>
    %90 = tpu.matmul %1, %89, %cst_58 {dimension_numbers = #tpu.dot_dimension_numbers<[1], [0], [0], [1], [0, 0, 1, 1], [], []>} : vector<12x20xf32>, vector<20x32xf32>, vector<12x32xf32> -> vector<12x32xf32>
    %91 = vector.extract_strided_slice %78 {offsets = [0, 32], sizes = [12, 32], strides = [1, 1]} : vector<12x64xf32> to vector<12x32xf32>
    %92 = arith.addf %90, %91 : vector<12x32xf32>
    %c7_59 = arith.constant 7 : index
    %c0_60 = arith.constant 0 : index
    %93 = vector.load %arg7[%c7_59, %c0_60] : memref<10x32xf32, #tpu.memory_space<vmem>>, vector<1x32xf32>
    %94 = vector.broadcast %93 : vector<1x32xf32> to vector<12x32xf32>
    %95 = arith.addf %92, %94 : vector<12x32xf32>
    %cst_61 = arith.constant 0.000000e+00 : f32
    %96 = vector.broadcast %cst_61 : f32 to vector<20x32xf32>
    %97 = arith.maximumf %88, %96 : vector<20x32xf32>
    %cst_62 = arith.constant 0.000000e+00 : f32
    %98 = vector.broadcast %cst_62 : f32 to vector<12x32xf32>
    %99 = arith.maximumf %95, %98 : vector<12x32xf32>
    %c8 = arith.constant 8 : index
    %c0_63 = arith.constant 0 : index
    %c0_64 = arith.constant 0 : index
    %100 = vector.load %arg6[%c8, %c0_63, %c0_64] : memref<10x32x64xf32, #tpu.memory_space<vmem>>, vector<1x32x64xf32>
    %101 = vector.shape_cast %100 : vector<1x32x64xf32> to vector<32x64xf32>
    %cst_65 = arith.constant dense<0.000000e+00> : vector<12x64xf32>
    %102 = tpu.matmul %99, %101, %cst_65 {dimension_numbers = #tpu.dot_dimension_numbers<[1], [0], [0], [1], [0, 0, 1, 1], [], []>} : vector<12x32xf32>, vector<32x64xf32>, vector<12x64xf32> -> vector<12x64xf32>
    %c9 = arith.constant 9 : index
    %c0_66 = arith.constant 0 : index
    %c0_67 = arith.constant 0 : index
    %103 = vector.load %arg6[%c9, %c0_66, %c0_67] : memref<10x32x64xf32, #tpu.memory_space<vmem>>, vector<1x32x64xf32>
    %104 = vector.shape_cast %103 : vector<1x32x64xf32> to vector<32x64xf32>
    %cst_68 = arith.constant dense<0.000000e+00> : vector<20x64xf32>
    %105 = tpu.matmul %97, %104, %cst_68 {dimension_numbers = #tpu.dot_dimension_numbers<[1], [0], [0], [1], [0, 0, 1, 1], [], []>} : vector<20x32xf32>, vector<32x64xf32>, vector<20x64xf32> -> vector<20x64xf32>
    %106 = vector.extract_strided_slice %102 {offsets = [0, 0], sizes = [12, 32], strides = [1, 1]} : vector<12x64xf32> to vector<12x32xf32>
    %cst_69 = arith.constant dense<0.000000e+00> : vector<20x32xf32>
    %107 = tpu.matmul %0, %106, %cst_69 {dimension_numbers = #tpu.dot_dimension_numbers<[1], [0], [0], [1], [0, 0, 1, 1], [], []>} : vector<20x12xf32>, vector<12x32xf32>, vector<20x32xf32> -> vector<20x32xf32>
    %108 = vector.extract_strided_slice %105 {offsets = [0, 32], sizes = [20, 32], strides = [1, 1]} : vector<20x64xf32> to vector<20x32xf32>
    %109 = arith.addf %107, %108 : vector<20x32xf32>
    %c8_70 = arith.constant 8 : index
    %c0_71 = arith.constant 0 : index
    %110 = vector.load %arg7[%c8_70, %c0_71] : memref<10x32xf32, #tpu.memory_space<vmem>>, vector<1x32xf32>
    %111 = vector.broadcast %110 : vector<1x32xf32> to vector<20x32xf32>
    %112 = arith.addf %109, %111 : vector<20x32xf32>
    %113 = vector.extract_strided_slice %105 {offsets = [0, 0], sizes = [20, 32], strides = [1, 1]} : vector<20x64xf32> to vector<20x32xf32>
    %cst_72 = arith.constant dense<0.000000e+00> : vector<12x32xf32>
    %114 = tpu.matmul %1, %113, %cst_72 {dimension_numbers = #tpu.dot_dimension_numbers<[1], [0], [0], [1], [0, 0, 1, 1], [], []>} : vector<12x20xf32>, vector<20x32xf32>, vector<12x32xf32> -> vector<12x32xf32>
    %115 = vector.extract_strided_slice %102 {offsets = [0, 32], sizes = [12, 32], strides = [1, 1]} : vector<12x64xf32> to vector<12x32xf32>
    %116 = arith.addf %114, %115 : vector<12x32xf32>
    %c9_73 = arith.constant 9 : index
    %c0_74 = arith.constant 0 : index
    %117 = vector.load %arg7[%c9_73, %c0_74] : memref<10x32xf32, #tpu.memory_space<vmem>>, vector<1x32xf32>
    %118 = vector.broadcast %117 : vector<1x32xf32> to vector<12x32xf32>
    %119 = arith.addf %116, %118 : vector<12x32xf32>
    %120 = tpu.iota {dimensions = array<i32: 1>} : vector<128x12xi32>
    %c0_75 = arith.constant 0 : index
    %c0_76 = arith.constant 0 : index
    %121 = vector.load %arg4[%c0_75, %c0_76] : memref<128x1xi32, #tpu.memory_space<vmem>>, vector<128x1xi32>
    %122 = vector.broadcast %121 : vector<128x1xi32> to vector<128x12xi32>
    %123 = arith.cmpi eq, %120, %122 : vector<128x12xi32>
    %124 = arith.extui %123 : vector<128x12xi1> to vector<128x12xi32>
    %125 = arith.sitofp %124 : vector<128x12xi32> to vector<128x12xf32>
    %126 = tpu.iota {dimensions = array<i32: 1>} : vector<128x20xi32>
    %c0_77 = arith.constant 0 : index
    %c0_78 = arith.constant 0 : index
    %127 = vector.load %arg5[%c0_77, %c0_78] : memref<128x1xi32, #tpu.memory_space<vmem>>, vector<128x1xi32>
    %128 = vector.broadcast %127 : vector<128x1xi32> to vector<128x20xi32>
    %129 = arith.cmpi eq, %126, %128 : vector<128x20xi32>
    %130 = arith.extui %129 : vector<128x20xi1> to vector<128x20xi32>
    %131 = arith.sitofp %130 : vector<128x20xi32> to vector<128x20xf32>
    %cst_79 = arith.constant dense<0.000000e+00> : vector<128x32xf32>
    %132 = tpu.matmul %125, %119, %cst_79 {dimension_numbers = #tpu.dot_dimension_numbers<[1], [0], [0], [1], [0, 0, 1, 1], [], []>} : vector<128x12xf32>, vector<12x32xf32>, vector<128x32xf32> -> vector<128x32xf32>
    %cst_80 = arith.constant dense<0.000000e+00> : vector<128x32xf32>
    %133 = tpu.matmul %131, %112, %cst_80 {dimension_numbers = #tpu.dot_dimension_numbers<[1], [0], [0], [1], [0, 0, 1, 1], [], []>} : vector<128x20xf32>, vector<20x32xf32>, vector<128x32xf32> -> vector<128x32xf32>
    %c0_81 = arith.constant 0 : index
    %c0_82 = arith.constant 0 : index
    %c0_83 = arith.constant 0 : index
    %134 = vector.load %arg8[%c0_81, %c0_82, %c0_83] : memref<5x32x32xf32, #tpu.memory_space<vmem>>, vector<1x32x32xf32>
    %135 = vector.shape_cast %134 : vector<1x32x32xf32> to vector<32x32xf32>
    %cst_84 = arith.constant dense<0.000000e+00> : vector<128x32xf32>
    %136 = tpu.matmul %132, %135, %cst_84 {dimension_numbers = #tpu.dot_dimension_numbers<[1], [0], [0], [1], [0, 0, 1, 1], [], []>} : vector<128x32xf32>, vector<32x32xf32>, vector<128x32xf32> -> vector<128x32xf32>
    %c1_85 = arith.constant 1 : index
    %c0_86 = arith.constant 0 : index
    %c0_87 = arith.constant 0 : index
    %137 = vector.load %arg8[%c1_85, %c0_86, %c0_87] : memref<5x32x32xf32, #tpu.memory_space<vmem>>, vector<1x32x32xf32>
    %138 = vector.shape_cast %137 : vector<1x32x32xf32> to vector<32x32xf32>
    %cst_88 = arith.constant dense<0.000000e+00> : vector<128x32xf32>
    %139 = tpu.matmul %133, %138, %cst_88 {dimension_numbers = #tpu.dot_dimension_numbers<[1], [0], [0], [1], [0, 0, 1, 1], [], []>} : vector<128x32xf32>, vector<32x32xf32>, vector<128x32xf32> -> vector<128x32xf32>
    %140 = arith.addf %136, %139 : vector<128x32xf32>
    %c0_89 = arith.constant 0 : index
    %c0_90 = arith.constant 0 : index
    %141 = vector.load %arg9[%c0_89, %c0_90] : memref<6x32xf32, #tpu.memory_space<vmem>>, vector<1x32xf32>
    %142 = vector.broadcast %141 : vector<1x32xf32> to vector<128x32xf32>
    %143 = arith.addf %140, %142 : vector<128x32xf32>
    %cst_91 = arith.constant 0.000000e+00 : f32
    %144 = vector.broadcast %cst_91 : f32 to vector<128x32xf32>
    %145 = arith.maximumf %143, %144 : vector<128x32xf32>
    %c2_92 = arith.constant 2 : index
    %c0_93 = arith.constant 0 : index
    %c0_94 = arith.constant 0 : index
    %146 = vector.load %arg8[%c2_92, %c0_93, %c0_94] : memref<5x32x32xf32, #tpu.memory_space<vmem>>, vector<1x32x32xf32>
    %147 = vector.shape_cast %146 : vector<1x32x32xf32> to vector<32x32xf32>
    %cst_95 = arith.constant dense<0.000000e+00> : vector<128x32xf32>
    %148 = tpu.matmul %145, %147, %cst_95 {dimension_numbers = #tpu.dot_dimension_numbers<[1], [0], [0], [1], [0, 0, 1, 1], [], []>} : vector<128x32xf32>, vector<32x32xf32>, vector<128x32xf32> -> vector<128x32xf32>
    %c1_96 = arith.constant 1 : index
    %c0_97 = arith.constant 0 : index
    %149 = vector.load %arg9[%c1_96, %c0_97] : memref<6x32xf32, #tpu.memory_space<vmem>>, vector<1x32xf32>
    %150 = vector.broadcast %149 : vector<1x32xf32> to vector<128x32xf32>
    %151 = arith.addf %148, %150 : vector<128x32xf32>
    %cst_98 = arith.constant 0.000000e+00 : f32
    %152 = vector.broadcast %cst_98 : f32 to vector<128x32xf32>
    %153 = arith.maximumf %151, %152 : vector<128x32xf32>
    %c3_99 = arith.constant 3 : index
    %c0_100 = arith.constant 0 : index
    %c0_101 = arith.constant 0 : index
    %154 = vector.load %arg8[%c3_99, %c0_100, %c0_101] : memref<5x32x32xf32, #tpu.memory_space<vmem>>, vector<1x32x32xf32>
    %155 = vector.shape_cast %154 : vector<1x32x32xf32> to vector<32x32xf32>
    %cst_102 = arith.constant dense<0.000000e+00> : vector<128x32xf32>
    %156 = tpu.matmul %153, %155, %cst_102 {dimension_numbers = #tpu.dot_dimension_numbers<[1], [0], [0], [1], [0, 0, 1, 1], [], []>} : vector<128x32xf32>, vector<32x32xf32>, vector<128x32xf32> -> vector<128x32xf32>
    %c2_103 = arith.constant 2 : index
    %c0_104 = arith.constant 0 : index
    %157 = vector.load %arg9[%c2_103, %c0_104] : memref<6x32xf32, #tpu.memory_space<vmem>>, vector<1x32xf32>
    %158 = vector.broadcast %157 : vector<1x32xf32> to vector<128x32xf32>
    %159 = arith.addf %156, %158 : vector<128x32xf32>
    %cst_105 = arith.constant 0.000000e+00 : f32
    %160 = vector.broadcast %cst_105 : f32 to vector<128x32xf32>
    %161 = arith.maximumf %159, %160 : vector<128x32xf32>
    %c4_106 = arith.constant 4 : index
    %c0_107 = arith.constant 0 : index
    %c0_108 = arith.constant 0 : index
    %162 = vector.load %arg8[%c4_106, %c0_107, %c0_108] : memref<5x32x32xf32, #tpu.memory_space<vmem>>, vector<1x32x32xf32>
    %163 = vector.shape_cast %162 : vector<1x32x32xf32> to vector<32x32xf32>
    %cst_109 = arith.constant dense<0.000000e+00> : vector<128x32xf32>
    %164 = tpu.matmul %161, %163, %cst_109 {dimension_numbers = #tpu.dot_dimension_numbers<[1], [0], [0], [1], [0, 0, 1, 1], [], []>} : vector<128x32xf32>, vector<32x32xf32>, vector<128x32xf32> -> vector<128x32xf32>
    %c3_110 = arith.constant 3 : index
    %c0_111 = arith.constant 0 : index
    %165 = vector.load %arg9[%c3_110, %c0_111] : memref<6x32xf32, #tpu.memory_space<vmem>>, vector<1x32xf32>
    %166 = vector.broadcast %165 : vector<1x32xf32> to vector<128x32xf32>
    %167 = arith.addf %164, %166 : vector<128x32xf32>
    %cst_112 = arith.constant 0.000000e+00 : f32
    %168 = vector.broadcast %cst_112 : f32 to vector<128x32xf32>
    %169 = arith.maximumf %167, %168 : vector<128x32xf32>
    %c4_113 = arith.constant 4 : index
    %c0_114 = arith.constant 0 : index
    %170 = vector.load %arg9[%c4_113, %c0_114] : memref<6x32xf32, #tpu.memory_space<vmem>>, vector<1x32xf32>
    %c5_115 = arith.constant 5 : index
    %c0_116 = arith.constant 0 : index
    %171 = vector.load %arg9[%c5_115, %c0_116] : memref<6x32xf32, #tpu.memory_space<vmem>>, vector<1x1xf32>
    %cst_117 = arith.constant dense<0.000000e+00> : vector<1x128xf32>
    %172 = tpu.matmul %170, %169, %cst_117 {dimension_numbers = #tpu.dot_dimension_numbers<[1], [1], [0], [0], [0, 0, 1, 0], [], []>} : vector<1x32xf32>, vector<128x32xf32>, vector<1x128xf32> -> vector<1x128xf32>
    %173 = vector.broadcast %171 : vector<1x1xf32> to vector<1x128xf32>
    %174 = arith.addf %172, %173 : vector<1x128xf32>
    %c0_118 = arith.constant 0 : index
    %c0_119 = arith.constant 0 : index
    %175 = vector.load %arg10[%c0_118, %c0_119] : memref<1x128xf32, #tpu.memory_space<vmem>>, vector<1x128xf32>
    tpu.vector_store %arg10[%c0_118, %c0_119], %174 {strides = array<i32>} : memref<1x128xf32, #tpu.memory_space<vmem>>, vector<1x128xf32>,
    return
  }
}

</mosaic_0001>

<llo_original>
// kernel: model_forward.1
$region0: #{model_forward.1}
  #allocation0 [shape = 'u32[]', space=smem, size = 0x4, offset = 0x4, fixed_abs, tag = 'smem constant byte address 0x4 - core index']
  #allocation1 [shape = 'u32[144,128]{1,0:T(1,128)}', space=vmem, size = 0x12000, scoped, tag = 'internal scratch']
  %s0 = inlined_call_operand.vmem [shape: f32[20,12], index: 0, kind: input, shape index: {}]
  %s1 = inlined_call_operand.vmem [shape: f32[12,20], index: 1, kind: input, shape index: {}]
  %s2 = inlined_call_operand.vmem [shape: f32[12,32], index: 2, kind: input, shape index: {}]
  %s3 = inlined_call_operand.vmem [shape: f32[20,32], index: 3, kind: input, shape index: {}]
  %s4 = inlined_call_operand.vmem [shape: s32[128,1], index: 4, kind: input, shape index: {}]
  %s5 = inlined_call_operand.vmem [shape: s32[128,1], index: 5, kind: input, shape index: {}]
  %s6 = inlined_call_operand.vmem [shape: f32[10,32,64], index: 6, kind: input, shape index: {}]
  %s7 = inlined_call_operand.vmem [shape: f32[10,32], index: 7, kind: input, shape index: {}]
  %s8 = inlined_call_operand.vmem [shape: f32[5,32,32], index: 8, kind: input, shape index: {}]
  %s9 = inlined_call_operand.vmem [shape: f32[6,32], index: 9, kind: input, shape index: {}]
  %s10 = inlined_call_operand.vmem [shape: f32[1,128], index: 10, kind: output, shape index: {}]
  %s11 = sld [smem:[#allocation0]]
  $region50: #{model_forward.1} parent=0
    _
  %s13 = ssub.s32 1, %s11
  %s14 = scalar_select 0, %s13, %s11
  // Predicated region
  $region2: #{model_forward.1} parent=0 // pred_check
    _
  $region3: #{model_forward.1} parent=0 // pred_check_branch
    %16 = sbr.rel (0) target = $region5
  $region4: #{model_forward.1} parent=0 // pred_region
    _
  $region5: #{model_forward.1} parent=0 // pred_fallthru
    _
  // Predicated region
  $region6: #{model_forward.1} parent=0 // pred_check
    _
  $region7: #{model_forward.1} parent=0 // pred_check_branch
    %18 = sbr.rel (0) target = $region9
  $region8: #{model_forward.1} parent=0 // pred_region
    _
  $region9: #{model_forward.1} parent=0 // pred_fallthru
    _
  // Predicated region
  $region10: #{model_forward.1} parent=0 // pred_check
    _
  $region11: #{model_forward.1} parent=0 // pred_check_branch
    %20 = sbr.rel (0) target = $region13
  $region12: #{model_forward.1} parent=0 // pred_region
    _
  $region13: #{model_forward.1} parent=0 // pred_fallthru
    _
  // Predicated region
  $region14: #{model_forward.1} parent=0 // pred_check
    _
  $region15: #{model_forward.1} parent=0 // pred_check_branch
    %22 = sbr.rel (0) target = $region17
  $region16: #{model_forward.1} parent=0 // pred_region
    _
  $region17: #{model_forward.1} parent=0 // pred_fallthru
    _
  // Predicated region
  $region18: #{model_forward.1} parent=0 // pred_check
    _
  $region19: #{model_forward.1} parent=0 // pred_check_branch
    %24 = sbr.rel (0) target = $region21
  $region20: #{model_forward.1} parent=0 // pred_region
    _
  $region21: #{model_forward.1} parent=0 // pred_fallthru
    _
  // Predicated region
  $region22: #{model_forward.1} parent=0 // pred_check
    _
  $region23: #{model_forward.1} parent=0 // pred_check_branch
    %26 = sbr.rel (0) target = $region25
  $region24: #{model_forward.1} parent=0 // pred_region
    _
  $region25: #{model_forward.1} parent=0 // pred_fallthru
    _
  // Predicated region
  $region26: #{model_forward.1} parent=0 // pred_check
    _
  $region27: #{model_forward.1} parent=0 // pred_check_branch
    %28 = sbr.rel (0) target = $region29
  $region28: #{model_forward.1} parent=0 // pred_region
    _
  $region29: #{model_forward.1} parent=0 // pred_fallthru
    _
  // Predicated region
  $region30: #{model_forward.1} parent=0 // pred_check
    _
  $region31: #{model_forward.1} parent=0 // pred_check_branch
    %30 = sbr.rel (0) target = $region33
  $region32: #{model_forward.1} parent=0 // pred_region
    _
  $region33: #{model_forward.1} parent=0 // pred_fallthru
    _
  // Predicated region
  $region34: #{model_forward.1} parent=0 // pred_check
    _
  $region35: #{model_forward.1} parent=0 // pred_check_branch
    %32 = sbr.rel (0) target = $region37
  $region36: #{model_forward.1} parent=0 // pred_region
    _
  $region37: #{model_forward.1} parent=0 // pred_fallthru
    _
  // Predicated region
  $region38: #{model_forward.1} parent=0 // pred_check
    _
  $region39: #{model_forward.1} parent=0 // pred_check_branch
    %34 = sbr.rel (0) target = $region41
  $region40: #{model_forward.1} parent=0 // pred_region
    _
  $region41: #{model_forward.1} parent=0 // pred_fallthru
    _
  %v35 = vld [vmem:[%s0] sm:$0xff]
  %v36 = vld [vmem:[%s0 + $0x8] sm:$0xff]
  %v37 = vld [vmem:[%s0 + $0x10] sm:$0xf]
  %v38 = vld [vmem:[%s1] sm:$0xff]
  %v39 = vld [vmem:[%s1 + $0x8] sm:$0xf]
  %v40 = vld [vmem:[%s2] sm:$0xff]
  %v41 = vld [vmem:[%s2 + $0x8] sm:$0xf]
  %v42 = vld [vmem:[%s3] sm:$0xff]
  %v43 = vld [vmem:[%s3 + $0x8] sm:$0xff]
  %v44 = vld [vmem:[%s3 + $0x10] sm:$0xf]
  %v45 = vld [vmem:[%s6] sm:$0xff]
  %v46 = vld [vmem:[%s6 + $0x8] sm:$0xff]
  %v47 = vld [vmem:[%s6 + $0x10] sm:$0xff]
  %v48 = vld [vmem:[%s6 + $0x18] sm:$0xff]
  %vm49 = vcmask 261120
  %v51 = vsel %vm49, %v40, 0
  %v54 = vsel %vm49, %v41, 0
  %56 = vmatprep.subr.mxu0 0.0
  %57 = vmatpush1.msra.mxu0 %v45
  %58 = vmatprep.subr.mxu0 0.0
  %59 = vmatpush1.msra.mxu0 %v46
  %60 = vmatprep.subr.mxu0 0.0
  %61 = vmatpush1.msra.mxu0 %v47
  %62 = vmatprep.subr.mxu0 0.0
  %63 = vmatpush1.msra.mxu0 %v48
  %64 = vmatprep.subr.mxu0 0.0
  %65 = vmatpush1.msra.mxu0 0.0
  %66 = vmatprep.subr.mxu0 0.0
  %67 = vmatpush1.msra.mxu0 0.0
  %68 = vmatprep.subr.mxu0 0.0
  %69 = vmatpush1.msra.mxu0 0.0
  %70 = vmatprep.subr.mxu0 0.0
  %71 = vmatpush1.msra.mxu0 0.0
  %72 = vmatprep.subr.mxu0 0.0
  %73 = vmatpush1.msra.mxu0 0.0
  %74 = vmatprep.subr.mxu0 0.0
  %75 = vmatpush1.msra.mxu0 0.0
  %76 = vmatprep.subr.mxu0 0.0
  %77 = vmatpush1.msra.mxu0 0.0
  %78 = vmatprep.subr.mxu0 0.0
  %79 = vmatpush1.msra.mxu0 0.0
  %80 = vmatprep.subr.mxu0 0.0
  %81 = vmatpush1.msra.mxu0 0.0
  %82 = vmatprep.subr.mxu0 0.0
  %83 = vmatpush1.msra.mxu0 0.0
  %84 = vmatprep.subr.mxu0 0.0
  %85 = vmatpush1.msra.mxu0 0.0
  %86 = vmatprep.subr.mxu0 0.0
  %87 = vmatpush1.msra.mxu0 0.0
  %88 = vmatprep.subr.mxu0 0.0
  %89 = vmatpush1.msra.mxu0 0.0
  %90 = vmatprep.subr.mxu0 0.0
  %91 = vmatpush1.msra.mxu0 0.0
  %92 = vmatprep.subr.mxu0 0.0
  %93 = vmatpush1.msra.mxu0 0.0
  %94 = vmatprep.subr.mxu0 0.0
  %95 = vmatpush1.msra.mxu0 0.0
  %96 = vmatprep.subr.mxu0 0.0
  %97 = vmatpush1.msra.mxu0 0.0
  %98 = vmatprep.subr.mxu0 0.0
  %99 = vmatpush1.msra.mxu0 0.0
  %100 = vmatprep.subr.mxu0 0.0
  %101 = vmatpush1.msra.mxu0 0.0
  %102 = vmatprep.subr.mxu0 0.0
  %103 = vmatpush1.msra.mxu0 0.0
  %104 = vmatprep.subr.mxu0 0.0
  %105 = vmatpush1.msra.mxu0 0.0
  %106 = vmatprep.subr.mxu0 0.0
  %107 = vmatpush1.msra.mxu0 0.0
  %108 = vmatprep.subr.mxu0 0.0
  %109 = vmatpush1.msra.mxu0 0.0
  %110 = vmatprep.subr.mxu0 0.0
  %111 = vmatpush1.msra.mxu0 0.0
  %112 = vmatprep.subr.mxu0 0.0
  %113 = vmatpush1.msra.mxu0 0.0
  %114 = vmatprep.subr.mxu0 0.0
  %115 = vmatpush1.msra.mxu0 0.0
  %116 = vmatprep.subr.mxu0 0.0
  %117 = vmatpush1.msra.mxu0 0.0
  %118 = vmatprep.subr.mxu0 0.0
  %119 = vmatpush1.msra.mxu0 0.0
  %120 = vmatprep.mubr.f32.mxu0 0.0
  %121 = vmatmul.mubr.f32.gmra.mrb[0].mxu0 %v51
  %v122 = vpop.f32.mrb[0].mxu0
  %v123 = vadd.f32 0.0, %v122
  %v124 = vpop.f32.mrb[0].mxu0
  %125 = vmatprep.mubr.f32.mxu0 0.0
  %126 = vmatmul.mubr.f32.gmra.mrb[0].mxu0 %v54
  %v127 = vpop.f32.mrb[0].mxu0
  %v128 = vadd.f32 0.0, %v127
  %v129 = vpop.f32.mrb[0].mxu0
  %130 = vdwg.mxu0
  %s131 = scalar_lea.vmem %s6, 32
  %v132 = vld [vmem:[%s131] sm:$0xff]
  %v133 = vld [vmem:[%s131 + $0x8] sm:$0xff]
  %v134 = vld [vmem:[%s131 + $0x10] sm:$0xff]
  %v135 = vld [vmem:[%s131 + $0x18] sm:$0xff]
  %v137 = vsel %vm49, %v42, 0
  %v140 = vsel %vm49, %v43, 0
  %v143 = vsel %vm49, %v44, 0
  %145 = vmatprep.subr.mxu0 0.0
  %146 = vmatpush1.msra.mxu0 %v132
  %147 = vmatprep.subr.mxu0 0.0
  %148 = vmatpush1.msra.mxu0 %v133
  %149 = vmatprep.subr.mxu0 0.0
  %150 = vmatpush1.msra.mxu0 %v134
  %151 = vmatprep.subr.mxu0 0.0
  %152 = vmatpush1.msra.mxu0 %v135
  %153 = vmatprep.subr.mxu0 0.0
  %154 = vmatpush1.msra.mxu0 0.0
  %155 = vmatprep.subr.mxu0 0.0
  %156 = vmatpush1.msra.mxu0 0.0
  %157 = vmatprep.subr.mxu0 0.0
  %158 = vmatpush1.msra.mxu0 0.0
  %159 = vmatprep.subr.mxu0 0.0
  %160 = vmatpush1.msra.mxu0 0.0
  %161 = vmatprep.subr.mxu0 0.0
  %162 = vmatpush1.msra.mxu0 0.0
  %163 = vmatprep.subr.mxu0 0.0
  %164 = vmatpush1.msra.mxu0 0.0
  %165 = vmatprep.subr.mxu0 0.0
  %166 = vmatpush1.msra.mxu0 0.0
  %167 = vmatprep.subr.mxu0 0.0
  %168 = vmatpush1.msra.mxu0 0.0
  %169 = vmatprep.subr.mxu0 0.0
  %170 = vmatpush1.msra.mxu0 0.0
  %171 = vmatprep.subr.mxu0 0.0
  %172 = vmatpush1.msra.mxu0 0.0
  %173 = vmatprep.subr.mxu0 0.0
  %174 = vmatpush1.msra.mxu0 0.0
  %175 = vmatprep.subr.mxu0 0.0
  %176 = vmatpush1.msra.mxu0 0.0
  %177 = vmatprep.subr.mxu0 0.0
  %178 = vmatpush1.msra.mxu0 0.0
  %179 = vmatprep.subr.mxu0 0.0
  %180 = vmatpush1.msra.mxu0 0.0
  %181 = vmatprep.subr.mxu0 0.0
  %182 = vmatpush1.msra.mxu0 0.0
  %183 = vmatprep.subr.mxu0 0.0
  %184 = vmatpush1.msra.mxu0 0.0
  %185 = vmatprep.subr.mxu0 0.0
  %186 = vmatpush1.msra.mxu0 0.0
  %187 = vmatprep.subr.mxu0 0.0
  %188 = vmatpush1.msra.mxu0 0.0
  %189 = vmatprep.subr.mxu0 0.0
  %190 = vmatpush1.msra.mxu0 0.0
  %191 = vmatprep.subr.mxu0 0.0
  %192 = vmatpush1.msra.mxu0 0.0
  %193 = vmatprep.subr.mxu0 0.0
  %194 = vmatpush1.msra.mxu0 0.0
  %195 = vmatprep.subr.mxu0 0.0
  %196 = vmatpush1.msra.mxu0 0.0
  %197 = vmatprep.subr.mxu0 0.0
  %198 = vmatpush1.msra.mxu0 0.0
  %199 = vmatprep.subr.mxu0 0.0
  %200 = vmatpush1.msra.mxu0 0.0
  %201 = vmatprep.subr.mxu0 0.0
  %202 = vmatpush1.msra.mxu0 0.0
  %203 = vmatprep.subr.mxu0 0.0
  %204 = vmatpush1.msra.mxu0 0.0
  %205 = vmatprep.subr.mxu0 0.0
  %206 = vmatpush1.msra.mxu0 0.0
  %207 = vmatprep.subr.mxu0 0.0
  %208 = vmatpush1.msra.mxu0 0.0
  %209 = vmatprep.mubr.f32.mxu0 0.0
  %210 = vmatmul.mubr.f32.gmra.mrb[0].mxu0 %v137
  %v211 = vpop.f32.mrb[0].mxu0
  %v212 = vadd.f32 0.0, %v211
  %v213 = vpop.f32.mrb[0].mxu0
  %214 = vmatprep.mubr.f32.mxu0 0.0
  %215 = vmatmul.mubr.f32.gmra.mrb[0].mxu0 %v140
  %v216 = vpop.f32.mrb[0].mxu0
  %v217 = vadd.f32 0.0, %v216
  %v218 = vpop.f32.mrb[0].mxu0
  %219 = vmatprep.mubr.f32.mxu0 0.0
  %220 = vmatmul.mubr.f32.gmra.mrb[0].mxu0 %v143
  %v221 = vpop.f32.mrb[0].mxu0
  %v222 = vadd.f32 0.0, %v221
  %v223 = vpop.f32.mrb[0].mxu0
  %224 = vdwg.mxu0
  %228 = vrot.lane.b32.xlu0 %v212, 96
  %v229 = vpop.permute.xlu0 %228
  %230 = vrot.lane.b32.xlu0 %v217, 96
  %v231 = vpop.permute.xlu0 %230
  %232 = vrot.lane.b32.xlu0 %v222, 96
  %v233 = vpop.permute.xlu0 %232
  %vm237 = vcmask 97280
  %v239 = vsel %vm237, %v35, 0
  %v242 = vsel %vm237, %v36, 0
  %v245 = vsel %vm237, %v37, 0
  %vm247 = vcmask 1043456
  %v249 = vsel %vm247, %v128, 0
  %251 = vmatprep.subr.mxu0 0.0
  %252 = vmatpush1.msra.mxu0 %v123
  %253 = vmatprep.subr.mxu0 0.0
  %254 = vmatpush1.msra.mxu0 %v249
  %255 = vmatprep.subr.mxu0 0.0
  %256 = vmatpush1.msra.mxu0 0.0
  %257 = vmatprep.subr.mxu0 0.0
  %258 = vmatpush1.msra.mxu0 0.0
  %259 = vmatprep.subr.mxu0 0.0
  %260 = vmatpush1.msra.mxu0 0.0
  %261 = vmatprep.subr.mxu0 0.0
  %262 = vmatpush1.msra.mxu0 0.0
  %263 = vmatprep.subr.mxu0 0.0
  %264 = vmatpush1.msra.mxu0 0.0
  %265 = vmatprep.subr.mxu0 0.0
  %266 = vmatpush1.msra.mxu0 0.0
  %267 = vmatprep.subr.mxu0 0.0
  %268 = vmatpush1.msra.mxu0 0.0
  %269 = vmatprep.subr.mxu0 0.0
  %270 = vmatpush1.msra.mxu0 0.0
  %271 = vmatprep.subr.mxu0 0.0
  %272 = vmatpush1.msra.mxu0 0.0
  %273 = vmatprep.subr.mxu0 0.0
  %274 = vmatpush1.msra.mxu0 0.0
  %275 = vmatprep.subr.mxu0 0.0
  %276 = vmatpush1.msra.mxu0 0.0
  %277 = vmatprep.subr.mxu0 0.0
  %278 = vmatpush1.msra.mxu0 0.0
  %279 = vmatprep.subr.mxu0 0.0
  %280 = vmatpush1.msra.mxu0 0.0
  %281 = vmatprep.subr.mxu0 0.0
  %282 = vmatpush1.msra.mxu0 0.0
  %283 = vmatprep.subr.mxu0 0.0
  %284 = vmatpush1.msra.mxu0 0.0
  %285 = vmatprep.subr.mxu0 0.0
  %286 = vmatpush1.msra.mxu0 0.0
  %287 = vmatprep.subr.mxu0 0.0
  %288 = vmatpush1.msra.mxu0 0.0
  %289 = vmatprep.subr.mxu0 0.0
  %290 = vmatpush1.msra.mxu0 0.0
  %291 = vmatprep.subr.mxu0 0.0
  %292 = vmatpush1.msra.mxu0 0.0
  %293 = vmatprep.subr.mxu0 0.0
  %294 = vmatpush1.msra.mxu0 0.0
  %295 = vmatprep.subr.mxu0 0.0
  %296 = vmatpush1.msra.mxu0 0.0
  %297 = vmatprep.subr.mxu0 0.0
  %298 = vmatpush1.msra.mxu0 0.0
  %299 = vmatprep.subr.mxu0 0.0
  %300 = vmatpush1.msra.mxu0 0.0
  %301 = vmatprep.subr.mxu0 0.0
  %302 = vmatpush1.msra.mxu0 0.0
  %303 = vmatprep.subr.mxu0 0.0
  %304 = vmatpush1.msra.mxu0 0.0
  %305 = vmatprep.subr.mxu0 0.0
  %306 = vmatpush1.msra.mxu0 0.0
  %307 = vmatprep.subr.mxu0 0.0
  %308 = vmatpush1.msra.mxu0 0.0
  %309 = vmatprep.subr.mxu0 0.0
  %310 = vmatpush1.msra.mxu0 0.0
  %311 = vmatprep.subr.mxu0 0.0
  %312 = vmatpush1.msra.mxu0 0.0
  %313 = vmatprep.subr.mxu0 0.0
  %314 = vmatpush1.msra.mxu0 0.0
  %315 = vmatprep.mubr.f32.mxu0 0.0
  %316 = vmatmul.mubr.f32.gmra.mrb[0].mxu0 %v239
  %v317 = vpop.f32.mrb[0].mxu0
  %v318 = vadd.f32 %v229, %v317
  %v319 = vpop.f32.mrb[0].mxu0
  %320 = vmatprep.mubr.f32.mxu0 0.0
  %321 = vmatmul.mubr.f32.gmra.mrb[0].mxu0 %v242
  %v322 = vpop.f32.mrb[0].mxu0
  %v323 = vadd.f32 %v231, %v322
  %v324 = vpop.f32.mrb[0].mxu0
  %325 = vmatprep.mubr.f32.mxu0 0.0
  %326 = vmatmul.mubr.f32.gmra.mrb[0].mxu0 %v245
  %v327 = vpop.f32.mrb[0].mxu0
  %v328 = vadd.f32 %v233, %v327
  %v329 = vpop.f32.mrb[0].mxu0
  %330 = vdwg.mxu0
  %v331 = vld [vmem:[%s7] sm:$0x1]
  %v332 = vlaneseq
  %v333 = vshrl.u32 %v332, 7
  %v334 = vsub.s32 0, %v333
  %v335 = vrot.slane %v331, %v334
  %v336 = vadd.f32 %v318, %v335
  %v337 = vadd.f32 %v323, %v335
  %v338 = vadd.f32 %v328, %v335
  %340 = vrot.lane.b32.xlu0 %v123, 96
  %v341 = vpop.permute.xlu0 %340
  %342 = vrot.lane.b32.xlu0 %v128, 96
  %v343 = vpop.permute.xlu0 %342
  %vm346 = vcmask 162816
  %v348 = vsel %vm346, %v38, 0
  %v351 = vsel %vm346, %v39, 0
  %v353 = vsel %vm247, %v222, 0
  %355 = vmatprep.subr.mxu0 0.0
  %356 = vmatpush1.msra.mxu0 %v212
  %357 = vmatprep.subr.mxu0 0.0
  %358 = vmatpush1.msra.mxu0 %v217
  %359 = vmatprep.subr.mxu0 0.0
  %360 = vmatpush1.msra.mxu0 %v353
  %361 = vmatprep.subr.mxu0 0.0
  %362 = vmatpush1.msra.mxu0 0.0
  %363 = vmatprep.subr.mxu0 0.0
  %364 = vmatpush1.msra.mxu0 0.0
  %365 = vmatprep.subr.mxu0 0.0
  %366 = vmatpush1.msra.mxu0 0.0
  %367 = vmatprep.subr.mxu0 0.0
  %368 = vmatpush1.msra.mxu0 0.0
  %369 = vmatprep.subr.mxu0 0.0
  %370 = vmatpush1.msra.mxu0 0.0
  %371 = vmatprep.subr.mxu0 0.0
  %372 = vmatpush1.msra.mxu0 0.0
  %373 = vmatprep.subr.mxu0 0.0
  %374 = vmatpush1.msra.mxu0 0.0
  %375 = vmatprep.subr.mxu0 0.0
  %376 = vmatpush1.msra.mxu0 0.0
  %377 = vmatprep.subr.mxu0 0.0
  %378 = vmatpush1.msra.mxu0 0.0
  %379 = vmatprep.subr.mxu0 0.0
  %380 = vmatpush1.msra.mxu0 0.0
  %381 = vmatprep.subr.mxu0 0.0
  %382 = vmatpush1.msra.mxu0 0.0
  %383 = vmatprep.subr.mxu0 0.0
  %384 = vmatpush1.msra.mxu0 0.0
  %385 = vmatprep.subr.mxu0 0.0
  %386 = vmatpush1.msra.mxu0 0.0
  %387 = vmatprep.subr.mxu0 0.0
  %388 = vmatpush1.msra.mxu0 0.0
  %389 = vmatprep.subr.mxu0 0.0
  %390 = vmatpush1.msra.mxu0 0.0
  %391 = vmatprep.subr.mxu0 0.0
  %392 = vmatpush1.msra.mxu0 0.0
  %393 = vmatprep.subr.mxu0 0.0
  %394 = vmatpush1.msra.mxu0 0.0
  %395 = vmatprep.subr.mxu0 0.0
  %396 = vmatpush1.msra.mxu0 0.0
  %397 = vmatprep.subr.mxu0 0.0
  %398 = vmatpush1.msra.mxu0 0.0
  %399 = vmatprep.subr.mxu0 0.0
  %400 = vmatpush1.msra.mxu0 0.0
  %401 = vmatprep.subr.mxu0 0.0
  %402 = vmatpush1.msra.mxu0 0.0
  %403 = vmatprep.subr.mxu0 0.0
  %404 = vmatpush1.msra.mxu0 0.0
  %405 = vmatprep.subr.mxu0 0.0
  %406 = vmatpush1.msra.mxu0 0.0
  %407 = vmatprep.subr.mxu0 0.0
  %408 = vmatpush1.msra.mxu0 0.0
  %409 = vmatprep.subr.mxu0 0.0
  %410 = vmatpush1.msra.mxu0 0.0
  %411 = vmatprep.subr.mxu0 0.0
  %412 = vmatpush1.msra.mxu0 0.0
  %413 = vmatprep.subr.mxu0 0.0
  %414 = vmatpush1.msra.mxu0 0.0
  %415 = vmatprep.subr.mxu0 0.0
  %416 = vmatpush1.msra.mxu0 0.0
  %417 = vmatprep.subr.mxu0 0.0
  %418 = vmatpush1.msra.mxu0 0.0
  %419 = vmatprep.mubr.f32.mxu0 0.0
  %420 = vmatmul.mubr.f32.gmra.mrb[0].mxu0 %v348
  %v421 = vpop.f32.mrb[0].mxu0
  %v422 = vadd.f32 %v341, %v421
  %v423 = vpop.f32.mrb[0].mxu0
  %424 = vmatprep.mubr.f32.mxu0 0.0
  %425 = vmatmul.mubr.f32.gmra.mrb[0].mxu0 %v351
  %v426 = vpop.f32.mrb[0].mxu0
  %v427 = vadd.f32 %v343, %v426
  %v428 = vpop.f32.mrb[0].mxu0
  %429 = vdwg.mxu0
  %v430 = vld [vmem:[%s7 + $0x1] sm:$0x1]
  %v431 = vlaneseq
  %v432 = vshrl.u32 %v431, 7
  %v433 = vsub.s32 0, %v432
  %v434 = vrot.slane %v430, %v433
  %v435 = vadd.f32 %v422, %v434
  %v436 = vadd.f32 %v427, %v434
  %v437 = vmax.f32 %v336, 0.0
  %v438 = vmax.f32 %v337, 0.0
  %v439 = vmax.f32 %v338, 0.0
  %v440 = vmax.f32 %v435, 0.0
  %v441 = vmax.f32 %v436, 0.0
  %s442 = scalar_lea.vmem %s6, 64
  %v443 = vld [vmem:[%s442] sm:$0xff]
  %v444 = vld [vmem:[%s442 + $0x8] sm:$0xff]
  %v445 = vld [vmem:[%s442 + $0x10] sm:$0xff]
  %v446 = vld [vmem:[%s442 + $0x18] sm:$0xff]
  %v448 = vsel %vm49, %v440, 0
  %v451 = vsel %vm49, %v441, 0
  %453 = vmatprep.subr.mxu0 0.0
  %454 = vmatpush1.msra.mxu0 %v443
  %455 = vmatprep.subr.mxu0 0.0
  %456 = vmatpush1.msra.mxu0 %v444
  %457 = vmatprep.subr.mxu0 0.0
  %458 = vmatpush1.msra.mxu0 %v445
  %459 = vmatprep.subr.mxu0 0.0
  %460 = vmatpush1.msra.mxu0 %v446
  %461 = vmatprep.subr.mxu0 0.0
  %462 = vmatpush1.msra.mxu0 0.0
  %463 = vmatprep.subr.mxu0 0.0
  %464 = vmatpush1.msra.mxu0 0.0
  %465 = vmatprep.subr.mxu0 0.0
  %466 = vmatpush1.msra.mxu0 0.0
  %467 = vmatprep.subr.mxu0 0.0
  %468 = vmatpush1.msra.mxu0 0.0
  %469 = vmatprep.subr.mxu0 0.0
  %470 = vmatpush1.msra.mxu0 0.0
  %471 = vmatprep.subr.mxu0 0.0
  %472 = vmatpush1.msra.mxu0 0.0
  %473 = vmatprep.subr.mxu0 0.0
  %474 = vmatpush1.msra.mxu0 0.0
  %475 = vmatprep.subr.mxu0 0.0
  %476 = vmatpush1.msra.mxu0 0.0
  %477 = vmatprep.subr.mxu0 0.0
  %478 = vmatpush1.msra.mxu0 0.0
  %479 = vmatprep.subr.mxu0 0.0
  %480 = vmatpush1.msra.mxu0 0.0
  %481 = vmatprep.subr.mxu0 0.0
  %482 = vmatpush1.msra.mxu0 0.0
  %483 = vmatprep.subr.mxu0 0.0
  %484 = vmatpush1.msra.mxu0 0.0
  %485 = vmatprep.subr.mxu0 0.0
  %486 = vmatpush1.msra.mxu0 0.0
  %487 = vmatprep.subr.mxu0 0.0
  %488 = vmatpush1.msra.mxu0 0.0
  %489 = vmatprep.subr.mxu0 0.0
  %490 = vmatpush1.msra.mxu0 0.0
  %491 = vmatprep.subr.mxu0 0.0
  %492 = vmatpush1.msra.mxu0 0.0
  %493 = vmatprep.subr.mxu0 0.0
  %494 = vmatpush1.msra.mxu0 0.0
  %495 = vmatprep.subr.mxu0 0.0
  %496 = vmatpush1.msra.mxu0 0.0
  %497 = vmatprep.subr.mxu0 0.0
  %498 = vmatpush1.msra.mxu0 0.0
  %499 = vmatprep.subr.mxu0 0.0
  %500 = vmatpush1.msra.mxu0 0.0
  %501 = vmatprep.subr.mxu0 0.0
  %502 = vmatpush1.msra.mxu0 0.0
  %503 = vmatprep.subr.mxu0 0.0
  %504 = vmatpush1.msra.mxu0 0.0
  %505 = vmatprep.subr.mxu0 0.0
  %506 = vmatpush1.msra.mxu0 0.0
  %507 = vmatprep.subr.mxu0 0.0
  %508 = vmatpush1.msra.mxu0 0.0
  %509 = vmatprep.subr.mxu0 0.0
  %510 = vmatpush1.msra.mxu0 0.0
  %511 = vmatprep.subr.mxu0 0.0
  %512 = vmatpush1.msra.mxu0 0.0
  %513 = vmatprep.subr.mxu0 0.0
  %514 = vmatpush1.msra.mxu0 0.0
  %515 = vmatprep.subr.mxu0 0.0
  %516 = vmatpush1.msra.mxu0 0.0
  %517 = vmatprep.mubr.f32.mxu0 0.0
  %518 = vmatmul.mubr.f32.gmra.mrb[0].mxu0 %v448
  %v519 = vpop.f32.mrb[0].mxu0
  %v520 = vadd.f32 0.0, %v519
  %v521 = vpop.f32.mrb[0].mxu0
  %522 = vmatprep.mubr.f32.mxu0 0.0
  %523 = vmatmul.mubr.f32.gmra.mrb[0].mxu0 %v451
  %v524 = vpop.f32.mrb[0].mxu0
  %v525 = vadd.f32 0.0, %v524
  %v526 = vpop.f32.mrb[0].mxu0
  %527 = vdwg.mxu0
  %s528 = scalar_lea.vmem %s6, 96
  %v529 = vld [vmem:[%s528] sm:$0xff]
  %v530 = vld [vmem:[%s528 + $0x8] sm:$0xff]
  %v531 = vld [vmem:[%s528 + $0x10] sm:$0xff]
  %v532 = vld [vmem:[%s528 + $0x18] sm:$0xff]
  %v534 = vsel %vm49, %v437, 0
  %v537 = vsel %vm49, %v438, 0
  %v540 = vsel %vm49, %v439, 0
  %542 = vmatprep.subr.mxu0 0.0
  %543 = vmatpush1.msra.mxu0 %v529
  %544 = vmatprep.subr.mxu0 0.0
  %545 = vmatpush1.msra.mxu0 %v530
  %546 = vmatprep.subr.mxu0 0.0
  %547 = vmatpush1.msra.mxu0 %v531
  %548 = vmatprep.subr.mxu0 0.0
  %549 = vmatpush1.msra.mxu0 %v532
  %550 = vmatprep.subr.mxu0 0.0
  %551 = vmatpush1.msra.mxu0 0.0
  %552 = vmatprep.subr.mxu0 0.0
  %553 = vmatpush1.msra.mxu0 0.0
  %554 = vmatprep.subr.mxu0 0.0
  %555 = vmatpush1.msra.mxu0 0.0
  %556 = vmatprep.subr.mxu0 0.0
  %557 = vmatpush1.msra.mxu0 0.0
  %558 = vmatprep.subr.mxu0 0.0
  %559 = vmatpush1.msra.mxu0 0.0
  %560 = vmatprep.subr.mxu0 0.0
  %561 = vmatpush1.msra.mxu0 0.0
  %562 = vmatprep.subr.mxu0 0.0
  %563 = vmatpush1.msra.mxu0 0.0
  %564 = vmatprep.subr.mxu0 0.0
  %565 = vmatpush1.msra.mxu0 0.0
  %566 = vmatprep.subr.mxu0 0.0
  %567 = vmatpush1.msra.mxu0 0.0
  %568 = vmatprep.subr.mxu0 0.0
  %569 = vmatpush1.msra.mxu0 0.0
  %570 = vmatprep.subr.mxu0 0.0
  %571 = vmatpush1.msra.mxu0 0.0
  %572 = vmatprep.subr.mxu0 0.0
  %573 = vmatpush1.msra.mxu0 0.0
  %574 = vmatprep.subr.mxu0 0.0
  %575 = vmatpush1.msra.mxu0 0.0
  %576 = vmatprep.subr.mxu0 0.0
  %577 = vmatpush1.msra.mxu0 0.0
  %578 = vmatprep.subr.mxu0 0.0
  %579 = vmatpush1.msra.mxu0 0.0
  %580 = vmatprep.subr.mxu0 0.0
  %581 = vmatpush1.msra.mxu0 0.0
  %582 = vmatprep.subr.mxu0 0.0
  %583 = vmatpush1.msra.mxu0 0.0
  %584 = vmatprep.subr.mxu0 0.0
  %585 = vmatpush1.msra.mxu0 0.0
  %586 = vmatprep.subr.mxu0 0.0
  %587 = vmatpush1.msra.mxu0 0.0
  %588 = vmatprep.subr.mxu0 0.0
  %589 = vmatpush1.msra.mxu0 0.0
  %590 = vmatprep.subr.mxu0 0.0
  %591 = vmatpush1.msra.mxu0 0.0
  %592 = vmatprep.subr.mxu0 0.0
  %593 = vmatpush1.msra.mxu0 0.0
  %594 = vmatprep.subr.mxu0 0.0
  %595 = vmatpush1.msra.mxu0 0.0
  %596 = vmatprep.subr.mxu0 0.0
  %597 = vmatpush1.msra.mxu0 0.0
  %598 = vmatprep.subr.mxu0 0.0
  %599 = vmatpush1.msra.mxu0 0.0
  %600 = vmatprep.subr.mxu0 0.0
  %601 = vmatpush1.msra.mxu0 0.0
  %602 = vmatprep.subr.mxu0 0.0
  %603 = vmatpush1.msra.mxu0 0.0
  %604 = vmatprep.subr.mxu0 0.0
  %605 = vmatpush1.msra.mxu0 0.0
  %606 = vmatprep.mubr.f32.mxu0 0.0
  %607 = vmatmul.mubr.f32.gmra.mrb[0].mxu0 %v534
  %v608 = vpop.f32.mrb[0].mxu0
  %v609 = vadd.f32 0.0, %v608
  %v610 = vpop.f32.mrb[0].mxu0
  %611 = vmatprep.mubr.f32.mxu0 0.0
  %612 = vmatmul.mubr.f32.gmra.mrb[0].mxu0 %v537
  %v613 = vpop.f32.mrb[0].mxu0
  %v614 = vadd.f32 0.0, %v613
  %v615 = vpop.f32.mrb[0].mxu0
  %616 = vmatprep.mubr.f32.mxu0 0.0
  %617 = vmatmul.mubr.f32.gmra.mrb[0].mxu0 %v540
  %v618 = vpop.f32.mrb[0].mxu0
  %v619 = vadd.f32 0.0, %v618
  %v620 = vpop.f32.mrb[0].mxu0
  %621 = vdwg.mxu0
  %625 = vrot.lane.b32.xlu0 %v609, 96
  %v626 = vpop.permute.xlu0 %625
  %627 = vrot.lane.b32.xlu0 %v614, 96
  %v628 = vpop.permute.xlu0 %627
  %629 = vrot.lane.b32.xlu0 %v619, 96
  %v630 = vpop.permute.xlu0 %629
  %v635 = vsel %vm247, %v525, 0
  %637 = vmatprep.subr.mxu0 0.0
  %638 = vmatpush1.msra.mxu0 %v520
  %639 = vmatprep.subr.mxu0 0.0
  %640 = vmatpush1.msra.mxu0 %v635
  %641 = vmatprep.subr.mxu0 0.0
  %642 = vmatpush1.msra.mxu0 0.0
  %643 = vmatprep.subr.mxu0 0.0
  %644 = vmatpush1.msra.mxu0 0.0
  %645 = vmatprep.subr.mxu0 0.0
  %646 = vmatpush1.msra.mxu0 0.0
  %647 = vmatprep.subr.mxu0 0.0
  %648 = vmatpush1.msra.mxu0 0.0
  %649 = vmatprep.subr.mxu0 0.0
  %650 = vmatpush1.msra.mxu0 0.0
  %651 = vmatprep.subr.mxu0 0.0
  %652 = vmatpush1.msra.mxu0 0.0
  %653 = vmatprep.subr.mxu0 0.0
  %654 = vmatpush1.msra.mxu0 0.0
  %655 = vmatprep.subr.mxu0 0.0
  %656 = vmatpush1.msra.mxu0 0.0
  %657 = vmatprep.subr.mxu0 0.0
  %658 = vmatpush1.msra.mxu0 0.0
  %659 = vmatprep.subr.mxu0 0.0
  %660 = vmatpush1.msra.mxu0 0.0
  %661 = vmatprep.subr.mxu0 0.0
  %662 = vmatpush1.msra.mxu0 0.0
  %663 = vmatprep.subr.mxu0 0.0
  %664 = vmatpush1.msra.mxu0 0.0
  %665 = vmatprep.subr.mxu0 0.0
  %666 = vmatpush1.msra.mxu0 0.0
  %667 = vmatprep.subr.mxu0 0.0
  %668 = vmatpush1.msra.mxu0 0.0
  %669 = vmatprep.subr.mxu0 0.0
  %670 = vmatpush1.msra.mxu0 0.0
  %671 = vmatprep.subr.mxu0 0.0
  %672 = vmatpush1.msra.mxu0 0.0
  %673 = vmatprep.subr.mxu0 0.0
  %674 = vmatpush1.msra.mxu0 0.0
  %675 = vmatprep.subr.mxu0 0.0
  %676 = vmatpush1.msra.mxu0 0.0
  %677 = vmatprep.subr.mxu0 0.0
  %678 = vmatpush1.msra.mxu0 0.0
  %679 = vmatprep.subr.mxu0 0.0
  %680 = vmatpush1.msra.mxu0 0.0
  %681 = vmatprep.subr.mxu0 0.0
  %682 = vmatpush1.msra.mxu0 0.0
  %683 = vmatprep.subr.mxu0 0.0
  %684 = vmatpush1.msra.mxu0 0.0
  %685 = vmatprep.subr.mxu0 0.0
  %686 = vmatpush1.msra.mxu0 0.0
  %687 = vmatprep.subr.mxu0 0.0
  %688 = vmatpush1.msra.mxu0 0.0
  %689 = vmatprep.subr.mxu0 0.0
  %690 = vmatpush1.msra.mxu0 0.0
  %691 = vmatprep.subr.mxu0 0.0
  %692 = vmatpush1.msra.mxu0 0.0
  %693 = vmatprep.subr.mxu0 0.0
  %694 = vmatpush1.msra.mxu0 0.0
  %695 = vmatprep.subr.mxu0 0.0
  %696 = vmatpush1.msra.mxu0 0.0
  %697 = vmatprep.subr.mxu0 0.0
  %698 = vmatpush1.msra.mxu0 0.0
  %699 = vmatprep.subr.mxu0 0.0
  %700 = vmatpush1.msra.mxu0 0.0
  %701 = vmatprep.mubr.f32.mxu0 0.0
  %702 = vmatmul.mubr.f32.gmra.mrb[0].mxu0 %v239
  %v703 = vpop.f32.mrb[0].mxu0
  %v704 = vadd.f32 %v626, %v703
  %v705 = vpop.f32.mrb[0].mxu0
  %706 = vmatprep.mubr.f32.mxu0 0.0
  %707 = vmatmul.mubr.f32.gmra.mrb[0].mxu0 %v242
  %v708 = vpop.f32.mrb[0].mxu0
  %v709 = vadd.f32 %v628, %v708
  %v710 = vpop.f32.mrb[0].mxu0
  %711 = vmatprep.mubr.f32.mxu0 0.0
  %712 = vmatmul.mubr.f32.gmra.mrb[0].mxu0 %v245
  %v713 = vpop.f32.mrb[0].mxu0
  %v714 = vadd.f32 %v630, %v713
  %v715 = vpop.f32.mrb[0].mxu0
  %716 = vdwg.mxu0
  %v717 = vld [vmem:[%s7 + $0x2] sm:$0x1]
  %v718 = vlaneseq
  %v719 = vshrl.u32 %v718, 7
  %v720 = vsub.s32 0, %v719
  %v721 = vrot.slane %v717, %v720
  %v722 = vadd.f32 %v704, %v721
  %v723 = vadd.f32 %v709, %v721
  %v724 = vadd.f32 %v714, %v721
  %726 = vrot.lane.b32.xlu0 %v520, 96
  %v727 = vpop.permute.xlu0 %726
  %728 = vrot.lane.b32.xlu0 %v525, 96
  %v729 = vpop.permute.xlu0 %728
  %v732 = vsel %vm247, %v619, 0
  %734 = vmatprep.subr.mxu0 0.0
  %735 = vmatpush1.msra.mxu0 %v609
  %736 = vmatprep.subr.mxu0 0.0
  %737 = vmatpush1.msra.mxu0 %v614
  %738 = vmatprep.subr.mxu0 0.0
  %739 = vmatpush1.msra.mxu0 %v732
  %740 = vmatprep.subr.mxu0 0.0
  %741 = vmatpush1.msra.mxu0 0.0
  %742 = vmatprep.subr.mxu0 0.0
  %743 = vmatpush1.msra.mxu0 0.0
  %744 = vmatprep.subr.mxu0 0.0
  %745 = vmatpush1.msra.mxu0 0.0
  %746 = vmatprep.subr.mxu0 0.0
  %747 = vmatpush1.msra.mxu0 0.0
  %748 = vmatprep.subr.mxu0 0.0
  %749 = vmatpush1.msra.mxu0 0.0
  %750 = vmatprep.subr.mxu0 0.0
  %751 = vmatpush1.msra.mxu0 0.0
  %752 = vmatprep.subr.mxu0 0.0
  %753 = vmatpush1.msra.mxu0 0.0
  %754 = vmatprep.subr.mxu0 0.0
  %755 = vmatpush1.msra.mxu0 0.0
  %756 = vmatprep.subr.mxu0 0.0
  %757 = vmatpush1.msra.mxu0 0.0
  %758 = vmatprep.subr.mxu0 0.0
  %759 = vmatpush1.msra.mxu0 0.0
  %760 = vmatprep.subr.mxu0 0.0
  %761 = vmatpush1.msra.mxu0 0.0
  %762 = vmatprep.subr.mxu0 0.0
  %763 = vmatpush1.msra.mxu0 0.0
  %764 = vmatprep.subr.mxu0 0.0
  %765 = vmatpush1.msra.mxu0 0.0
  %766 = vmatprep.subr.mxu0 0.0
  %767 = vmatpush1.msra.mxu0 0.0
  %768 = vmatprep.subr.mxu0 0.0
  %769 = vmatpush1.msra.mxu0 0.0
  %770 = vmatprep.subr.mxu0 0.0
  %771 = vmatpush1.msra.mxu0 0.0
  %772 = vmatprep.subr.mxu0 0.0
  %773 = vmatpush1.msra.mxu0 0.0
  %774 = vmatprep.subr.mxu0 0.0
  %775 = vmatpush1.msra.mxu0 0.0
  %776 = vmatprep.subr.mxu0 0.0
  %777 = vmatpush1.msra.mxu0 0.0
  %778 = vmatprep.subr.mxu0 0.0
  %779 = vmatpush1.msra.mxu0 0.0
  %780 = vmatprep.subr.mxu0 0.0
  %781 = vmatpush1.msra.mxu0 0.0
  %782 = vmatprep.subr.mxu0 0.0
  %783 = vmatpush1.msra.mxu0 0.0
  %784 = vmatprep.subr.mxu0 0.0
  %785 = vmatpush1.msra.mxu0 0.0
  %786 = vmatprep.subr.mxu0 0.0
  %787 = vmatpush1.msra.mxu0 0.0
  %788 = vmatprep.subr.mxu0 0.0
  %789 = vmatpush1.msra.mxu0 0.0
  %790 = vmatprep.subr.mxu0 0.0
  %791 = vmatpush1.msra.mxu0 0.0
  %792 = vmatprep.subr.mxu0 0.0
  %793 = vmatpush1.msra.mxu0 0.0
  %794 = vmatprep.subr.mxu0 0.0
  %795 = vmatpush1.msra.mxu0 0.0
  %796 = vmatprep.subr.mxu0 0.0
  %797 = vmatpush1.msra.mxu0 0.0
  %798 = vmatprep.mubr.f32.mxu0 0.0
  %799 = vmatmul.mubr.f32.gmra.mrb[0].mxu0 %v348
  %v800 = vpop.f32.mrb[0].mxu0
  %v801 = vadd.f32 %v727, %v800
  %v802 = vpop.f32.mrb[0].mxu0
  %803 = vmatprep.mubr.f32.mxu0 0.0
  %804 = vmatmul.mubr.f32.gmra.mrb[0].mxu0 %v351
  %v805 = vpop.f32.mrb[0].mxu0
  %v806 = vadd.f32 %v729, %v805
  %v807 = vpop.f32.mrb[0].mxu0
  %808 = vdwg.mxu0
  %v809 = vld [vmem:[%s7 + $0x3] sm:$0x1]
  %v810 = vlaneseq
  %v811 = vshrl.u32 %v810, 7
  %v812 = vsub.s32 0, %v811
  %v813 = vrot.slane %v809, %v812
  %v814 = vadd.f32 %v801, %v813
  %v815 = vadd.f32 %v806, %v813
  %v816 = vmax.f32 %v722, 0.0
  %v817 = vmax.f32 %v723, 0.0
  %v818 = vmax.f32 %v724, 0.0
  %v819 = vmax.f32 %v814, 0.0
  %v820 = vmax.f32 %v815, 0.0
  %s821 = scalar_lea.vmem %s6, 128
  %v822 = vld [vmem:[%s821] sm:$0xff]
  %v823 = vld [vmem:[%s821 + $0x8] sm:$0xff]
  %v824 = vld [vmem:[%s821 + $0x10] sm:$0xff]
  %v825 = vld [vmem:[%s821 + $0x18] sm:$0xff]
  %v827 = vsel %vm49, %v819, 0
  %v830 = vsel %vm49, %v820, 0
  %832 = vmatprep.subr.mxu0 0.0
  %833 = vmatpush1.msra.mxu0 %v822
  %834 = vmatprep.subr.mxu0 0.0
  %835 = vmatpush1.msra.mxu0 %v823
  %836 = vmatprep.subr.mxu0 0.0
  %837 = vmatpush1.msra.mxu0 %v824
  %838 = vmatprep.subr.mxu0 0.0
  %839 = vmatpush1.msra.mxu0 %v825
  %840 = vmatprep.subr.mxu0 0.0
  %841 = vmatpush1.msra.mxu0 0.0
  %842 = vmatprep.subr.mxu0 0.0
  %843 = vmatpush1.msra.mxu0 0.0
  %844 = vmatprep.subr.mxu0 0.0
  %845 = vmatpush1.msra.mxu0 0.0
  %846 = vmatprep.subr.mxu0 0.0
  %847 = vmatpush1.msra.mxu0 0.0
  %848 = vmatprep.subr.mxu0 0.0
  %849 = vmatpush1.msra.mxu0 0.0
  %850 = vmatprep.subr.mxu0 0.0
  %851 = vmatpush1.msra.mxu0 0.0
  %852 = vmatprep.subr.mxu0 0.0
  %853 = vmatpush1.msra.mxu0 0.0
  %854 = vmatprep.subr.mxu0 0.0
  %855 = vmatpush1.msra.mxu0 0.0
  %856 = vmatprep.subr.mxu0 0.0
  %857 = vmatpush1.msra.mxu0 0.0
  %858 = vmatprep.subr.mxu0 0.0
  %859 = vmatpush1.msra.mxu0 0.0
  %860 = vmatprep.subr.mxu0 0.0
  %861 = vmatpush1.msra.mxu0 0.0
  %862 = vmatprep.subr.mxu0 0.0
  %863 = vmatpush1.msra.mxu0 0.0
  %864 = vmatprep.subr.mxu0 0.0
  %865 = vmatpush1.msra.mxu0 0.0
  %866 = vmatprep.subr.mxu0 0.0
  %867 = vmatpush1.msra.mxu0 0.0
  %868 = vmatprep.subr.mxu0 0.0
  %869 = vmatpush1.msra.mxu0 0.0
  %870 = vmatprep.subr.mxu0 0.0
  %871 = vmatpush1.msra.mxu0 0.0
  %872 = vmatprep.subr.mxu0 0.0
  %873 = vmatpush1.msra.mxu0 0.0
  %874 = vmatprep.subr.mxu0 0.0
  %875 = vmatpush1.msra.mxu0 0.0
  %876 = vmatprep.subr.mxu0 0.0
  %877 = vmatpush1.msra.mxu0 0.0
  %878 = vmatprep.subr.mxu0 0.0
  %879 = vmatpush1.msra.mxu0 0.0
  %880 = vmatprep.subr.mxu0 0.0
  %881 = vmatpush1.msra.mxu0 0.0
  %882 = vmatprep.subr.mxu0 0.0
  %883 = vmatpush1.msra.mxu0 0.0
  %884 = vmatprep.subr.mxu0 0.0
  %885 = vmatpush1.msra.mxu0 0.0
  %886 = vmatprep.subr.mxu0 0.0
  %887 = vmatpush1.msra.mxu0 0.0
  %888 = vmatprep.subr.mxu0 0.0
  %889 = vmatpush1.msra.mxu0 0.0
  %890 = vmatprep.subr.mxu0 0.0
  %891 = vmatpush1.msra.mxu0 0.0
  %892 = vmatprep.subr.mxu0 0.0
  %893 = vmatpush1.msra.mxu0 0.0
  %894 = vmatprep.subr.mxu0 0.0
  %895 = vmatpush1.msra.mxu0 0.0
  %896 = vmatprep.mubr.f32.mxu0 0.0
  %897 = vmatmul.mubr.f32.gmra.mrb[0].mxu0 %v827
  %v898 = vpop.f32.mrb[0].mxu0
  %v899 = vadd.f32 0.0, %v898
  %v900 = vpop.f32.mrb[0].mxu0
  %901 = vmatprep.mubr.f32.mxu0 0.0
  %902 = vmatmul.mubr.f32.gmra.mrb[0].mxu0 %v830
  %v903 = vpop.f32.mrb[0].mxu0
  %v904 = vadd.f32 0.0, %v903
  %v905 = vpop.f32.mrb[0].mxu0
  %906 = vdwg.mxu0
  %s907 = scalar_lea.vmem %s6, 160
  %v908 = vld [vmem:[%s907] sm:$0xff]
  %v909 = vld [vmem:[%s907 + $0x8] sm:$0xff]
  %v910 = vld [vmem:[%s907 + $0x10] sm:$0xff]
  %v911 = vld [vmem:[%s907 + $0x18] sm:$0xff]
  %v913 = vsel %vm49, %v816, 0
  %v916 = vsel %vm49, %v817, 0
  %v919 = vsel %vm49, %v818, 0
  %921 = vmatprep.subr.mxu0 0.0
  %922 = vmatpush1.msra.mxu0 %v908
  %923 = vmatprep.subr.mxu0 0.0
  %924 = vmatpush1.msra.mxu0 %v909
  %925 = vmatprep.subr.mxu0 0.0
  %926 = vmatpush1.msra.mxu0 %v910
  %927 = vmatprep.subr.mxu0 0.0
  %928 = vmatpush1.msra.mxu0 %v911
  %929 = vmatprep.subr.mxu0 0.0
  %930 = vmatpush1.msra.mxu0 0.0
  %931 = vmatprep.subr.mxu0 0.0
  %932 = vmatpush1.msra.mxu0 0.0
  %933 = vmatprep.subr.mxu0 0.0
  %934 = vmatpush1.msra.mxu0 0.0
  %935 = vmatprep.subr.mxu0 0.0
  %936 = vmatpush1.msra.mxu0 0.0
  %937 = vmatprep.subr.mxu0 0.0
  %938 = vmatpush1.msra.mxu0 0.0
  %939 = vmatprep.subr.mxu0 0.0
  %940 = vmatpush1.msra.mxu0 0.0
  %941 = vmatprep.subr.mxu0 0.0
  %942 = vmatpush1.msra.mxu0 0.0
  %943 = vmatprep.subr.mxu0 0.0
  %944 = vmatpush1.msra.mxu0 0.0
  %945 = vmatprep.subr.mxu0 0.0
  %946 = vmatpush1.msra.mxu0 0.0
  %947 = vmatprep.subr.mxu0 0.0
  %948 = vmatpush1.msra.mxu0 0.0
  %949 = vmatprep.subr.mxu0 0.0
  %950 = vmatpush1.msra.mxu0 0.0
  %951 = vmatprep.subr.mxu0 0.0
  %952 = vmatpush1.msra.mxu0 0.0
  %953 = vmatprep.subr.mxu0 0.0
  %954 = vmatpush1.msra.mxu0 0.0
  %955 = vmatprep.subr.mxu0 0.0
  %956 = vmatpush1.msra.mxu0 0.0
  %957 = vmatprep.subr.mxu0 0.0
  %958 = vmatpush1.msra.mxu0 0.0
  %959 = vmatprep.subr.mxu0 0.0
  %960 = vmatpush1.msra.mxu0 0.0
  %961 = vmatprep.subr.mxu0 0.0
  %962 = vmatpush1.msra.mxu0 0.0
  %963 = vmatprep.subr.mxu0 0.0
  %964 = vmatpush1.msra.mxu0 0.0
  %965 = vmatprep.subr.mxu0 0.0
  %966 = vmatpush1.msra.mxu0 0.0
  %967 = vmatprep.subr.mxu0 0.0
  %968 = vmatpush1.msra.mxu0 0.0
  %969 = vmatprep.subr.mxu0 0.0
  %970 = vmatpush1.msra.mxu0 0.0
  %971 = vmatprep.subr.mxu0 0.0
  %972 = vmatpush1.msra.mxu0 0.0
  %973 = vmatprep.subr.mxu0 0.0
  %974 = vmatpush1.msra.mxu0 0.0
  %975 = vmatprep.subr.mxu0 0.0
  %976 = vmatpush1.msra.mxu0 0.0
  %977 = vmatprep.subr.mxu0 0.0
  %978 = vmatpush1.msra.mxu0 0.0
  %979 = vmatprep.subr.mxu0 0.0
  %980 = vmatpush1.msra.mxu0 0.0
  %981 = vmatprep.subr.mxu0 0.0
  %982 = vmatpush1.msra.mxu0 0.0
  %983 = vmatprep.subr.mxu0 0.0
  %984 = vmatpush1.msra.mxu0 0.0
  %985 = vmatprep.mubr.f32.mxu0 0.0
  %986 = vmatmul.mubr.f32.gmra.mrb[0].mxu0 %v913
  %v987 = vpop.f32.mrb[0].mxu0
  %v988 = vadd.f32 0.0, %v987
  %v989 = vpop.f32.mrb[0].mxu0
  %990 = vmatprep.mubr.f32.mxu0 0.0
  %991 = vmatmul.mubr.f32.gmra.mrb[0].mxu0 %v916
  %v992 = vpop.f32.mrb[0].mxu0
  %v993 = vadd.f32 0.0, %v992
  %v994 = vpop.f32.mrb[0].mxu0
  %995 = vmatprep.mubr.f32.mxu0 0.0
  %996 = vmatmul.mubr.f32.gmra.mrb[0].mxu0 %v919
  %v997 = vpop.f32.mrb[0].mxu0
  %v998 = vadd.f32 0.0, %v997
  %v999 = vpop.f32.mrb[0].mxu0
  %1000 = vdwg.mxu0
  %1004 = vrot.lane.b32.xlu0 %v988, 96
  %v1005 = vpop.permute.xlu0 %1004
  %1006 = vrot.lane.b32.xlu0 %v993, 96
  %v1007 = vpop.permute.xlu0 %1006
  %1008 = vrot.lane.b32.xlu0 %v998, 96
  %v1009 = vpop.permute.xlu0 %1008
  %v1014 = vsel %vm247, %v904, 0
  %1016 = vmatprep.subr.mxu0 0.0
  %1017 = vmatpush1.msra.mxu0 %v899
  %1018 = vmatprep.subr.mxu0 0.0
  %1019 = vmatpush1.msra.mxu0 %v1014
  %1020 = vmatprep.subr.mxu0 0.0
  %1021 = vmatpush1.msra.mxu0 0.0
  %1022 = vmatprep.subr.mxu0 0.0
  %1023 = vmatpush1.msra.mxu0 0.0
  %1024 = vmatprep.subr.mxu0 0.0
  %1025 = vmatpush1.msra.mxu0 0.0
  %1026 = vmatprep.subr.mxu0 0.0
  %1027 = vmatpush1.msra.mxu0 0.0
  %1028 = vmatprep.subr.mxu0 0.0
  %1029 = vmatpush1.msra.mxu0 0.0
  %1030 = vmatprep.subr.mxu0 0.0
  %1031 = vmatpush1.msra.mxu0 0.0
  %1032 = vmatprep.subr.mxu0 0.0
  %1033 = vmatpush1.msra.mxu0 0.0
  %1034 = vmatprep.subr.mxu0 0.0
  %1035 = vmatpush1.msra.mxu0 0.0
  %1036 = vmatprep.subr.mxu0 0.0
  %1037 = vmatpush1.msra.mxu0 0.0
  %1038 = vmatprep.subr.mxu0 0.0
  %1039 = vmatpush1.msra.mxu0 0.0
  %1040 = vmatprep.subr.mxu0 0.0
  %1041 = vmatpush1.msra.mxu0 0.0
  %1042 = vmatprep.subr.mxu0 0.0
  %1043 = vmatpush1.msra.mxu0 0.0
  %1044 = vmatprep.subr.mxu0 0.0
  %1045 = vmatpush1.msra.mxu0 0.0
  %1046 = vmatprep.subr.mxu0 0.0
  %1047 = vmatpush1.msra.mxu0 0.0
  %1048 = vmatprep.subr.mxu0 0.0
  %1049 = vmatpush1.msra.mxu0 0.0
  %1050 = vmatprep.subr.mxu0 0.0
  %1051 = vmatpush1.msra.mxu0 0.0
  %1052 = vmatprep.subr.mxu0 0.0
  %1053 = vmatpush1.msra.mxu0 0.0
  %1054 = vmatprep.subr.mxu0 0.0
  %1055 = vmatpush1.msra.mxu0 0.0
  %1056 = vmatprep.subr.mxu0 0.0
  %1057 = vmatpush1.msra.mxu0 0.0
  %1058 = vmatprep.subr.mxu0 0.0
  %1059 = vmatpush1.msra.mxu0 0.0
  %1060 = vmatprep.subr.mxu0 0.0
  %1061 = vmatpush1.msra.mxu0 0.0
  %1062 = vmatprep.subr.mxu0 0.0
  %1063 = vmatpush1.msra.mxu0 0.0
  %1064 = vmatprep.subr.mxu0 0.0
  %1065 = vmatpush1.msra.mxu0 0.0
  %1066 = vmatprep.subr.mxu0 0.0
  %1067 = vmatpush1.msra.mxu0 0.0
  %1068 = vmatprep.subr.mxu0 0.0
  %1069 = vmatpush1.msra.mxu0 0.0
  %1070 = vmatprep.subr.mxu0 0.0
  %1071 = vmatpush1.msra.mxu0 0.0
  %1072 = vmatprep.subr.mxu0 0.0
  %1073 = vmatpush1.msra.mxu0 0.0
  %1074 = vmatprep.subr.mxu0 0.0
  %1075 = vmatpush1.msra.mxu0 0.0
  %1076 = vmatprep.subr.mxu0 0.0
  %1077 = vmatpush1.msra.mxu0 0.0
  %1078 = vmatprep.subr.mxu0 0.0
  %1079 = vmatpush1.msra.mxu0 0.0
  %1080 = vmatprep.mubr.f32.mxu0 0.0
  %1081 = vmatmul.mubr.f32.gmra.mrb[0].mxu0 %v239
  %v1082 = vpop.f32.mrb[0].mxu0
  %v1083 = vadd.f32 %v1005, %v1082
  %v1084 = vpop.f32.mrb[0].mxu0
  %1085 = vmatprep.mubr.f32.mxu0 0.0
  %1086 = vmatmul.mubr.f32.gmra.mrb[0].mxu0 %v242
  %v1087 = vpop.f32.mrb[0].mxu0
  %v1088 = vadd.f32 %v1007, %v1087
  %v1089 = vpop.f32.mrb[0].mxu0
  %1090 = vmatprep.mubr.f32.mxu0 0.0
  %1091 = vmatmul.mubr.f32.gmra.mrb[0].mxu0 %v245
  %v1092 = vpop.f32.mrb[0].mxu0
  %v1093 = vadd.f32 %v1009, %v1092
  %v1094 = vpop.f32.mrb[0].mxu0
  %1095 = vdwg.mxu0
  %v1096 = vld [vmem:[%s7 + $0x4] sm:$0x1]
  %v1097 = vlaneseq
  %v1098 = vshrl.u32 %v1097, 7
  %v1099 = vsub.s32 0, %v1098
  %v1100 = vrot.slane %v1096, %v1099
  %v1101 = vadd.f32 %v1083, %v1100
  %v1102 = vadd.f32 %v1088, %v1100
  %v1103 = vadd.f32 %v1093, %v1100
  %1105 = vrot.lane.b32.xlu0 %v899, 96
  %v1106 = vpop.permute.xlu0 %1105
  %1107 = vrot.lane.b32.xlu0 %v904, 96
  %v1108 = vpop.permute.xlu0 %1107
  %v1111 = vsel %vm247, %v998, 0
  %1113 = vmatprep.subr.mxu0 0.0
  %1114 = vmatpush1.msra.mxu0 %v988
  %1115 = vmatprep.subr.mxu0 0.0
  %1116 = vmatpush1.msra.mxu0 %v993
  %1117 = vmatprep.subr.mxu0 0.0
  %1118 = vmatpush1.msra.mxu0 %v1111
  %1119 = vmatprep.subr.mxu0 0.0
  %1120 = vmatpush1.msra.mxu0 0.0
  %1121 = vmatprep.subr.mxu0 0.0
  %1122 = vmatpush1.msra.mxu0 0.0
  %1123 = vmatprep.subr.mxu0 0.0
  %1124 = vmatpush1.msra.mxu0 0.0
  %1125 = vmatprep.subr.mxu0 0.0
  %1126 = vmatpush1.msra.mxu0 0.0
  %1127 = vmatprep.subr.mxu0 0.0
  %1128 = vmatpush1.msra.mxu0 0.0
  %1129 = vmatprep.subr.mxu0 0.0
  %1130 = vmatpush1.msra.mxu0 0.0
  %1131 = vmatprep.subr.mxu0 0.0
  %1132 = vmatpush1.msra.mxu0 0.0
  %1133 = vmatprep.subr.mxu0 0.0
  %1134 = vmatpush1.msra.mxu0 0.0
  %1135 = vmatprep.subr.mxu0 0.0
  %1136 = vmatpush1.msra.mxu0 0.0
  %1137 = vmatprep.subr.mxu0 0.0
  %1138 = vmatpush1.msra.mxu0 0.0
  %1139 = vmatprep.subr.mxu0 0.0
  %1140 = vmatpush1.msra.mxu0 0.0
  %1141 = vmatprep.subr.mxu0 0.0
  %1142 = vmatpush1.msra.mxu0 0.0
  %1143 = vmatprep.subr.mxu0 0.0
  %1144 = vmatpush1.msra.mxu0 0.0
  %1145 = vmatprep.subr.mxu0 0.0
  %1146 = vmatpush1.msra.mxu0 0.0
  %1147 = vmatprep.subr.mxu0 0.0
  %1148 = vmatpush1.msra.mxu0 0.0
  %1149 = vmatprep.subr.mxu0 0.0
  %1150 = vmatpush1.msra.mxu0 0.0
  %1151 = vmatprep.subr.mxu0 0.0
  %1152 = vmatpush1.msra.mxu0 0.0
  %1153 = vmatprep.subr.mxu0 0.0
  %1154 = vmatpush1.msra.mxu0 0.0
  %1155 = vmatprep.subr.mxu0 0.0
  %1156 = vmatpush1.msra.mxu0 0.0
  %1157 = vmatprep.subr.mxu0 0.0
  %1158 = vmatpush1.msra.mxu0 0.0
  %1159 = vmatprep.subr.mxu0 0.0
  %1160 = vmatpush1.msra.mxu0 0.0
  %1161 = vmatprep.subr.mxu0 0.0
  %1162 = vmatpush1.msra.mxu0 0.0
  %1163 = vmatprep.subr.mxu0 0.0
  %1164 = vmatpush1.msra.mxu0 0.0
  %1165 = vmatprep.subr.mxu0 0.0
  %1166 = vmatpush1.msra.mxu0 0.0
  %1167 = vmatprep.subr.mxu0 0.0
  %1168 = vmatpush1.msra.mxu0 0.0
  %1169 = vmatprep.subr.mxu0 0.0
  %1170 = vmatpush1.msra.mxu0 0.0
  %1171 = vmatprep.subr.mxu0 0.0
  %1172 = vmatpush1.msra.mxu0 0.0
  %1173 = vmatprep.subr.mxu0 0.0
  %1174 = vmatpush1.msra.mxu0 0.0
  %1175 = vmatprep.subr.mxu0 0.0
  %1176 = vmatpush1.msra.mxu0 0.0
  %1177 = vmatprep.mubr.f32.mxu0 0.0
  %1178 = vmatmul.mubr.f32.gmra.mrb[0].mxu0 %v348
  %v1179 = vpop.f32.mrb[0].mxu0
  %v1180 = vadd.f32 %v1106, %v1179
  %v1181 = vpop.f32.mrb[0].mxu0
  %1182 = vmatprep.mubr.f32.mxu0 0.0
  %1183 = vmatmul.mubr.f32.gmra.mrb[0].mxu0 %v351
  %v1184 = vpop.f32.mrb[0].mxu0
  %v1185 = vadd.f32 %v1108, %v1184
  %v1186 = vpop.f32.mrb[0].mxu0
  %1187 = vdwg.mxu0
  %v1188 = vld [vmem:[%s7 + $0x5] sm:$0x1]
  %v1189 = vlaneseq
  %v1190 = vshrl.u32 %v1189, 7
  %v1191 = vsub.s32 0, %v1190
  %v1192 = vrot.slane %v1188, %v1191
  %v1193 = vadd.f32 %v1180, %v1192
  %v1194 = vadd.f32 %v1185, %v1192
  %v1195 = vmax.f32 %v1101, 0.0
  %v1196 = vmax.f32 %v1102, 0.0
  %v1197 = vmax.f32 %v1103, 0.0
  %v1198 = vmax.f32 %v1193, 0.0
  %v1199 = vmax.f32 %v1194, 0.0
  %s1200 = scalar_lea.vmem %s6, 192
  %v1201 = vld [vmem:[%s1200] sm:$0xff]
  %v1202 = vld [vmem:[%s1200 + $0x8] sm:$0xff]
  %v1203 = vld [vmem:[%s1200 + $0x10] sm:$0xff]
  %v1204 = vld [vmem:[%s1200 + $0x18] sm:$0xff]
  %v1206 = vsel %vm49, %v1198, 0
  %v1209 = vsel %vm49, %v1199, 0
  %1211 = vmatprep.subr.mxu0 0.0
  %1212 = vmatpush1.msra.mxu0 %v1201
  %1213 = vmatprep.subr.mxu0 0.0
  %1214 = vmatpush1.msra.mxu0 %v1202
  %1215 = vmatprep.subr.mxu0 0.0
  %1216 = vmatpush1.msra.mxu0 %v1203
  %1217 = vmatprep.subr.mxu0 0.0
  %1218 = vmatpush1.msra.mxu0 %v1204
  %1219 = vmatprep.subr.mxu0 0.0
  %1220 = vmatpush1.msra.mxu0 0.0
  %1221 = vmatprep.subr.mxu0 0.0
  %1222 = vmatpush1.msra.mxu0 0.0
  %1223 = vmatprep.subr.mxu0 0.0
  %1224 = vmatpush1.msra.mxu0 0.0
  %1225 = vmatprep.subr.mxu0 0.0
  %1226 = vmatpush1.msra.mxu0 0.0
  %1227 = vmatprep.subr.mxu0 0.0
  %1228 = vmatpush1.msra.mxu0 0.0
  %1229 = vmatprep.subr.mxu0 0.0
  %1230 = vmatpush1.msra.mxu0 0.0
  %1231 = vmatprep.subr.mxu0 0.0
  %1232 = vmatpush1.msra.mxu0 0.0
  %1233 = vmatprep.subr.mxu0 0.0
  %1234 = vmatpush1.msra.mxu0 0.0
  %1235 = vmatprep.subr.mxu0 0.0
  %1236 = vmatpush1.msra.mxu0 0.0
  %1237 = vmatprep.subr.mxu0 0.0
  %1238 = vmatpush1.msra.mxu0 0.0
  %1239 = vmatprep.subr.mxu0 0.0
  %1240 = vmatpush1.msra.mxu0 0.0
  %1241 = vmatprep.subr.mxu0 0.0
  %1242 = vmatpush1.msra.mxu0 0.0
  %1243 = vmatprep.subr.mxu0 0.0
  %1244 = vmatpush1.msra.mxu0 0.0
  %1245 = vmatprep.subr.mxu0 0.0
  %1246 = vmatpush1.msra.mxu0 0.0
  %1247 = vmatprep.subr.mxu0 0.0
  %1248 = vmatpush1.msra.mxu0 0.0
  %1249 = vmatprep.subr.mxu0 0.0
  %1250 = vmatpush1.msra.mxu0 0.0
  %1251 = vmatprep.subr.mxu0 0.0
  %1252 = vmatpush1.msra.mxu0 0.0
  %1253 = vmatprep.subr.mxu0 0.0
  %1254 = vmatpush1.msra.mxu0 0.0
  %1255 = vmatprep.subr.mxu0 0.0
  %1256 = vmatpush1.msra.mxu0 0.0
  %1257 = vmatprep.subr.mxu0 0.0
  %1258 = vmatpush1.msra.mxu0 0.0
  %1259 = vmatprep.subr.mxu0 0.0
  %1260 = vmatpush1.msra.mxu0 0.0
  %1261 = vmatprep.subr.mxu0 0.0
  %1262 = vmatpush1.msra.mxu0 0.0
  %1263 = vmatprep.subr.mxu0 0.0
  %1264 = vmatpush1.msra.mxu0 0.0
  %1265 = vmatprep.subr.mxu0 0.0
  %1266 = vmatpush1.msra.mxu0 0.0
  %1267 = vmatprep.subr.mxu0 0.0
  %1268 = vmatpush1.msra.mxu0 0.0
  %1269 = vmatprep.subr.mxu0 0.0
  %1270 = vmatpush1.msra.mxu0 0.0
  %1271 = vmatprep.subr.mxu0 0.0
  %1272 = vmatpush1.msra.mxu0 0.0
  %1273 = vmatprep.subr.mxu0 0.0
  %1274 = vmatpush1.msra.mxu0 0.0
  %1275 = vmatprep.mubr.f32.mxu0 0.0
  %1276 = vmatmul.mubr.f32.gmra.mrb[0].mxu0 %v1206
  %v1277 = vpop.f32.mrb[0].mxu0
  %v1278 = vadd.f32 0.0, %v1277
  %v1279 = vpop.f32.mrb[0].mxu0
  %1280 = vmatprep.mubr.f32.mxu0 0.0
  %1281 = vmatmul.mubr.f32.gmra.mrb[0].mxu0 %v1209
  %v1282 = vpop.f32.mrb[0].mxu0
  %v1283 = vadd.f32 0.0, %v1282
  %v1284 = vpop.f32.mrb[0].mxu0
  %1285 = vdwg.mxu0
  %s1286 = scalar_lea.vmem %s6, 224
  %v1287 = vld [vmem:[%s1286] sm:$0xff]
  %v1288 = vld [vmem:[%s1286 + $0x8] sm:$0xff]
  %v1289 = vld [vmem:[%s1286 + $0x10] sm:$0xff]
  %v1290 = vld [vmem:[%s1286 + $0x18] sm:$0xff]
  %v1292 = vsel %vm49, %v1195, 0
  %v1295 = vsel %vm49, %v1196, 0
  %v1298 = vsel %vm49, %v1197, 0
  %1300 = vmatprep.subr.mxu0 0.0
  %1301 = vmatpush1.msra.mxu0 %v1287
  %1302 = vmatprep.subr.mxu0 0.0
  %1303 = vmatpush1.msra.mxu0 %v1288
  %1304 = vmatprep.subr.mxu0 0.0
  %1305 = vmatpush1.msra.mxu0 %v1289
  %1306 = vmatprep.subr.mxu0 0.0
  %1307 = vmatpush1.msra.mxu0 %v1290
  %1308 = vmatprep.subr.mxu0 0.0
  %1309 = vmatpush1.msra.mxu0 0.0
  %1310 = vmatprep.subr.mxu0 0.0
  %1311 = vmatpush1.msra.mxu0 0.0
  %1312 = vmatprep.subr.mxu0 0.0
  %1313 = vmatpush1.msra.mxu0 0.0
  %1314 = vmatprep.subr.mxu0 0.0
  %1315 = vmatpush1.msra.mxu0 0.0
  %1316 = vmatprep.subr.mxu0 0.0
  %1317 = vmatpush1.msra.mxu0 0.0
  %1318 = vmatprep.subr.mxu0 0.0
  %1319 = vmatpush1.msra.mxu0 0.0
  %1320 = vmatprep.subr.mxu0 0.0
  %1321 = vmatpush1.msra.mxu0 0.0
  %1322 = vmatprep.subr.mxu0 0.0
  %1323 = vmatpush1.msra.mxu0 0.0
  %1324 = vmatprep.subr.mxu0 0.0
  %1325 = vmatpush1.msra.mxu0 0.0
  %1326 = vmatprep.subr.mxu0 0.0
  %1327 = vmatpush1.msra.mxu0 0.0
  %1328 = vmatprep.subr.mxu0 0.0
  %1329 = vmatpush1.msra.mxu0 0.0
  %1330 = vmatprep.subr.mxu0 0.0
  %1331 = vmatpush1.msra.mxu0 0.0
  %1332 = vmatprep.subr.mxu0 0.0
  %1333 = vmatpush1.msra.mxu0 0.0
  %1334 = vmatprep.subr.mxu0 0.0
  %1335 = vmatpush1.msra.mxu0 0.0
  %1336 = vmatprep.subr.mxu0 0.0
  %1337 = vmatpush1.msra.mxu0 0.0
  %1338 = vmatprep.subr.mxu0 0.0
  %1339 = vmatpush1.msra.mxu0 0.0
  %1340 = vmatprep.subr.mxu0 0.0
  %1341 = vmatpush1.msra.mxu0 0.0
  %1342 = vmatprep.subr.mxu0 0.0
  %1343 = vmatpush1.msra.mxu0 0.0
  %1344 = vmatprep.subr.mxu0 0.0
  %1345 = vmatpush1.msra.mxu0 0.0
  %1346 = vmatprep.subr.mxu0 0.0
  %1347 = vmatpush1.msra.mxu0 0.0
  %1348 = vmatprep.subr.mxu0 0.0
  %1349 = vmatpush1.msra.mxu0 0.0
  %1350 = vmatprep.subr.mxu0 0.0
  %1351 = vmatpush1.msra.mxu0 0.0
  %1352 = vmatprep.subr.mxu0 0.0
  %1353 = vmatpush1.msra.mxu0 0.0
  %1354 = vmatprep.subr.mxu0 0.0
  %1355 = vmatpush1.msra.mxu0 0.0
  %1356 = vmatprep.subr.mxu0 0.0
  %1357 = vmatpush1.msra.mxu0 0.0
  %1358 = vmatprep.subr.mxu0 0.0
  %1359 = vmatpush1.msra.mxu0 0.0
  %1360 = vmatprep.subr.mxu0 0.0
  %1361 = vmatpush1.msra.mxu0 0.0
  %1362 = vmatprep.subr.mxu0 0.0
  %1363 = vmatpush1.msra.mxu0 0.0
  %1364 = vmatprep.mubr.f32.mxu0 0.0
  %1365 = vmatmul.mubr.f32.gmra.mrb[0].mxu0 %v1292
  %v1366 = vpop.f32.mrb[0].mxu0
  %v1367 = vadd.f32 0.0, %v1366
  %v1368 = vpop.f32.mrb[0].mxu0
  %1369 = vmatprep.mubr.f32.mxu0 0.0
  %1370 = vmatmul.mubr.f32.gmra.mrb[0].mxu0 %v1295
  %v1371 = vpop.f32.mrb[0].mxu0
  %v1372 = vadd.f32 0.0, %v1371
  %v1373 = vpop.f32.mrb[0].mxu0
  %1374 = vmatprep.mubr.f32.mxu0 0.0
  %1375 = vmatmul.mubr.f32.gmra.mrb[0].mxu0 %v1298
  %v1376 = vpop.f32.mrb[0].mxu0
  %v1377 = vadd.f32 0.0, %v1376
  %v1378 = vpop.f32.mrb[0].mxu0
  %1379 = vdwg.mxu0
  %1383 = vrot.lane.b32.xlu0 %v1367, 96
  %v1384 = vpop.permute.xlu0 %1383
  %1385 = vrot.lane.b32.xlu0 %v1372, 96
  %v1386 = vpop.permute.xlu0 %1385
  %1387 = vrot.lane.b32.xlu0 %v1377, 96
  %v1388 = vpop.permute.xlu0 %1387
  %v1393 = vsel %vm247, %v1283, 0
  %1395 = vmatprep.subr.mxu0 0.0
  %1396 = vmatpush1.msra.mxu0 %v1278
  %1397 = vmatprep.subr.mxu0 0.0
  %1398 = vmatpush1.msra.mxu0 %v1393
  %1399 = vmatprep.subr.mxu0 0.0
  %1400 = vmatpush1.msra.mxu0 0.0
  %1401 = vmatprep.subr.mxu0 0.0
  %1402 = vmatpush1.msra.mxu0 0.0
  %1403 = vmatprep.subr.mxu0 0.0
  %1404 = vmatpush1.msra.mxu0 0.0
  %1405 = vmatprep.subr.mxu0 0.0
  %1406 = vmatpush1.msra.mxu0 0.0
  %1407 = vmatprep.subr.mxu0 0.0
  %1408 = vmatpush1.msra.mxu0 0.0
  %1409 = vmatprep.subr.mxu0 0.0
  %1410 = vmatpush1.msra.mxu0 0.0
  %1411 = vmatprep.subr.mxu0 0.0
  %1412 = vmatpush1.msra.mxu0 0.0
  %1413 = vmatprep.subr.mxu0 0.0
  %1414 = vmatpush1.msra.mxu0 0.0
  %1415 = vmatprep.subr.mxu0 0.0
  %1416 = vmatpush1.msra.mxu0 0.0
  %1417 = vmatprep.subr.mxu0 0.0
  %1418 = vmatpush1.msra.mxu0 0.0
  %1419 = vmatprep.subr.mxu0 0.0
  %1420 = vmatpush1.msra.mxu0 0.0
  %1421 = vmatprep.subr.mxu0 0.0
  %1422 = vmatpush1.msra.mxu0 0.0
  %1423 = vmatprep.subr.mxu0 0.0
  %1424 = vmatpush1.msra.mxu0 0.0
  %1425 = vmatprep.subr.mxu0 0.0
  %1426 = vmatpush1.msra.mxu0 0.0
  %1427 = vmatprep.subr.mxu0 0.0
  %1428 = vmatpush1.msra.mxu0 0.0
  %1429 = vmatprep.subr.mxu0 0.0
  %1430 = vmatpush1.msra.mxu0 0.0
  %1431 = vmatprep.subr.mxu0 0.0
  %1432 = vmatpush1.msra.mxu0 0.0
  %1433 = vmatprep.subr.mxu0 0.0
  %1434 = vmatpush1.msra.mxu0 0.0
  %1435 = vmatprep.subr.mxu0 0.0
  %1436 = vmatpush1.msra.mxu0 0.0
  %1437 = vmatprep.subr.mxu0 0.0
  %1438 = vmatpush1.msra.mxu0 0.0
  %1439 = vmatprep.subr.mxu0 0.0
  %1440 = vmatpush1.msra.mxu0 0.0
  %1441 = vmatprep.subr.mxu0 0.0
  %1442 = vmatpush1.msra.mxu0 0.0
  %1443 = vmatprep.subr.mxu0 0.0
  %1444 = vmatpush1.msra.mxu0 0.0
  %1445 = vmatprep.subr.mxu0 0.0
  %1446 = vmatpush1.msra.mxu0 0.0
  %1447 = vmatprep.subr.mxu0 0.0
  %1448 = vmatpush1.msra.mxu0 0.0
  %1449 = vmatprep.subr.mxu0 0.0
  %1450 = vmatpush1.msra.mxu0 0.0
  %1451 = vmatprep.subr.mxu0 0.0
  %1452 = vmatpush1.msra.mxu0 0.0
  %1453 = vmatprep.subr.mxu0 0.0
  %1454 = vmatpush1.msra.mxu0 0.0
  %1455 = vmatprep.subr.mxu0 0.0
  %1456 = vmatpush1.msra.mxu0 0.0
  %1457 = vmatprep.subr.mxu0 0.0
  %1458 = vmatpush1.msra.mxu0 0.0
  %1459 = vmatprep.mubr.f32.mxu0 0.0
  %1460 = vmatmul.mubr.f32.gmra.mrb[0].mxu0 %v239
  %v1461 = vpop.f32.mrb[0].mxu0
  %v1462 = vadd.f32 %v1384, %v1461
  %v1463 = vpop.f32.mrb[0].mxu0
  %1464 = vmatprep.mubr.f32.mxu0 0.0
  %1465 = vmatmul.mubr.f32.gmra.mrb[0].mxu0 %v242
  %v1466 = vpop.f32.mrb[0].mxu0
  %v1467 = vadd.f32 %v1386, %v1466
  %v1468 = vpop.f32.mrb[0].mxu0
  %1469 = vmatprep.mubr.f32.mxu0 0.0
  %1470 = vmatmul.mubr.f32.gmra.mrb[0].mxu0 %v245
  %v1471 = vpop.f32.mrb[0].mxu0
  %v1472 = vadd.f32 %v1388, %v1471
  %v1473 = vpop.f32.mrb[0].mxu0
  %1474 = vdwg.mxu0
  %v1475 = vld [vmem:[%s7 + $0x6] sm:$0x1]
  %v1476 = vlaneseq
  %v1477 = vshrl.u32 %v1476, 7
  %v1478 = vsub.s32 0, %v1477
  %v1479 = vrot.slane %v1475, %v1478
  %v1480 = vadd.f32 %v1462, %v1479
  %v1481 = vadd.f32 %v1467, %v1479
  %v1482 = vadd.f32 %v1472, %v1479
  %1484 = vrot.lane.b32.xlu0 %v1278, 96
  %v1485 = vpop.permute.xlu0 %1484
  %1486 = vrot.lane.b32.xlu0 %v1283, 96
  %v1487 = vpop.permute.xlu0 %1486
  %v1490 = vsel %vm247, %v1377, 0
  %1492 = vmatprep.subr.mxu0 0.0
  %1493 = vmatpush1.msra.mxu0 %v1367
  %1494 = vmatprep.subr.mxu0 0.0
  %1495 = vmatpush1.msra.mxu0 %v1372
  %1496 = vmatprep.subr.mxu0 0.0
  %1497 = vmatpush1.msra.mxu0 %v1490
  %1498 = vmatprep.subr.mxu0 0.0
  %1499 = vmatpush1.msra.mxu0 0.0
  %1500 = vmatprep.subr.mxu0 0.0
  %1501 = vmatpush1.msra.mxu0 0.0
  %1502 = vmatprep.subr.mxu0 0.0
  %1503 = vmatpush1.msra.mxu0 0.0
  %1504 = vmatprep.subr.mxu0 0.0
  %1505 = vmatpush1.msra.mxu0 0.0
  %1506 = vmatprep.subr.mxu0 0.0
  %1507 = vmatpush1.msra.mxu0 0.0
  %1508 = vmatprep.subr.mxu0 0.0
  %1509 = vmatpush1.msra.mxu0 0.0
  %1510 = vmatprep.subr.mxu0 0.0
  %1511 = vmatpush1.msra.mxu0 0.0
  %1512 = vmatprep.subr.mxu0 0.0
  %1513 = vmatpush1.msra.mxu0 0.0
  %1514 = vmatprep.subr.mxu0 0.0
  %1515 = vmatpush1.msra.mxu0 0.0
  %1516 = vmatprep.subr.mxu0 0.0
  %1517 = vmatpush1.msra.mxu0 0.0
  %1518 = vmatprep.subr.mxu0 0.0
  %1519 = vmatpush1.msra.mxu0 0.0
  %1520 = vmatprep.subr.mxu0 0.0
  %1521 = vmatpush1.msra.mxu0 0.0
  %1522 = vmatprep.subr.mxu0 0.0
  %1523 = vmatpush1.msra.mxu0 0.0
  %1524 = vmatprep.subr.mxu0 0.0
  %1525 = vmatpush1.msra.mxu0 0.0
  %1526 = vmatprep.subr.mxu0 0.0
  %1527 = vmatpush1.msra.mxu0 0.0
  %1528 = vmatprep.subr.mxu0 0.0
  %1529 = vmatpush1.msra.mxu0 0.0
  %1530 = vmatprep.subr.mxu0 0.0
  %1531 = vmatpush1.msra.mxu0 0.0
  %1532 = vmatprep.subr.mxu0 0.0
  %1533 = vmatpush1.msra.mxu0 0.0
  %1534 = vmatprep.subr.mxu0 0.0
  %1535 = vmatpush1.msra.mxu0 0.0
  %1536 = vmatprep.subr.mxu0 0.0
  %1537 = vmatpush1.msra.mxu0 0.0
  %1538 = vmatprep.subr.mxu0 0.0
  %1539 = vmatpush1.msra.mxu0 0.0
  %1540 = vmatprep.subr.mxu0 0.0
  %1541 = vmatpush1.msra.mxu0 0.0
  %1542 = vmatprep.subr.mxu0 0.0
  %1543 = vmatpush1.msra.mxu0 0.0
  %1544 = vmatprep.subr.mxu0 0.0
  %1545 = vmatpush1.msra.mxu0 0.0
  %1546 = vmatprep.subr.mxu0 0.0
  %1547 = vmatpush1.msra.mxu0 0.0
  %1548 = vmatprep.subr.mxu0 0.0
  %1549 = vmatpush1.msra.mxu0 0.0
  %1550 = vmatprep.subr.mxu0 0.0
  %1551 = vmatpush1.msra.mxu0 0.0
  %1552 = vmatprep.subr.mxu0 0.0
  %1553 = vmatpush1.msra.mxu0 0.0
  %1554 = vmatprep.subr.mxu0 0.0
  %1555 = vmatpush1.msra.mxu0 0.0
  %1556 = vmatprep.mubr.f32.mxu0 0.0
  %1557 = vmatmul.mubr.f32.gmra.mrb[0].mxu0 %v348
  %v1558 = vpop.f32.mrb[0].mxu0
  %v1559 = vadd.f32 %v1485, %v1558
  %v1560 = vpop.f32.mrb[0].mxu0
  %1561 = vmatprep.mubr.f32.mxu0 0.0
  %1562 = vmatmul.mubr.f32.gmra.mrb[0].mxu0 %v351
  %v1563 = vpop.f32.mrb[0].mxu0
  %v1564 = vadd.f32 %v1487, %v1563
  %v1565 = vpop.f32.mrb[0].mxu0
  %1566 = vdwg.mxu0
  %v1567 = vld [vmem:[%s7 + $0x7] sm:$0x1]
  %v1568 = vlaneseq
  %v1569 = vshrl.u32 %v1568, 7
  %v1570 = vsub.s32 0, %v1569
  %v1571 = vrot.slane %v1567, %v1570
  %v1572 = vadd.f32 %v1559, %v1571
  %v1573 = vadd.f32 %v1564, %v1571
  %v1574 = vmax.f32 %v1480, 0.0
  %v1575 = vmax.f32 %v1481, 0.0
  %v1576 = vmax.f32 %v1482, 0.0
  %v1577 = vmax.f32 %v1572, 0.0
  %v1578 = vmax.f32 %v1573, 0.0
  %s1579 = scalar_lea.vmem %s6, 256
  %v1580 = vld [vmem:[%s1579] sm:$0xff]
  %v1581 = vld [vmem:[%s1579 + $0x8] sm:$0xff]
  %v1582 = vld [vmem:[%s1579 + $0x10] sm:$0xff]
  %v1583 = vld [vmem:[%s1579 + $0x18] sm:$0xff]
  %v1585 = vsel %vm49, %v1577, 0
  %v1588 = vsel %vm49, %v1578, 0
  %1590 = vmatprep.subr.mxu0 0.0
  %1591 = vmatpush1.msra.mxu0 %v1580
  %1592 = vmatprep.subr.mxu0 0.0
  %1593 = vmatpush1.msra.mxu0 %v1581
  %1594 = vmatprep.subr.mxu0 0.0
  %1595 = vmatpush1.msra.mxu0 %v1582
  %1596 = vmatprep.subr.mxu0 0.0
  %1597 = vmatpush1.msra.mxu0 %v1583
  %1598 = vmatprep.subr.mxu0 0.0
  %1599 = vmatpush1.msra.mxu0 0.0
  %1600 = vmatprep.subr.mxu0 0.0
  %1601 = vmatpush1.msra.mxu0 0.0
  %1602 = vmatprep.subr.mxu0 0.0
  %1603 = vmatpush1.msra.mxu0 0.0
  %1604 = vmatprep.subr.mxu0 0.0
  %1605 = vmatpush1.msra.mxu0 0.0
  %1606 = vmatprep.subr.mxu0 0.0
  %1607 = vmatpush1.msra.mxu0 0.0
  %1608 = vmatprep.subr.mxu0 0.0
  %1609 = vmatpush1.msra.mxu0 0.0
  %1610 = vmatprep.subr.mxu0 0.0
  %1611 = vmatpush1.msra.mxu0 0.0
  %1612 = vmatprep.subr.mxu0 0.0
  %1613 = vmatpush1.msra.mxu0 0.0
  %1614 = vmatprep.subr.mxu0 0.0
  %1615 = vmatpush1.msra.mxu0 0.0
  %1616 = vmatprep.subr.mxu0 0.0
  %1617 = vmatpush1.msra.mxu0 0.0
  %1618 = vmatprep.subr.mxu0 0.0
  %1619 = vmatpush1.msra.mxu0 0.0
  %1620 = vmatprep.subr.mxu0 0.0
  %1621 = vmatpush1.msra.mxu0 0.0
  %1622 = vmatprep.subr.mxu0 0.0
  %1623 = vmatpush1.msra.mxu0 0.0
  %1624 = vmatprep.subr.mxu0 0.0
  %1625 = vmatpush1.msra.mxu0 0.0
  %1626 = vmatprep.subr.mxu0 0.0
  %1627 = vmatpush1.msra.mxu0 0.0
  %1628 = vmatprep.subr.mxu0 0.0
  %1629 = vmatpush1.msra.mxu0 0.0
  %1630 = vmatprep.subr.mxu0 0.0
  %1631 = vmatpush1.msra.mxu0 0.0
  %1632 = vmatprep.subr.mxu0 0.0
  %1633 = vmatpush1.msra.mxu0 0.0
  %1634 = vmatprep.subr.mxu0 0.0
  %1635 = vmatpush1.msra.mxu0 0.0
  %1636 = vmatprep.subr.mxu0 0.0
  %1637 = vmatpush1.msra.mxu0 0.0
  %1638 = vmatprep.subr.mxu0 0.0
  %1639 = vmatpush1.msra.mxu0 0.0
  %1640 = vmatprep.subr.mxu0 0.0
  %1641 = vmatpush1.msra.mxu0 0.0
  %1642 = vmatprep.subr.mxu0 0.0
  %1643 = vmatpush1.msra.mxu0 0.0
  %1644 = vmatprep.subr.mxu0 0.0
  %1645 = vmatpush1.msra.mxu0 0.0
  %1646 = vmatprep.subr.mxu0 0.0
  %1647 = vmatpush1.msra.mxu0 0.0
  %1648 = vmatprep.subr.mxu0 0.0
  %1649 = vmatpush1.msra.mxu0 0.0
  %1650 = vmatprep.subr.mxu0 0.0
  %1651 = vmatpush1.msra.mxu0 0.0
  %1652 = vmatprep.subr.mxu0 0.0
  %1653 = vmatpush1.msra.mxu0 0.0
  %1654 = vmatprep.mubr.f32.mxu0 0.0
  %1655 = vmatmul.mubr.f32.gmra.mrb[0].mxu0 %v1585
  %v1656 = vpop.f32.mrb[0].mxu0
  %v1657 = vadd.f32 0.0, %v1656
  %v1658 = vpop.f32.mrb[0].mxu0
  %1659 = vmatprep.mubr.f32.mxu0 0.0
  %1660 = vmatmul.mubr.f32.gmra.mrb[0].mxu0 %v1588
  %v1661 = vpop.f32.mrb[0].mxu0
  %v1662 = vadd.f32 0.0, %v1661
  %v1663 = vpop.f32.mrb[0].mxu0
  %1664 = vdwg.mxu0
  %s1665 = scalar_lea.vmem %s6, 288
  %v1666 = vld [vmem:[%s1665] sm:$0xff]
  %v1667 = vld [vmem:[%s1665 + $0x8] sm:$0xff]
  %v1668 = vld [vmem:[%s1665 + $0x10] sm:$0xff]
  %v1669 = vld [vmem:[%s1665 + $0x18] sm:$0xff]
  %v1671 = vsel %vm49, %v1574, 0
  %v1674 = vsel %vm49, %v1575, 0
  %v1677 = vsel %vm49, %v1576, 0
  %1679 = vmatprep.subr.mxu0 0.0
  %1680 = vmatpush1.msra.mxu0 %v1666
  %1681 = vmatprep.subr.mxu0 0.0
  %1682 = vmatpush1.msra.mxu0 %v1667
  %1683 = vmatprep.subr.mxu0 0.0
  %1684 = vmatpush1.msra.mxu0 %v1668
  %1685 = vmatprep.subr.mxu0 0.0
  %1686 = vmatpush1.msra.mxu0 %v1669
  %1687 = vmatprep.subr.mxu0 0.0
  %1688 = vmatpush1.msra.mxu0 0.0
  %1689 = vmatprep.subr.mxu0 0.0
  %1690 = vmatpush1.msra.mxu0 0.0
  %1691 = vmatprep.subr.mxu0 0.0
  %1692 = vmatpush1.msra.mxu0 0.0
  %1693 = vmatprep.subr.mxu0 0.0
  %1694 = vmatpush1.msra.mxu0 0.0
  %1695 = vmatprep.subr.mxu0 0.0
  %1696 = vmatpush1.msra.mxu0 0.0
  %1697 = vmatprep.subr.mxu0 0.0
  %1698 = vmatpush1.msra.mxu0 0.0
  %1699 = vmatprep.subr.mxu0 0.0
  %1700 = vmatpush1.msra.mxu0 0.0
  %1701 = vmatprep.subr.mxu0 0.0
  %1702 = vmatpush1.msra.mxu0 0.0
  %1703 = vmatprep.subr.mxu0 0.0
  %1704 = vmatpush1.msra.mxu0 0.0
  %1705 = vmatprep.subr.mxu0 0.0
  %1706 = vmatpush1.msra.mxu0 0.0
  %1707 = vmatprep.subr.mxu0 0.0
  %1708 = vmatpush1.msra.mxu0 0.0
  %1709 = vmatprep.subr.mxu0 0.0
  %1710 = vmatpush1.msra.mxu0 0.0
  %1711 = vmatprep.subr.mxu0 0.0
  %1712 = vmatpush1.msra.mxu0 0.0
  %1713 = vmatprep.subr.mxu0 0.0
  %1714 = vmatpush1.msra.mxu0 0.0
  %1715 = vmatprep.subr.mxu0 0.0
  %1716 = vmatpush1.msra.mxu0 0.0
  %1717 = vmatprep.subr.mxu0 0.0
  %1718 = vmatpush1.msra.mxu0 0.0
  %1719 = vmatprep.subr.mxu0 0.0
  %1720 = vmatpush1.msra.mxu0 0.0
  %1721 = vmatprep.subr.mxu0 0.0
  %1722 = vmatpush1.msra.mxu0 0.0
  %1723 = vmatprep.subr.mxu0 0.0
  %1724 = vmatpush1.msra.mxu0 0.0
  %1725 = vmatprep.subr.mxu0 0.0
  %1726 = vmatpush1.msra.mxu0 0.0
  %1727 = vmatprep.subr.mxu0 0.0
  %1728 = vmatpush1.msra.mxu0 0.0
  %1729 = vmatprep.subr.mxu0 0.0
  %1730 = vmatpush1.msra.mxu0 0.0
  %1731 = vmatprep.subr.mxu0 0.0
  %1732 = vmatpush1.msra.mxu0 0.0
  %1733 = vmatprep.subr.mxu0 0.0
  %1734 = vmatpush1.msra.mxu0 0.0
  %1735 = vmatprep.subr.mxu0 0.0
  %1736 = vmatpush1.msra.mxu0 0.0
  %1737 = vmatprep.subr.mxu0 0.0
  %1738 = vmatpush1.msra.mxu0 0.0
  %1739 = vmatprep.subr.mxu0 0.0
  %1740 = vmatpush1.msra.mxu0 0.0
  %1741 = vmatprep.subr.mxu0 0.0
  %1742 = vmatpush1.msra.mxu0 0.0
  %1743 = vmatprep.mubr.f32.mxu0 0.0
  %1744 = vmatmul.mubr.f32.gmra.mrb[0].mxu0 %v1671
  %v1745 = vpop.f32.mrb[0].mxu0
  %v1746 = vadd.f32 0.0, %v1745
  %v1747 = vpop.f32.mrb[0].mxu0
  %1748 = vmatprep.mubr.f32.mxu0 0.0
  %1749 = vmatmul.mubr.f32.gmra.mrb[0].mxu0 %v1674
  %v1750 = vpop.f32.mrb[0].mxu0
  %v1751 = vadd.f32 0.0, %v1750
  %v1752 = vpop.f32.mrb[0].mxu0
  %1753 = vmatprep.mubr.f32.mxu0 0.0
  %1754 = vmatmul.mubr.f32.gmra.mrb[0].mxu0 %v1677
  %v1755 = vpop.f32.mrb[0].mxu0
  %v1756 = vadd.f32 0.0, %v1755
  %v1757 = vpop.f32.mrb[0].mxu0
  %1758 = vdwg.mxu0
  %1762 = vrot.lane.b32.xlu0 %v1746, 96
  %v1763 = vpop.permute.xlu0 %1762
  %1764 = vrot.lane.b32.xlu0 %v1751, 96
  %v1765 = vpop.permute.xlu0 %1764
  %1766 = vrot.lane.b32.xlu0 %v1756, 96
  %v1767 = vpop.permute.xlu0 %1766
  %v1772 = vsel %vm247, %v1662, 0
  %1774 = vmatprep.subr.mxu0 0.0
  %1775 = vmatpush1.msra.mxu0 %v1657
  %1776 = vmatprep.subr.mxu0 0.0
  %1777 = vmatpush1.msra.mxu0 %v1772
  %1778 = vmatprep.subr.mxu0 0.0
  %1779 = vmatpush1.msra.mxu0 0.0
  %1780 = vmatprep.subr.mxu0 0.0
  %1781 = vmatpush1.msra.mxu0 0.0
  %1782 = vmatprep.subr.mxu0 0.0
  %1783 = vmatpush1.msra.mxu0 0.0
  %1784 = vmatprep.subr.mxu0 0.0
  %1785 = vmatpush1.msra.mxu0 0.0
  %1786 = vmatprep.subr.mxu0 0.0
  %1787 = vmatpush1.msra.mxu0 0.0
  %1788 = vmatprep.subr.mxu0 0.0
  %1789 = vmatpush1.msra.mxu0 0.0
  %1790 = vmatprep.subr.mxu0 0.0
  %1791 = vmatpush1.msra.mxu0 0.0
  %1792 = vmatprep.subr.mxu0 0.0
  %1793 = vmatpush1.msra.mxu0 0.0
  %1794 = vmatprep.subr.mxu0 0.0
  %1795 = vmatpush1.msra.mxu0 0.0
  %1796 = vmatprep.subr.mxu0 0.0
  %1797 = vmatpush1.msra.mxu0 0.0
  %1798 = vmatprep.subr.mxu0 0.0
  %1799 = vmatpush1.msra.mxu0 0.0
  %1800 = vmatprep.subr.mxu0 0.0
  %1801 = vmatpush1.msra.mxu0 0.0
  %1802 = vmatprep.subr.mxu0 0.0
  %1803 = vmatpush1.msra.mxu0 0.0
  %1804 = vmatprep.subr.mxu0 0.0
  %1805 = vmatpush1.msra.mxu0 0.0
  %1806 = vmatprep.subr.mxu0 0.0
  %1807 = vmatpush1.msra.mxu0 0.0
  %1808 = vmatprep.subr.mxu0 0.0
  %1809 = vmatpush1.msra.mxu0 0.0
  %1810 = vmatprep.subr.mxu0 0.0
  %1811 = vmatpush1.msra.mxu0 0.0
  %1812 = vmatprep.subr.mxu0 0.0
  %1813 = vmatpush1.msra.mxu0 0.0
  %1814 = vmatprep.subr.mxu0 0.0
  %1815 = vmatpush1.msra.mxu0 0.0
  %1816 = vmatprep.subr.mxu0 0.0
  %1817 = vmatpush1.msra.mxu0 0.0
  %1818 = vmatprep.subr.mxu0 0.0
  %1819 = vmatpush1.msra.mxu0 0.0
  %1820 = vmatprep.subr.mxu0 0.0
  %1821 = vmatpush1.msra.mxu0 0.0
  %1822 = vmatprep.subr.mxu0 0.0
  %1823 = vmatpush1.msra.mxu0 0.0
  %1824 = vmatprep.subr.mxu0 0.0
  %1825 = vmatpush1.msra.mxu0 0.0
  %1826 = vmatprep.subr.mxu0 0.0
  %1827 = vmatpush1.msra.mxu0 0.0
  %1828 = vmatprep.subr.mxu0 0.0
  %1829 = vmatpush1.msra.mxu0 0.0
  %1830 = vmatprep.subr.mxu0 0.0
  %1831 = vmatpush1.msra.mxu0 0.0
  %1832 = vmatprep.subr.mxu0 0.0
  %1833 = vmatpush1.msra.mxu0 0.0
  %1834 = vmatprep.subr.mxu0 0.0
  %1835 = vmatpush1.msra.mxu0 0.0
  %1836 = vmatprep.subr.mxu0 0.0
  %1837 = vmatpush1.msra.mxu0 0.0
  %1838 = vmatprep.mubr.f32.mxu0 0.0
  %1839 = vmatmul.mubr.f32.gmra.mrb[0].mxu0 %v239
  %v1840 = vpop.f32.mrb[0].mxu0
  %v1841 = vadd.f32 %v1763, %v1840
  %v1842 = vpop.f32.mrb[0].mxu0
  %1843 = vmatprep.mubr.f32.mxu0 0.0
  %1844 = vmatmul.mubr.f32.gmra.mrb[0].mxu0 %v242
  %v1845 = vpop.f32.mrb[0].mxu0
  %v1846 = vadd.f32 %v1765, %v1845
  %v1847 = vpop.f32.mrb[0].mxu0
  %1848 = vmatprep.mubr.f32.mxu0 0.0
  %1849 = vmatmul.mubr.f32.gmra.mrb[0].mxu0 %v245
  %v1850 = vpop.f32.mrb[0].mxu0
  %v1851 = vadd.f32 %v1767, %v1850
  %v1852 = vpop.f32.mrb[0].mxu0
  %1853 = vdwg.mxu0
  %v1854 = vld [vmem:[%s7 + $0x8] sm:$0x1]
  %v1855 = vlaneseq
  %v1856 = vshrl.u32 %v1855, 7
  %v1857 = vsub.s32 0, %v1856
  %v1858 = vrot.slane %v1854, %v1857
  %v1859 = vadd.f32 %v1841, %v1858
  %v1860 = vadd.f32 %v1846, %v1858
  %v1861 = vadd.f32 %v1851, %v1858
  %1863 = vrot.lane.b32.xlu0 %v1657, 96
  %v1864 = vpop.permute.xlu0 %1863
  %1865 = vrot.lane.b32.xlu0 %v1662, 96
  %v1866 = vpop.permute.xlu0 %1865
  %v1869 = vsel %vm247, %v1756, 0
  %1871 = vmatprep.subr.mxu0 0.0
  %1872 = vmatpush1.msra.mxu0 %v1746
  %1873 = vmatprep.subr.mxu0 0.0
  %1874 = vmatpush1.msra.mxu0 %v1751
  %1875 = vmatprep.subr.mxu0 0.0
  %1876 = vmatpush1.msra.mxu0 %v1869
  %1877 = vmatprep.subr.mxu0 0.0
  %1878 = vmatpush1.msra.mxu0 0.0
  %1879 = vmatprep.subr.mxu0 0.0
  %1880 = vmatpush1.msra.mxu0 0.0
  %1881 = vmatprep.subr.mxu0 0.0
  %1882 = vmatpush1.msra.mxu0 0.0
  %1883 = vmatprep.subr.mxu0 0.0
  %1884 = vmatpush1.msra.mxu0 0.0
  %1885 = vmatprep.subr.mxu0 0.0
  %1886 = vmatpush1.msra.mxu0 0.0
  %1887 = vmatprep.subr.mxu0 0.0
  %1888 = vmatpush1.msra.mxu0 0.0
  %1889 = vmatprep.subr.mxu0 0.0
  %1890 = vmatpush1.msra.mxu0 0.0
  %1891 = vmatprep.subr.mxu0 0.0
  %1892 = vmatpush1.msra.mxu0 0.0
  %1893 = vmatprep.subr.mxu0 0.0
  %1894 = vmatpush1.msra.mxu0 0.0
  %1895 = vmatprep.subr.mxu0 0.0
  %1896 = vmatpush1.msra.mxu0 0.0
  %1897 = vmatprep.subr.mxu0 0.0
  %1898 = vmatpush1.msra.mxu0 0.0
  %1899 = vmatprep.subr.mxu0 0.0
  %1900 = vmatpush1.msra.mxu0 0.0
  %1901 = vmatprep.subr.mxu0 0.0
  %1902 = vmatpush1.msra.mxu0 0.0
  %1903 = vmatprep.subr.mxu0 0.0
  %1904 = vmatpush1.msra.mxu0 0.0
  %1905 = vmatprep.subr.mxu0 0.0
  %1906 = vmatpush1.msra.mxu0 0.0
  %1907 = vmatprep.subr.mxu0 0.0
  %1908 = vmatpush1.msra.mxu0 0.0
  %1909 = vmatprep.subr.mxu0 0.0
  %1910 = vmatpush1.msra.mxu0 0.0
  %1911 = vmatprep.subr.mxu0 0.0
  %1912 = vmatpush1.msra.mxu0 0.0
  %1913 = vmatprep.subr.mxu0 0.0
  %1914 = vmatpush1.msra.mxu0 0.0
  %1915 = vmatprep.subr.mxu0 0.0
  %1916 = vmatpush1.msra.mxu0 0.0
  %1917 = vmatprep.subr.mxu0 0.0
  %1918 = vmatpush1.msra.mxu0 0.0
  %1919 = vmatprep.subr.mxu0 0.0
  %1920 = vmatpush1.msra.mxu0 0.0
  %1921 = vmatprep.subr.mxu0 0.0
  %1922 = vmatpush1.msra.mxu0 0.0
  %1923 = vmatprep.subr.mxu0 0.0
  %1924 = vmatpush1.msra.mxu0 0.0
  %1925 = vmatprep.subr.mxu0 0.0
  %1926 = vmatpush1.msra.mxu0 0.0
  %1927 = vmatprep.subr.mxu0 0.0
  %1928 = vmatpush1.msra.mxu0 0.0
  %1929 = vmatprep.subr.mxu0 0.0
  %1930 = vmatpush1.msra.mxu0 0.0
  %1931 = vmatprep.subr.mxu0 0.0
  %1932 = vmatpush1.msra.mxu0 0.0
  %1933 = vmatprep.subr.mxu0 0.0
  %1934 = vmatpush1.msra.mxu0 0.0
  %1935 = vmatprep.mubr.f32.mxu0 0.0
  %1936 = vmatmul.mubr.f32.gmra.mrb[0].mxu0 %v348
  %v1937 = vpop.f32.mrb[0].mxu0
  %v1938 = vadd.f32 %v1864, %v1937
  %v1939 = vpop.f32.mrb[0].mxu0
  %1940 = vmatprep.mubr.f32.mxu0 0.0
  %1941 = vmatmul.mubr.f32.gmra.mrb[0].mxu0 %v351
  %v1942 = vpop.f32.mrb[0].mxu0
  %v1943 = vadd.f32 %v1866, %v1942
  %v1944 = vpop.f32.mrb[0].mxu0
  %1945 = vdwg.mxu0
  %v1946 = vld [vmem:[%s7 + $0x9] sm:$0x1]
  %v1947 = vlaneseq
  %v1948 = vshrl.u32 %v1947, 7
  %v1949 = vsub.s32 0, %v1948
  %v1950 = vrot.slane %v1946, %v1949
  %v1951 = vadd.f32 %v1938, %v1950
  %v1952 = vadd.f32 %v1943, %v1950
  %v1953 = vlaneseq
  %v1954 = vand.u32 %v1953, 127
  %v1955 = vld [vmem:[%s4] sm:$0xff]
  %v1956 = vld [vmem:[%s4 + $0x8] sm:$0xff]
  %v1957 = vld [vmem:[%s4 + $0x10] sm:$0xff]
  %v1958 = vld [vmem:[%s4 + $0x18] sm:$0xff]
  %v1959 = vld [vmem:[%s4 + $0x20] sm:$0xff]
  %v1960 = vld [vmem:[%s4 + $0x28] sm:$0xff]
  %v1961 = vld [vmem:[%s4 + $0x30] sm:$0xff]
  %v1962 = vld [vmem:[%s4 + $0x38] sm:$0xff]
  %v1963 = vld [vmem:[%s4 + $0x40] sm:$0xff]
  %v1964 = vld [vmem:[%s4 + $0x48] sm:$0xff]
  %v1965 = vld [vmem:[%s4 + $0x50] sm:$0xff]
  %v1966 = vld [vmem:[%s4 + $0x58] sm:$0xff]
  %v1967 = vld [vmem:[%s4 + $0x60] sm:$0xff]
  %v1968 = vld [vmem:[%s4 + $0x68] sm:$0xff]
  %v1969 = vld [vmem:[%s4 + $0x70] sm:$0xff]
  %v1970 = vld [vmem:[%s4 + $0x78] sm:$0xff]
  %1971 = vset.pattern.permute.xlu0 0
  %1972 = vperm.xlu0 %1971, %v1955
  %v1973 = vpop.permute.xlu0 %1972
  %1974 = vset.pattern.permute.xlu0 0
  %1975 = vperm.xlu0 %1974, %v1956
  %v1976 = vpop.permute.xlu0 %1975
  %1977 = vset.pattern.permute.xlu0 0
  %1978 = vperm.xlu0 %1977, %v1957
  %v1979 = vpop.permute.xlu0 %1978
  %1980 = vset.pattern.permute.xlu0 0
  %1981 = vperm.xlu0 %1980, %v1958
  %v1982 = vpop.permute.xlu0 %1981
  %1983 = vset.pattern.permute.xlu0 0
  %1984 = vperm.xlu0 %1983, %v1959
  %v1985 = vpop.permute.xlu0 %1984
  %1986 = vset.pattern.permute.xlu0 0
  %1987 = vperm.xlu0 %1986, %v1960
  %v1988 = vpop.permute.xlu0 %1987
  %1989 = vset.pattern.permute.xlu0 0
  %1990 = vperm.xlu0 %1989, %v1961
  %v1991 = vpop.permute.xlu0 %1990
  %1992 = vset.pattern.permute.xlu0 0
  %1993 = vperm.xlu0 %1992, %v1962
  %v1994 = vpop.permute.xlu0 %1993
  %1995 = vset.pattern.permute.xlu0 0
  %1996 = vperm.xlu0 %1995, %v1963
  %v1997 = vpop.permute.xlu0 %1996
  %1998 = vset.pattern.permute.xlu0 0
  %1999 = vperm.xlu0 %1998, %v1964
  %v2000 = vpop.permute.xlu0 %1999
  %2001 = vset.pattern.permute.xlu0 0
  %2002 = vperm.xlu0 %2001, %v1965
  %v2003 = vpop.permute.xlu0 %2002
  %2004 = vset.pattern.permute.xlu0 0
  %2005 = vperm.xlu0 %2004, %v1966
  %v2006 = vpop.permute.xlu0 %2005
  %2007 = vset.pattern.permute.xlu0 0
  %2008 = vperm.xlu0 %2007, %v1967
  %v2009 = vpop.permute.xlu0 %2008
  %2010 = vset.pattern.permute.xlu0 0
  %2011 = vperm.xlu0 %2010, %v1968
  %v2012 = vpop.permute.xlu0 %2011
  %2013 = vset.pattern.permute.xlu0 0
  %2014 = vperm.xlu0 %2013, %v1969
  %v2015 = vpop.permute.xlu0 %2014
  %2016 = vset.pattern.permute.xlu0 0
  %2017 = vperm.xlu0 %2016, %v1970
  %v2018 = vpop.permute.xlu0 %2017
  %vm2019 = vcmp.eq.s32.totalorder %v1954, %v1973
  %vm2020 = vcmp.eq.s32.totalorder %v1954, %v1976
  %vm2021 = vcmp.eq.s32.totalorder %v1954, %v1979
  %vm2022 = vcmp.eq.s32.totalorder %v1954, %v1982
  %vm2023 = vcmp.eq.s32.totalorder %v1954, %v1985
  %vm2024 = vcmp.eq.s32.totalorder %v1954, %v1988
  %vm2025 = vcmp.eq.s32.totalorder %v1954, %v1991
  %vm2026 = vcmp.eq.s32.totalorder %v1954, %v1994
  %vm2027 = vcmp.eq.s32.totalorder %v1954, %v1997
  %vm2028 = vcmp.eq.s32.totalorder %v1954, %v2000
  %vm2029 = vcmp.eq.s32.totalorder %v1954, %v2003
  %vm2030 = vcmp.eq.s32.totalorder %v1954, %v2006
  %vm2031 = vcmp.eq.s32.totalorder %v1954, %v2009
  %vm2032 = vcmp.eq.s32.totalorder %v1954, %v2012
  %vm2033 = vcmp.eq.s32.totalorder %v1954, %v2015
  %vm2034 = vcmp.eq.s32.totalorder %v1954, %v2018
  %v2035 = vsel %vm2019, 1, 0
  %v2036 = vsel %vm2020, 1, 0
  %v2037 = vsel %vm2021, 1, 0
  %v2038 = vsel %vm2022, 1, 0
  %v2039 = vsel %vm2023, 1, 0
  %v2040 = vsel %vm2024, 1, 0
  %v2041 = vsel %vm2025, 1, 0
  %v2042 = vsel %vm2026, 1, 0
  %v2043 = vsel %vm2027, 1, 0
  %v2044 = vsel %vm2028, 1, 0
  %v2045 = vsel %vm2029, 1, 0
  %v2046 = vsel %vm2030, 1, 0
  %v2047 = vsel %vm2031, 1, 0
  %v2048 = vsel %vm2032, 1, 0
  %v2049 = vsel %vm2033, 1, 0
  %v2050 = vsel %vm2034, 1, 0
  %v2051 = vcvt.s32.f32 %v2035
  %v2052 = vcvt.s32.f32 %v2036
  %v2053 = vcvt.s32.f32 %v2037
  %v2054 = vcvt.s32.f32 %v2038
  %v2055 = vcvt.s32.f32 %v2039
  %v2056 = vcvt.s32.f32 %v2040
  %v2057 = vcvt.s32.f32 %v2041
  %v2058 = vcvt.s32.f32 %v2042
  %v2059 = vcvt.s32.f32 %v2043
  %v2060 = vcvt.s32.f32 %v2044
  %v2061 = vcvt.s32.f32 %v2045
  %v2062 = vcvt.s32.f32 %v2046
  %v2063 = vcvt.s32.f32 %v2047
  %v2064 = vcvt.s32.f32 %v2048
  %v2065 = vcvt.s32.f32 %v2049
  %v2066 = vcvt.s32.f32 %v2050
  %v2067 = vld [vmem:[%s5] sm:$0xff]
  %v2068 = vld [vmem:[%s5 + $0x8] sm:$0xff]
  %v2069 = vld [vmem:[%s5 + $0x10] sm:$0xff]
  %v2070 = vld [vmem:[%s5 + $0x18] sm:$0xff]
  %v2071 = vld [vmem:[%s5 + $0x20] sm:$0xff]
  %v2072 = vld [vmem:[%s5 + $0x28] sm:$0xff]
  %v2073 = vld [vmem:[%s5 + $0x30] sm:$0xff]
  %v2074 = vld [vmem:[%s5 + $0x38] sm:$0xff]
  %v2075 = vld [vmem:[%s5 + $0x40] sm:$0xff]
  %v2076 = vld [vmem:[%s5 + $0x48] sm:$0xff]
  %v2077 = vld [vmem:[%s5 + $0x50] sm:$0xff]
  %v2078 = vld [vmem:[%s5 + $0x58] sm:$0xff]
  %v2079 = vld [vmem:[%s5 + $0x60] sm:$0xff]
  %v2080 = vld [vmem:[%s5 + $0x68] sm:$0xff]
  %v2081 = vld [vmem:[%s5 + $0x70] sm:$0xff]
  %v2082 = vld [vmem:[%s5 + $0x78] sm:$0xff]
  %2083 = vset.pattern.permute.xlu0 0
  %2084 = vperm.xlu0 %2083, %v2067
  %v2085 = vpop.permute.xlu0 %2084
  %2086 = vset.pattern.permute.xlu0 0
  %2087 = vperm.xlu0 %2086, %v2068
  %v2088 = vpop.permute.xlu0 %2087
  %2089 = vset.pattern.permute.xlu0 0
  %2090 = vperm.xlu0 %2089, %v2069
  %v2091 = vpop.permute.xlu0 %2090
  %2092 = vset.pattern.permute.xlu0 0
  %2093 = vperm.xlu0 %2092, %v2070
  %v2094 = vpop.permute.xlu0 %2093
  %2095 = vset.pattern.permute.xlu0 0
  %2096 = vperm.xlu0 %2095, %v2071
  %v2097 = vpop.permute.xlu0 %2096
  %2098 = vset.pattern.permute.xlu0 0
  %2099 = vperm.xlu0 %2098, %v2072
  %v2100 = vpop.permute.xlu0 %2099
  %2101 = vset.pattern.permute.xlu0 0
  %2102 = vperm.xlu0 %2101, %v2073
  %v2103 = vpop.permute.xlu0 %2102
  %2104 = vset.pattern.permute.xlu0 0
  %2105 = vperm.xlu0 %2104, %v2074
  %v2106 = vpop.permute.xlu0 %2105
  %2107 = vset.pattern.permute.xlu0 0
  %2108 = vperm.xlu0 %2107, %v2075
  %v2109 = vpop.permute.xlu0 %2108
  %2110 = vset.pattern.permute.xlu0 0
  %2111 = vperm.xlu0 %2110, %v2076
  %v2112 = vpop.permute.xlu0 %2111
  %2113 = vset.pattern.permute.xlu0 0
  %2114 = vperm.xlu0 %2113, %v2077
  %v2115 = vpop.permute.xlu0 %2114
  %2116 = vset.pattern.permute.xlu0 0
  %2117 = vperm.xlu0 %2116, %v2078
  %v2118 = vpop.permute.xlu0 %2117
  %2119 = vset.pattern.permute.xlu0 0
  %2120 = vperm.xlu0 %2119, %v2079
  %v2121 = vpop.permute.xlu0 %2120
  %2122 = vset.pattern.permute.xlu0 0
  %2123 = vperm.xlu0 %2122, %v2080
  %v2124 = vpop.permute.xlu0 %2123
  %2125 = vset.pattern.permute.xlu0 0
  %2126 = vperm.xlu0 %2125, %v2081
  %v2127 = vpop.permute.xlu0 %2126
  %2128 = vset.pattern.permute.xlu0 0
  %2129 = vperm.xlu0 %2128, %v2082
  %v2130 = vpop.permute.xlu0 %2129
  %vm2131 = vcmp.eq.s32.totalorder %v1954, %v2085
  %vm2132 = vcmp.eq.s32.totalorder %v1954, %v2088
  %vm2133 = vcmp.eq.s32.totalorder %v1954, %v2091
  %vm2134 = vcmp.eq.s32.totalorder %v1954, %v2094
  %vm2135 = vcmp.eq.s32.totalorder %v1954, %v2097
  %vm2136 = vcmp.eq.s32.totalorder %v1954, %v2100
  %vm2137 = vcmp.eq.s32.totalorder %v1954, %v2103
  %vm2138 = vcmp.eq.s32.totalorder %v1954, %v2106
  %vm2139 = vcmp.eq.s32.totalorder %v1954, %v2109
  %vm2140 = vcmp.eq.s32.totalorder %v1954, %v2112
  %vm2141 = vcmp.eq.s32.totalorder %v1954, %v2115
  %vm2142 = vcmp.eq.s32.totalorder %v1954, %v2118
  %vm2143 = vcmp.eq.s32.totalorder %v1954, %v2121
  %vm2144 = vcmp.eq.s32.totalorder %v1954, %v2124
  %vm2145 = vcmp.eq.s32.totalorder %v1954, %v2127
  %vm2146 = vcmp.eq.s32.totalorder %v1954, %v2130
  %v2147 = vsel %vm2131, 1, 0
  %v2148 = vsel %vm2132, 1, 0
  %v2149 = vsel %vm2133, 1, 0
  %v2150 = vsel %vm2134, 1, 0
  %v2151 = vsel %vm2135, 1, 0
  %v2152 = vsel %vm2136, 1, 0
  %v2153 = vsel %vm2137, 1, 0
  %v2154 = vsel %vm2138, 1, 0
  %v2155 = vsel %vm2139, 1, 0
  %v2156 = vsel %vm2140, 1, 0
  %v2157 = vsel %vm2141, 1, 0
  %v2158 = vsel %vm2142, 1, 0
  %v2159 = vsel %vm2143, 1, 0
  %v2160 = vsel %vm2144, 1, 0
  %v2161 = vsel %vm2145, 1, 0
  %v2162 = vsel %vm2146, 1, 0
  %v2163 = vcvt.s32.f32 %v2147
  %v2164 = vcvt.s32.f32 %v2148
  %v2165 = vcvt.s32.f32 %v2149
  %v2166 = vcvt.s32.f32 %v2150
  %v2167 = vcvt.s32.f32 %v2151
  %v2168 = vcvt.s32.f32 %v2152
  %v2169 = vcvt.s32.f32 %v2153
  %v2170 = vcvt.s32.f32 %v2154
  %v2171 = vcvt.s32.f32 %v2155
  %v2172 = vcvt.s32.f32 %v2156
  %v2173 = vcvt.s32.f32 %v2157
  %v2174 = vcvt.s32.f32 %v2158
  %v2175 = vcvt.s32.f32 %v2159
  %v2176 = vcvt.s32.f32 %v2160
  %v2177 = vcvt.s32.f32 %v2161
  %v2178 = vcvt.s32.f32 %v2162
  %v2180 = vsel %vm237, %v2051, 0
  %v2183 = vsel %vm237, %v2052, 0
  %v2186 = vsel %vm237, %v2053, 0
  %v2189 = vsel %vm237, %v2054, 0
  %v2192 = vsel %vm237, %v2055, 0
  %v2195 = vsel %vm237, %v2056, 0
  %v2198 = vsel %vm237, %v2057, 0
  %v2201 = vsel %vm237, %v2058, 0
  %v2204 = vsel %vm237, %v2059, 0
  %v2207 = vsel %vm237, %v2060, 0
  %v2210 = vsel %vm237, %v2061, 0
  %v2213 = vsel %vm237, %v2062, 0
  %v2216 = vsel %vm237, %v2063, 0
  %v2219 = vsel %vm237, %v2064, 0
  %v2222 = vsel %vm237, %v2065, 0
  %v2225 = vsel %vm237, %v2066, 0
  %v2228 = vsel %vm247, %v1952, 0
  %2230 = vmatprep.subr.mxu0 0.0
  %2231 = vmatpush1.msra.mxu0 %v1951
  %2232 = vmatprep.subr.mxu0 0.0
  %2233 = vmatpush1.msra.mxu0 %v2228
  %2234 = vmatprep.subr.mxu0 0.0
  %2235 = vmatpush1.msra.mxu0 0.0
  %2236 = vmatprep.subr.mxu0 0.0
  %2237 = vmatpush1.msra.mxu0 0.0
  %2238 = vmatprep.subr.mxu0 0.0
  %2239 = vmatpush1.msra.mxu0 0.0
  %2240 = vmatprep.subr.mxu0 0.0
  %2241 = vmatpush1.msra.mxu0 0.0
  %2242 = vmatprep.subr.mxu0 0.0
  %2243 = vmatpush1.msra.mxu0 0.0
  %2244 = vmatprep.subr.mxu0 0.0
  %2245 = vmatpush1.msra.mxu0 0.0
  %2246 = vmatprep.subr.mxu0 0.0
  %2247 = vmatpush1.msra.mxu0 0.0
  %2248 = vmatprep.subr.mxu0 0.0
  %2249 = vmatpush1.msra.mxu0 0.0
  %2250 = vmatprep.subr.mxu0 0.0
  %2251 = vmatpush1.msra.mxu0 0.0
  %2252 = vmatprep.subr.mxu0 0.0
  %2253 = vmatpush1.msra.mxu0 0.0
  %2254 = vmatprep.subr.mxu0 0.0
  %2255 = vmatpush1.msra.mxu0 0.0
  %2256 = vmatprep.subr.mxu0 0.0
  %2257 = vmatpush1.msra.mxu0 0.0
  %2258 = vmatprep.subr.mxu0 0.0
  %2259 = vmatpush1.msra.mxu0 0.0
  %2260 = vmatprep.subr.mxu0 0.0
  %2261 = vmatpush1.msra.mxu0 0.0
  %2262 = vmatprep.subr.mxu0 0.0
  %2263 = vmatpush1.msra.mxu0 0.0
  %2264 = vmatprep.subr.mxu0 0.0
  %2265 = vmatpush1.msra.mxu0 0.0
  %2266 = vmatprep.subr.mxu0 0.0
  %2267 = vmatpush1.msra.mxu0 0.0
  %2268 = vmatprep.subr.mxu0 0.0
  %2269 = vmatpush1.msra.mxu0 0.0
  %2270 = vmatprep.subr.mxu0 0.0
  %2271 = vmatpush1.msra.mxu0 0.0
  %2272 = vmatprep.subr.mxu0 0.0
  %2273 = vmatpush1.msra.mxu0 0.0
  %2274 = vmatprep.subr.mxu0 0.0
  %2275 = vmatpush1.msra.mxu0 0.0
  %2276 = vmatprep.subr.mxu0 0.0
  %2277 = vmatpush1.msra.mxu0 0.0
  %2278 = vmatprep.subr.mxu0 0.0
  %2279 = vmatpush1.msra.mxu0 0.0
  %2280 = vmatprep.subr.mxu0 0.0
  %2281 = vmatpush1.msra.mxu0 0.0
  %2282 = vmatprep.subr.mxu0 0.0
  %2283 = vmatpush1.msra.mxu0 0.0
  %2284 = vmatprep.subr.mxu0 0.0
  %2285 = vmatpush1.msra.mxu0 0.0
  %2286 = vmatprep.subr.mxu0 0.0
  %2287 = vmatpush1.msra.mxu0 0.0
  %2288 = vmatprep.subr.mxu0 0.0
  %2289 = vmatpush1.msra.mxu0 0.0
  %2290 = vmatprep.subr.mxu0 0.0
  %2291 = vmatpush1.msra.mxu0 0.0
  %2292 = vmatprep.subr.mxu0 0.0
  %2293 = vmatpush1.msra.mxu0 0.0
  %2294 = vmatprep.mubr.f32.mxu0 0.0
  %2295 = vmatmul.mubr.f32.gmra.mrb[0].mxu0 %v2180
  %v2296 = vpop.f32.mrb[0].mxu0
  %v2297 = vadd.f32 0.0, %v2296
  %v2298 = vpop.f32.mrb[0].mxu0
  %2299 = vmatprep.mubr.f32.mxu0 0.0
  %2300 = vmatmul.mubr.f32.gmra.mrb[0].mxu0 %v2183
  %v2301 = vpop.f32.mrb[0].mxu0
  %v2302 = vadd.f32 0.0, %v2301
  %v2303 = vpop.f32.mrb[0].mxu0
  %2304 = vmatprep.mubr.f32.mxu0 0.0
  %2305 = vmatmul.mubr.f32.gmra.mrb[0].mxu0 %v2186
  %v2306 = vpop.f32.mrb[0].mxu0
  %v2307 = vadd.f32 0.0, %v2306
  %v2308 = vpop.f32.mrb[0].mxu0
  %2309 = vmatprep.mubr.f32.mxu0 0.0
  %2310 = vmatmul.mubr.f32.gmra.mrb[0].mxu0 %v2189
  %v2311 = vpop.f32.mrb[0].mxu0
  %v2312 = vadd.f32 0.0, %v2311
  %v2313 = vpop.f32.mrb[0].mxu0
  %2314 = vmatprep.mubr.f32.mxu0 0.0
  %2315 = vmatmul.mubr.f32.gmra.mrb[0].mxu0 %v2192
  %v2316 = vpop.f32.mrb[0].mxu0
  %v2317 = vadd.f32 0.0, %v2316
  %v2318 = vpop.f32.mrb[0].mxu0
  %2319 = vmatprep.mubr.f32.mxu0 0.0
  %2320 = vmatmul.mubr.f32.gmra.mrb[0].mxu0 %v2195
  %v2321 = vpop.f32.mrb[0].mxu0
  %v2322 = vadd.f32 0.0, %v2321
  %v2323 = vpop.f32.mrb[0].mxu0
  %2324 = vmatprep.mubr.f32.mxu0 0.0
  %2325 = vmatmul.mubr.f32.gmra.mrb[0].mxu0 %v2198
  %v2326 = vpop.f32.mrb[0].mxu0
  %v2327 = vadd.f32 0.0, %v2326
  %v2328 = vpop.f32.mrb[0].mxu0
  %2329 = vmatprep.mubr.f32.mxu0 0.0
  %2330 = vmatmul.mubr.f32.gmra.mrb[0].mxu0 %v2201
  %v2331 = vpop.f32.mrb[0].mxu0
  %v2332 = vadd.f32 0.0, %v2331
  %v2333 = vpop.f32.mrb[0].mxu0
  %2334 = vmatprep.mubr.f32.mxu0 0.0
  %2335 = vmatmul.mubr.f32.gmra.mrb[0].mxu0 %v2204
  %v2336 = vpop.f32.mrb[0].mxu0
  %v2337 = vadd.f32 0.0, %v2336
  %v2338 = vpop.f32.mrb[0].mxu0
  %2339 = vmatprep.mubr.f32.mxu0 0.0
  %2340 = vmatmul.mubr.f32.gmra.mrb[0].mxu0 %v2207
  %v2341 = vpop.f32.mrb[0].mxu0
  %v2342 = vadd.f32 0.0, %v2341
  %v2343 = vpop.f32.mrb[0].mxu0
  %2344 = vmatprep.mubr.f32.mxu0 0.0
  %2345 = vmatmul.mubr.f32.gmra.mrb[0].mxu0 %v2210
  %v2346 = vpop.f32.mrb[0].mxu0
  %v2347 = vadd.f32 0.0, %v2346
  %v2348 = vpop.f32.mrb[0].mxu0
  %2349 = vmatprep.mubr.f32.mxu0 0.0
  %2350 = vmatmul.mubr.f32.gmra.mrb[0].mxu0 %v2213
  %v2351 = vpop.f32.mrb[0].mxu0
  %v2352 = vadd.f32 0.0, %v2351
  %v2353 = vpop.f32.mrb[0].mxu0
  %2354 = vmatprep.mubr.f32.mxu0 0.0
  %2355 = vmatmul.mubr.f32.gmra.mrb[0].mxu0 %v2216
  %v2356 = vpop.f32.mrb[0].mxu0
  %v2357 = vadd.f32 0.0, %v2356
  %v2358 = vpop.f32.mrb[0].mxu0
  %2359 = vmatprep.mubr.f32.mxu0 0.0
  %2360 = vmatmul.mubr.f32.gmra.mrb[0].mxu0 %v2219
  %v2361 = vpop.f32.mrb[0].mxu0
  %v2362 = vadd.f32 0.0, %v2361
  %v2363 = vpop.f32.mrb[0].mxu0
  %2364 = vmatprep.mubr.f32.mxu0 0.0
  %2365 = vmatmul.mubr.f32.gmra.mrb[0].mxu0 %v2222
  %v2366 = vpop.f32.mrb[0].mxu0
  %v2367 = vadd.f32 0.0, %v2366
  %v2368 = vpop.f32.mrb[0].mxu0
  %2369 = vmatprep.mubr.f32.mxu0 0.0
  %2370 = vmatmul.mubr.f32.gmra.mrb[0].mxu0 %v2225
  %v2371 = vpop.f32.mrb[0].mxu0
  %v2372 = vadd.f32 0.0, %v2371
  %v2373 = vpop.f32.mrb[0].mxu0
  %2374 = vdwg.mxu0
  %v2376 = vsel %vm346, %v2163, 0
  %v2379 = vsel %vm346, %v2164, 0
  %v2382 = vsel %vm346, %v2165, 0
  %v2385 = vsel %vm346, %v2166, 0
  %v2388 = vsel %vm346, %v2167, 0
  %v2391 = vsel %vm346, %v2168, 0
  %v2394 = vsel %vm346, %v2169, 0
  %v2397 = vsel %vm346, %v2170, 0
  %v2400 = vsel %vm346, %v2171, 0
  %v2403 = vsel %vm346, %v2172, 0
  %v2406 = vsel %vm346, %v2173, 0
  %v2409 = vsel %vm346, %v2174, 0
  %v2412 = vsel %vm346, %v2175, 0
  %v2415 = vsel %vm346, %v2176, 0
  %v2418 = vsel %vm346, %v2177, 0
  %v2421 = vsel %vm346, %v2178, 0
  %v2424 = vsel %vm247, %v1861, 0
  %2426 = vmatprep.subr.mxu0 0.0
  %2427 = vmatpush1.msra.mxu0 %v1859
  %2428 = vmatprep.subr.mxu0 0.0
  %2429 = vmatpush1.msra.mxu0 %v1860
  %2430 = vmatprep.subr.mxu0 0.0
  %2431 = vmatpush1.msra.mxu0 %v2424
  %2432 = vmatprep.subr.mxu0 0.0
  %2433 = vmatpush1.msra.mxu0 0.0
  %2434 = vmatprep.subr.mxu0 0.0
  %2435 = vmatpush1.msra.mxu0 0.0
  %2436 = vmatprep.subr.mxu0 0.0
  %2437 = vmatpush1.msra.mxu0 0.0
  %2438 = vmatprep.subr.mxu0 0.0
  %2439 = vmatpush1.msra.mxu0 0.0
  %2440 = vmatprep.subr.mxu0 0.0
  %2441 = vmatpush1.msra.mxu0 0.0
  %2442 = vmatprep.subr.mxu0 0.0
  %2443 = vmatpush1.msra.mxu0 0.0
  %2444 = vmatprep.subr.mxu0 0.0
  %2445 = vmatpush1.msra.mxu0 0.0
  %2446 = vmatprep.subr.mxu0 0.0
  %2447 = vmatpush1.msra.mxu0 0.0
  %2448 = vmatprep.subr.mxu0 0.0
  %2449 = vmatpush1.msra.mxu0 0.0
  %2450 = vmatprep.subr.mxu0 0.0
  %2451 = vmatpush1.msra.mxu0 0.0
  %2452 = vmatprep.subr.mxu0 0.0
  %2453 = vmatpush1.msra.mxu0 0.0
  %2454 = vmatprep.subr.mxu0 0.0
  %2455 = vmatpush1.msra.mxu0 0.0
  %2456 = vmatprep.subr.mxu0 0.0
  %2457 = vmatpush1.msra.mxu0 0.0
  %2458 = vmatprep.subr.mxu0 0.0
  %2459 = vmatpush1.msra.mxu0 0.0
  %2460 = vmatprep.subr.mxu0 0.0
  %2461 = vmatpush1.msra.mxu0 0.0
  %2462 = vmatprep.subr.mxu0 0.0
  %2463 = vmatpush1.msra.mxu0 0.0
  %2464 = vmatprep.subr.mxu0 0.0
  %2465 = vmatpush1.msra.mxu0 0.0
  %2466 = vmatprep.subr.mxu0 0.0
  %2467 = vmatpush1.msra.mxu0 0.0
  %2468 = vmatprep.subr.mxu0 0.0
  %2469 = vmatpush1.msra.mxu0 0.0
  %2470 = vmatprep.subr.mxu0 0.0
  %2471 = vmatpush1.msra.mxu0 0.0
  %2472 = vmatprep.subr.mxu0 0.0
  %2473 = vmatpush1.msra.mxu0 0.0
  %2474 = vmatprep.subr.mxu0 0.0
  %2475 = vmatpush1.msra.mxu0 0.0
  %2476 = vmatprep.subr.mxu0 0.0
  %2477 = vmatpush1.msra.mxu0 0.0
  %2478 = vmatprep.subr.mxu0 0.0
  %2479 = vmatpush1.msra.mxu0 0.0
  %2480 = vmatprep.subr.mxu0 0.0
  %2481 = vmatpush1.msra.mxu0 0.0
  %2482 = vmatprep.subr.mxu0 0.0
  %2483 = vmatpush1.msra.mxu0 0.0
  %2484 = vmatprep.subr.mxu0 0.0
  %2485 = vmatpush1.msra.mxu0 0.0
  %2486 = vmatprep.subr.mxu0 0.0
  %2487 = vmatpush1.msra.mxu0 0.0
  %2488 = vmatprep.subr.mxu0 0.0
  %2489 = vmatpush1.msra.mxu0 0.0
  %2490 = vmatprep.mubr.f32.mxu0 0.0
  %2491 = vmatmul.mubr.f32.gmra.mrb[0].mxu0 %v2376
  %v2492 = vpop.f32.mrb[0].mxu0
  %v2493 = vadd.f32 0.0, %v2492
  %v2494 = vpop.f32.mrb[0].mxu0
  %2495 = vmatprep.mubr.f32.mxu0 0.0
  %2496 = vmatmul.mubr.f32.gmra.mrb[0].mxu0 %v2379
  %v2497 = vpop.f32.mrb[0].mxu0
  %v2498 = vadd.f32 0.0, %v2497
  %v2499 = vpop.f32.mrb[0].mxu0
  %2500 = vmatprep.mubr.f32.mxu0 0.0
  %2501 = vmatmul.mubr.f32.gmra.mrb[0].mxu0 %v2382
  %v2502 = vpop.f32.mrb[0].mxu0
  %v2503 = vadd.f32 0.0, %v2502
  %v2504 = vpop.f32.mrb[0].mxu0
  %2505 = vmatprep.mubr.f32.mxu0 0.0
  %2506 = vmatmul.mubr.f32.gmra.mrb[0].mxu0 %v2385
  %v2507 = vpop.f32.mrb[0].mxu0
  %v2508 = vadd.f32 0.0, %v2507
  %v2509 = vpop.f32.mrb[0].mxu0
  %2510 = vmatprep.mubr.f32.mxu0 0.0
  %2511 = vmatmul.mubr.f32.gmra.mrb[0].mxu0 %v2388
  %v2512 = vpop.f32.mrb[0].mxu0
  %v2513 = vadd.f32 0.0, %v2512
  %v2514 = vpop.f32.mrb[0].mxu0
  %2515 = vmatprep.mubr.f32.mxu0 0.0
  %2516 = vmatmul.mubr.f32.gmra.mrb[0].mxu0 %v2391
  %v2517 = vpop.f32.mrb[0].mxu0
  %v2518 = vadd.f32 0.0, %v2517
  %v2519 = vpop.f32.mrb[0].mxu0
  %2520 = vmatprep.mubr.f32.mxu0 0.0
  %2521 = vmatmul.mubr.f32.gmra.mrb[0].mxu0 %v2394
  %v2522 = vpop.f32.mrb[0].mxu0
  %v2523 = vadd.f32 0.0, %v2522
  %v2524 = vpop.f32.mrb[0].mxu0
  %2525 = vmatprep.mubr.f32.mxu0 0.0
  %2526 = vmatmul.mubr.f32.gmra.mrb[0].mxu0 %v2397
  %v2527 = vpop.f32.mrb[0].mxu0
  %v2528 = vadd.f32 0.0, %v2527
  %v2529 = vpop.f32.mrb[0].mxu0
  %2530 = vmatprep.mubr.f32.mxu0 0.0
  %2531 = vmatmul.mubr.f32.gmra.mrb[0].mxu0 %v2400
  %v2532 = vpop.f32.mrb[0].mxu0
  %v2533 = vadd.f32 0.0, %v2532
  %v2534 = vpop.f32.mrb[0].mxu0
  %2535 = vmatprep.mubr.f32.mxu0 0.0
  %2536 = vmatmul.mubr.f32.gmra.mrb[0].mxu0 %v2403
  %v2537 = vpop.f32.mrb[0].mxu0
  %v2538 = vadd.f32 0.0, %v2537
  %v2539 = vpop.f32.mrb[0].mxu0
  %2540 = vmatprep.mubr.f32.mxu0 0.0
  %2541 = vmatmul.mubr.f32.gmra.mrb[0].mxu0 %v2406
  %v2542 = vpop.f32.mrb[0].mxu0
  %v2543 = vadd.f32 0.0, %v2542
  %v2544 = vpop.f32.mrb[0].mxu0
  %2545 = vmatprep.mubr.f32.mxu0 0.0
  %2546 = vmatmul.mubr.f32.gmra.mrb[0].mxu0 %v2409
  %v2547 = vpop.f32.mrb[0].mxu0
  %v2548 = vadd.f32 0.0, %v2547
  %v2549 = vpop.f32.mrb[0].mxu0
  %2550 = vmatprep.mubr.f32.mxu0 0.0
  %2551 = vmatmul.mubr.f32.gmra.mrb[0].mxu0 %v2412
  %v2552 = vpop.f32.mrb[0].mxu0
  %v2553 = vadd.f32 0.0, %v2552
  %v2554 = vpop.f32.mrb[0].mxu0
  %2555 = vmatprep.mubr.f32.mxu0 0.0
  %2556 = vmatmul.mubr.f32.gmra.mrb[0].mxu0 %v2415
  %v2557 = vpop.f32.mrb[0].mxu0
  %v2558 = vadd.f32 0.0, %v2557
  %v2559 = vpop.f32.mrb[0].mxu0
  %2560 = vmatprep.mubr.f32.mxu0 0.0
  %2561 = vmatmul.mubr.f32.gmra.mrb[0].mxu0 %v2418
  %v2562 = vpop.f32.mrb[0].mxu0
  %v2563 = vadd.f32 0.0, %v2562
  %v2564 = vpop.f32.mrb[0].mxu0
  %2565 = vmatprep.mubr.f32.mxu0 0.0
  %2566 = vmatmul.mubr.f32.gmra.mrb[0].mxu0 %v2421
  %v2567 = vpop.f32.mrb[0].mxu0
  %v2568 = vadd.f32 0.0, %v2567
  %v2569 = vpop.f32.mrb[0].mxu0
  %2570 = vdwg.mxu0
  %v2571 = vld [vmem:[%s8] sm:$0xff]
  %v2572 = vld [vmem:[%s8 + $0x8] sm:$0xff]
  %v2573 = vld [vmem:[%s8 + $0x10] sm:$0xff]
  %v2574 = vld [vmem:[%s8 + $0x18] sm:$0xff]
  %s2575 = scalar_lea.vmem %s8, 32
  %v2576 = vld [vmem:[%s2575] sm:$0xff]
  %v2577 = vld [vmem:[%s2575 + $0x8] sm:$0xff]
  %v2578 = vld [vmem:[%s2575 + $0x10] sm:$0xff]
  %v2579 = vld [vmem:[%s2575 + $0x18] sm:$0xff]
  %v2581 = vsel %vm49, %v2493, 0
  %v2584 = vsel %vm49, %v2498, 0
  %v2587 = vsel %vm49, %v2503, 0
  %v2590 = vsel %vm49, %v2508, 0
  %v2593 = vsel %vm49, %v2513, 0
  %v2596 = vsel %vm49, %v2518, 0
  %v2599 = vsel %vm49, %v2523, 0
  %v2602 = vsel %vm49, %v2528, 0
  %v2605 = vsel %vm49, %v2533, 0
  %v2608 = vsel %vm49, %v2538, 0
  %v2611 = vsel %vm49, %v2543, 0
  %v2614 = vsel %vm49, %v2548, 0
  %v2617 = vsel %vm49, %v2553, 0
  %v2620 = vsel %vm49, %v2558, 0
  %v2623 = vsel %vm49, %v2563, 0
  %v2626 = vsel %vm49, %v2568, 0
  %2628 = vmatprep.subr.mxu0 0.0
  %2629 = vmatpush1.msra.mxu0 %v2576
  %2630 = vmatprep.subr.mxu0 0.0
  %2631 = vmatpush1.msra.mxu0 %v2577
  %2632 = vmatprep.subr.mxu0 0.0
  %2633 = vmatpush1.msra.mxu0 %v2578
  %2634 = vmatprep.subr.mxu0 0.0
  %2635 = vmatpush1.msra.mxu0 %v2579
  %2636 = vmatprep.subr.mxu0 0.0
  %2637 = vmatpush1.msra.mxu0 0.0
  %2638 = vmatprep.subr.mxu0 0.0
  %2639 = vmatpush1.msra.mxu0 0.0
  %2640 = vmatprep.subr.mxu0 0.0
  %2641 = vmatpush1.msra.mxu0 0.0
  %2642 = vmatprep.subr.mxu0 0.0
  %2643 = vmatpush1.msra.mxu0 0.0
  %2644 = vmatprep.subr.mxu0 0.0
  %2645 = vmatpush1.msra.mxu0 0.0
  %2646 = vmatprep.subr.mxu0 0.0
  %2647 = vmatpush1.msra.mxu0 0.0
  %2648 = vmatprep.subr.mxu0 0.0
  %2649 = vmatpush1.msra.mxu0 0.0
  %2650 = vmatprep.subr.mxu0 0.0
  %2651 = vmatpush1.msra.mxu0 0.0
  %2652 = vmatprep.subr.mxu0 0.0
  %2653 = vmatpush1.msra.mxu0 0.0
  %2654 = vmatprep.subr.mxu0 0.0
  %2655 = vmatpush1.msra.mxu0 0.0
  %2656 = vmatprep.subr.mxu0 0.0
  %2657 = vmatpush1.msra.mxu0 0.0
  %2658 = vmatprep.subr.mxu0 0.0
  %2659 = vmatpush1.msra.mxu0 0.0
  %2660 = vmatprep.subr.mxu0 0.0
  %2661 = vmatpush1.msra.mxu0 0.0
  %2662 = vmatprep.subr.mxu0 0.0
  %2663 = vmatpush1.msra.mxu0 0.0
  %2664 = vmatprep.subr.mxu0 0.0
  %2665 = vmatpush1.msra.mxu0 0.0
  %2666 = vmatprep.subr.mxu0 0.0
  %2667 = vmatpush1.msra.mxu0 0.0
  %2668 = vmatprep.subr.mxu0 0.0
  %2669 = vmatpush1.msra.mxu0 0.0
  %2670 = vmatprep.subr.mxu0 0.0
  %2671 = vmatpush1.msra.mxu0 0.0
  %2672 = vmatprep.subr.mxu0 0.0
  %2673 = vmatpush1.msra.mxu0 0.0
  %2674 = vmatprep.subr.mxu0 0.0
  %2675 = vmatpush1.msra.mxu0 0.0
  %2676 = vmatprep.subr.mxu0 0.0
  %2677 = vmatpush1.msra.mxu0 0.0
  %2678 = vmatprep.subr.mxu0 0.0
  %2679 = vmatpush1.msra.mxu0 0.0
  %2680 = vmatprep.subr.mxu0 0.0
  %2681 = vmatpush1.msra.mxu0 0.0
  %2682 = vmatprep.subr.mxu0 0.0
  %2683 = vmatpush1.msra.mxu0 0.0
  %2684 = vmatprep.subr.mxu0 0.0
  %2685 = vmatpush1.msra.mxu0 0.0
  %2686 = vmatprep.subr.mxu0 0.0
  %2687 = vmatpush1.msra.mxu0 0.0
  %2688 = vmatprep.subr.mxu0 0.0
  %2689 = vmatpush1.msra.mxu0 0.0
  %2690 = vmatprep.subr.mxu0 0.0
  %2691 = vmatpush1.msra.mxu0 0.0
  %2692 = vmatprep.mubr.f32.mxu0 0.0
  %2693 = vmatmul.mubr.f32.gmra.mrb[0].mxu0 %v2581
  %v2694 = vpop.f32.mrb[0].mxu0
  %v2695 = vadd.f32 0.0, %v2694
  %v2696 = vpop.f32.mrb[0].mxu0
  %2697 = vmatprep.mubr.f32.mxu0 0.0
  %2698 = vmatmul.mubr.f32.gmra.mrb[0].mxu0 %v2584
  %v2699 = vpop.f32.mrb[0].mxu0
  %v2700 = vadd.f32 0.0, %v2699
  %v2701 = vpop.f32.mrb[0].mxu0
  %2702 = vmatprep.mubr.f32.mxu0 0.0
  %2703 = vmatmul.mubr.f32.gmra.mrb[0].mxu0 %v2587
  %v2704 = vpop.f32.mrb[0].mxu0
  %v2705 = vadd.f32 0.0, %v2704
  %v2706 = vpop.f32.mrb[0].mxu0
  %2707 = vmatprep.mubr.f32.mxu0 0.0
  %2708 = vmatmul.mubr.f32.gmra.mrb[0].mxu0 %v2590
  %v2709 = vpop.f32.mrb[0].mxu0
  %v2710 = vadd.f32 0.0, %v2709
  %v2711 = vpop.f32.mrb[0].mxu0
  %2712 = vmatprep.mubr.f32.mxu0 0.0
  %2713 = vmatmul.mubr.f32.gmra.mrb[0].mxu0 %v2593
  %v2714 = vpop.f32.mrb[0].mxu0
  %v2715 = vadd.f32 0.0, %v2714
  %v2716 = vpop.f32.mrb[0].mxu0
  %2717 = vmatprep.mubr.f32.mxu0 0.0
  %2718 = vmatmul.mubr.f32.gmra.mrb[0].mxu0 %v2596
  %v2719 = vpop.f32.mrb[0].mxu0
  %v2720 = vadd.f32 0.0, %v2719
  %v2721 = vpop.f32.mrb[0].mxu0
  %2722 = vmatprep.mubr.f32.mxu0 0.0
  %2723 = vmatmul.mubr.f32.gmra.mrb[0].mxu0 %v2599
  %v2724 = vpop.f32.mrb[0].mxu0
  %v2725 = vadd.f32 0.0, %v2724
  %v2726 = vpop.f32.mrb[0].mxu0
  %2727 = vmatprep.mubr.f32.mxu0 0.0
  %2728 = vmatmul.mubr.f32.gmra.mrb[0].mxu0 %v2602
  %v2729 = vpop.f32.mrb[0].mxu0
  %v2730 = vadd.f32 0.0, %v2729
  %v2731 = vpop.f32.mrb[0].mxu0
  %2732 = vmatprep.mubr.f32.mxu0 0.0
  %2733 = vmatmul.mubr.f32.gmra.mrb[0].mxu0 %v2605
  %v2734 = vpop.f32.mrb[0].mxu0
  %v2735 = vadd.f32 0.0, %v2734
  %v2736 = vpop.f32.mrb[0].mxu0
  %2737 = vmatprep.mubr.f32.mxu0 0.0
  %2738 = vmatmul.mubr.f32.gmra.mrb[0].mxu0 %v2608
  %v2739 = vpop.f32.mrb[0].mxu0
  %v2740 = vadd.f32 0.0, %v2739
  %v2741 = vpop.f32.mrb[0].mxu0
  %2742 = vmatprep.mubr.f32.mxu0 0.0
  %2743 = vmatmul.mubr.f32.gmra.mrb[0].mxu0 %v2611
  %v2744 = vpop.f32.mrb[0].mxu0
  %v2745 = vadd.f32 0.0, %v2744
  %v2746 = vpop.f32.mrb[0].mxu0
  %2747 = vmatprep.mubr.f32.mxu0 0.0
  %2748 = vmatmul.mubr.f32.gmra.mrb[0].mxu0 %v2614
  %v2749 = vpop.f32.mrb[0].mxu0
  %v2750 = vadd.f32 0.0, %v2749
  %v2751 = vpop.f32.mrb[0].mxu0
  %2752 = vmatprep.mubr.f32.mxu0 0.0
  %2753 = vmatmul.mubr.f32.gmra.mrb[0].mxu0 %v2617
  %v2754 = vpop.f32.mrb[0].mxu0
  %v2755 = vadd.f32 0.0, %v2754
  %v2756 = vpop.f32.mrb[0].mxu0
  %2757 = vmatprep.mubr.f32.mxu0 0.0
  %2758 = vmatmul.mubr.f32.gmra.mrb[0].mxu0 %v2620
  %v2759 = vpop.f32.mrb[0].mxu0
  %v2760 = vadd.f32 0.0, %v2759
  %v2761 = vpop.f32.mrb[0].mxu0
  %2762 = vmatprep.mubr.f32.mxu0 0.0
  %2763 = vmatmul.mubr.f32.gmra.mrb[0].mxu0 %v2623
  %v2764 = vpop.f32.mrb[0].mxu0
  %v2765 = vadd.f32 0.0, %v2764
  %v2766 = vpop.f32.mrb[0].mxu0
  %2767 = vmatprep.mubr.f32.mxu0 0.0
  %2768 = vmatmul.mubr.f32.gmra.mrb[0].mxu0 %v2626
  %v2769 = vpop.f32.mrb[0].mxu0
  %v2770 = vadd.f32 0.0, %v2769
  %v2771 = vpop.f32.mrb[0].mxu0
  %2772 = vdwg.mxu0
  %v2774 = vsel %vm49, %v2297, 0
  %v2777 = vsel %vm49, %v2302, 0
  %v2780 = vsel %vm49, %v2307, 0
  %v2783 = vsel %vm49, %v2312, 0
  %v2786 = vsel %vm49, %v2317, 0
  %v2789 = vsel %vm49, %v2322, 0
  %v2792 = vsel %vm49, %v2327, 0
  %v2795 = vsel %vm49, %v2332, 0
  %v2798 = vsel %vm49, %v2337, 0
  %v2801 = vsel %vm49, %v2342, 0
  %v2804 = vsel %vm49, %v2347, 0
  %v2807 = vsel %vm49, %v2352, 0
  %v2810 = vsel %vm49, %v2357, 0
  %v2813 = vsel %vm49, %v2362, 0
  %v2816 = vsel %vm49, %v2367, 0
  %v2819 = vsel %vm49, %v2372, 0
  %2821 = vmatprep.subr.mxu0 0.0
  %2822 = vmatpush1.msra.mxu0 %v2571
  %2823 = vmatprep.subr.mxu0 0.0
  %2824 = vmatpush1.msra.mxu0 %v2572
  %2825 = vmatprep.subr.mxu0 0.0
  %2826 = vmatpush1.msra.mxu0 %v2573
  %2827 = vmatprep.subr.mxu0 0.0
  %2828 = vmatpush1.msra.mxu0 %v2574
  %2829 = vmatprep.subr.mxu0 0.0
  %2830 = vmatpush1.msra.mxu0 0.0
  %2831 = vmatprep.subr.mxu0 0.0
  %2832 = vmatpush1.msra.mxu0 0.0
  %2833 = vmatprep.subr.mxu0 0.0
  %2834 = vmatpush1.msra.mxu0 0.0
  %2835 = vmatprep.subr.mxu0 0.0
  %2836 = vmatpush1.msra.mxu0 0.0
  %2837 = vmatprep.subr.mxu0 0.0
  %2838 = vmatpush1.msra.mxu0 0.0
  %2839 = vmatprep.subr.mxu0 0.0
  %2840 = vmatpush1.msra.mxu0 0.0
  %2841 = vmatprep.subr.mxu0 0.0
  %2842 = vmatpush1.msra.mxu0 0.0
  %2843 = vmatprep.subr.mxu0 0.0
  %2844 = vmatpush1.msra.mxu0 0.0
  %2845 = vmatprep.subr.mxu0 0.0
  %2846 = vmatpush1.msra.mxu0 0.0
  %2847 = vmatprep.subr.mxu0 0.0
  %2848 = vmatpush1.msra.mxu0 0.0
  %2849 = vmatprep.subr.mxu0 0.0
  %2850 = vmatpush1.msra.mxu0 0.0
  %2851 = vmatprep.subr.mxu0 0.0
  %2852 = vmatpush1.msra.mxu0 0.0
  %2853 = vmatprep.subr.mxu0 0.0
  %2854 = vmatpush1.msra.mxu0 0.0
  %2855 = vmatprep.subr.mxu0 0.0
  %2856 = vmatpush1.msra.mxu0 0.0
  %2857 = vmatprep.subr.mxu0 0.0
  %2858 = vmatpush1.msra.mxu0 0.0
  %2859 = vmatprep.subr.mxu0 0.0
  %2860 = vmatpush1.msra.mxu0 0.0
  %2861 = vmatprep.subr.mxu0 0.0
  %2862 = vmatpush1.msra.mxu0 0.0
  %2863 = vmatprep.subr.mxu0 0.0
  %2864 = vmatpush1.msra.mxu0 0.0
  %2865 = vmatprep.subr.mxu0 0.0
  %2866 = vmatpush1.msra.mxu0 0.0
  %2867 = vmatprep.subr.mxu0 0.0
  %2868 = vmatpush1.msra.mxu0 0.0
  %2869 = vmatprep.subr.mxu0 0.0
  %2870 = vmatpush1.msra.mxu0 0.0
  %2871 = vmatprep.subr.mxu0 0.0
  %2872 = vmatpush1.msra.mxu0 0.0
  %2873 = vmatprep.subr.mxu0 0.0
  %2874 = vmatpush1.msra.mxu0 0.0
  %2875 = vmatprep.subr.mxu0 0.0
  %2876 = vmatpush1.msra.mxu0 0.0
  %2877 = vmatprep.subr.mxu0 0.0
  %2878 = vmatpush1.msra.mxu0 0.0
  %2879 = vmatprep.subr.mxu0 0.0
  %2880 = vmatpush1.msra.mxu0 0.0
  %2881 = vmatprep.subr.mxu0 0.0
  %2882 = vmatpush1.msra.mxu0 0.0
  %2883 = vmatprep.subr.mxu0 0.0
  %2884 = vmatpush1.msra.mxu0 0.0
  %2885 = vmatprep.mubr.f32.mxu0 0.0
  %2886 = vmatmul.mubr.f32.gmra.mrb[0].mxu0 %v2774
  %v2887 = vpop.f32.mrb[0].mxu0
  %v2888 = vadd.f32 %v2695, %v2887
  %v2889 = vpop.f32.mrb[0].mxu0
  %2890 = vmatprep.mubr.f32.mxu0 0.0
  %2891 = vmatmul.mubr.f32.gmra.mrb[0].mxu0 %v2777
  %v2892 = vpop.f32.mrb[0].mxu0
  %v2893 = vadd.f32 %v2700, %v2892
  %v2894 = vpop.f32.mrb[0].mxu0
  %2895 = vmatprep.mubr.f32.mxu0 0.0
  %2896 = vmatmul.mubr.f32.gmra.mrb[0].mxu0 %v2780
  %v2897 = vpop.f32.mrb[0].mxu0
  %v2898 = vadd.f32 %v2705, %v2897
  %v2899 = vpop.f32.mrb[0].mxu0
  %2900 = vmatprep.mubr.f32.mxu0 0.0
  %2901 = vmatmul.mubr.f32.gmra.mrb[0].mxu0 %v2783
  %v2902 = vpop.f32.mrb[0].mxu0
  %v2903 = vadd.f32 %v2710, %v2902
  %v2904 = vpop.f32.mrb[0].mxu0
  %2905 = vmatprep.mubr.f32.mxu0 0.0
  %2906 = vmatmul.mubr.f32.gmra.mrb[0].mxu0 %v2786
  %v2907 = vpop.f32.mrb[0].mxu0
  %v2908 = vadd.f32 %v2715, %v2907
  %v2909 = vpop.f32.mrb[0].mxu0
  %2910 = vmatprep.mubr.f32.mxu0 0.0
  %2911 = vmatmul.mubr.f32.gmra.mrb[0].mxu0 %v2789
  %v2912 = vpop.f32.mrb[0].mxu0
  %v2913 = vadd.f32 %v2720, %v2912
  %v2914 = vpop.f32.mrb[0].mxu0
  %2915 = vmatprep.mubr.f32.mxu0 0.0
  %2916 = vmatmul.mubr.f32.gmra.mrb[0].mxu0 %v2792
  %v2917 = vpop.f32.mrb[0].mxu0
  %v2918 = vadd.f32 %v2725, %v2917
  %v2919 = vpop.f32.mrb[0].mxu0
  %2920 = vmatprep.mubr.f32.mxu0 0.0
  %2921 = vmatmul.mubr.f32.gmra.mrb[0].mxu0 %v2795
  %v2922 = vpop.f32.mrb[0].mxu0
  %v2923 = vadd.f32 %v2730, %v2922
  %v2924 = vpop.f32.mrb[0].mxu0
  %2925 = vmatprep.mubr.f32.mxu0 0.0
  %2926 = vmatmul.mubr.f32.gmra.mrb[0].mxu0 %v2798
  %v2927 = vpop.f32.mrb[0].mxu0
  %v2928 = vadd.f32 %v2735, %v2927
  %v2929 = vpop.f32.mrb[0].mxu0
  %2930 = vmatprep.mubr.f32.mxu0 0.0
  %2931 = vmatmul.mubr.f32.gmra.mrb[0].mxu0 %v2801
  %v2932 = vpop.f32.mrb[0].mxu0
  %v2933 = vadd.f32 %v2740, %v2932
  %v2934 = vpop.f32.mrb[0].mxu0
  %2935 = vmatprep.mubr.f32.mxu0 0.0
  %2936 = vmatmul.mubr.f32.gmra.mrb[0].mxu0 %v2804
  %v2937 = vpop.f32.mrb[0].mxu0
  %v2938 = vadd.f32 %v2745, %v2937
  %v2939 = vpop.f32.mrb[0].mxu0
  %2940 = vmatprep.mubr.f32.mxu0 0.0
  %2941 = vmatmul.mubr.f32.gmra.mrb[0].mxu0 %v2807
  %v2942 = vpop.f32.mrb[0].mxu0
  %v2943 = vadd.f32 %v2750, %v2942
  %v2944 = vpop.f32.mrb[0].mxu0
  %2945 = vmatprep.mubr.f32.mxu0 0.0
  %2946 = vmatmul.mubr.f32.gmra.mrb[0].mxu0 %v2810
  %v2947 = vpop.f32.mrb[0].mxu0
  %v2948 = vadd.f32 %v2755, %v2947
  %v2949 = vpop.f32.mrb[0].mxu0
  %2950 = vmatprep.mubr.f32.mxu0 0.0
  %2951 = vmatmul.mubr.f32.gmra.mrb[0].mxu0 %v2813
  %v2952 = vpop.f32.mrb[0].mxu0
  %v2953 = vadd.f32 %v2760, %v2952
  %v2954 = vpop.f32.mrb[0].mxu0
  %2955 = vmatprep.mubr.f32.mxu0 0.0
  %2956 = vmatmul.mubr.f32.gmra.mrb[0].mxu0 %v2816
  %v2957 = vpop.f32.mrb[0].mxu0
  %v2958 = vadd.f32 %v2765, %v2957
  %v2959 = vpop.f32.mrb[0].mxu0
  %2960 = vmatprep.mubr.f32.mxu0 0.0
  %2961 = vmatmul.mubr.f32.gmra.mrb[0].mxu0 %v2819
  %v2962 = vpop.f32.mrb[0].mxu0
  %v2963 = vadd.f32 %v2770, %v2962
  %v2964 = vpop.f32.mrb[0].mxu0
  %2965 = vdwg.mxu0
  %v2966 = vld [vmem:[%s9] sm:$0x1]
  %v2967 = vlaneseq
  %v2968 = vshrl.u32 %v2967, 7
  %v2969 = vsub.s32 0, %v2968
  %v2970 = vrot.slane %v2966, %v2969
  %v2971 = vadd.f32 %v2888, %v2970
  %v2972 = vadd.f32 %v2893, %v2970
  %v2973 = vadd.f32 %v2898, %v2970
  %v2974 = vadd.f32 %v2903, %v2970
  %v2975 = vadd.f32 %v2908, %v2970
  %v2976 = vadd.f32 %v2913, %v2970
  %v2977 = vadd.f32 %v2918, %v2970
  %v2978 = vadd.f32 %v2923, %v2970
  %v2979 = vadd.f32 %v2928, %v2970
  %v2980 = vadd.f32 %v2933, %v2970
  %v2981 = vadd.f32 %v2938, %v2970
  %v2982 = vadd.f32 %v2943, %v2970
  %v2983 = vadd.f32 %v2948, %v2970
  %v2984 = vadd.f32 %v2953, %v2970
  %v2985 = vadd.f32 %v2958, %v2970
  %v2986 = vadd.f32 %v2963, %v2970
  %v2987 = vmax.f32 %v2971, 0.0
  %v2988 = vmax.f32 %v2972, 0.0
  %v2989 = vmax.f32 %v2973, 0.0
  %v2990 = vmax.f32 %v2974, 0.0
  %v2991 = vmax.f32 %v2975, 0.0
  %v2992 = vmax.f32 %v2976, 0.0
  %v2993 = vmax.f32 %v2977, 0.0
  %v2994 = vmax.f32 %v2978, 0.0
  %v2995 = vmax.f32 %v2979, 0.0
  %v2996 = vmax.f32 %v2980, 0.0
  %v2997 = vmax.f32 %v2981, 0.0
  %v2998 = vmax.f32 %v2982, 0.0
  %v2999 = vmax.f32 %v2983, 0.0
  %v3000 = vmax.f32 %v2984, 0.0
  %v3001 = vmax.f32 %v2985, 0.0
  %v3002 = vmax.f32 %v2986, 0.0
  %s3003 = scalar_lea.vmem %s8, 64
  %v3004 = vld [vmem:[%s3003] sm:$0xff]
  %v3005 = vld [vmem:[%s3003 + $0x8] sm:$0xff]
  %v3006 = vld [vmem:[%s3003 + $0x10] sm:$0xff]
  %v3007 = vld [vmem:[%s3003 + $0x18] sm:$0xff]
  %v3008 = vld [vmem:[%s9 + $0x1] sm:$0x1]
  %v3009 = vlaneseq
  %v3010 = vshrl.u32 %v3009, 7
  %v3011 = vsub.s32 0, %v3010
  %v3012 = vrot.slane %v3008, %v3011
  %v3014 = vsel %vm49, %v2987, 0
  %v3017 = vsel %vm49, %v2988, 0
  %v3020 = vsel %vm49, %v2989, 0
  %v3023 = vsel %vm49, %v2990, 0
  %v3026 = vsel %vm49, %v2991, 0
  %v3029 = vsel %vm49, %v2992, 0
  %v3032 = vsel %vm49, %v2993, 0
  %v3035 = vsel %vm49, %v2994, 0
  %v3038 = vsel %vm49, %v2995, 0
  %v3041 = vsel %vm49, %v2996, 0
  %v3044 = vsel %vm49, %v2997, 0
  %v3047 = vsel %vm49, %v2998, 0
  %v3050 = vsel %vm49, %v2999, 0
  %v3053 = vsel %vm49, %v3000, 0
  %v3056 = vsel %vm49, %v3001, 0
  %v3059 = vsel %vm49, %v3002, 0
  %3061 = vmatprep.subr.mxu0 0.0
  %3062 = vmatpush1.msra.mxu0 %v3004
  %3063 = vmatprep.subr.mxu0 0.0
  %3064 = vmatpush1.msra.mxu0 %v3005
  %3065 = vmatprep.subr.mxu0 0.0
  %3066 = vmatpush1.msra.mxu0 %v3006
  %3067 = vmatprep.subr.mxu0 0.0
  %3068 = vmatpush1.msra.mxu0 %v3007
  %3069 = vmatprep.subr.mxu0 0.0
  %3070 = vmatpush1.msra.mxu0 0.0
  %3071 = vmatprep.subr.mxu0 0.0
  %3072 = vmatpush1.msra.mxu0 0.0
  %3073 = vmatprep.subr.mxu0 0.0
  %3074 = vmatpush1.msra.mxu0 0.0
  %3075 = vmatprep.subr.mxu0 0.0
  %3076 = vmatpush1.msra.mxu0 0.0
  %3077 = vmatprep.subr.mxu0 0.0
  %3078 = vmatpush1.msra.mxu0 0.0
  %3079 = vmatprep.subr.mxu0 0.0
  %3080 = vmatpush1.msra.mxu0 0.0
  %3081 = vmatprep.subr.mxu0 0.0
  %3082 = vmatpush1.msra.mxu0 0.0
  %3083 = vmatprep.subr.mxu0 0.0
  %3084 = vmatpush1.msra.mxu0 0.0
  %3085 = vmatprep.subr.mxu0 0.0
  %3086 = vmatpush1.msra.mxu0 0.0
  %3087 = vmatprep.subr.mxu0 0.0
  %3088 = vmatpush1.msra.mxu0 0.0
  %3089 = vmatprep.subr.mxu0 0.0
  %3090 = vmatpush1.msra.mxu0 0.0
  %3091 = vmatprep.subr.mxu0 0.0
  %3092 = vmatpush1.msra.mxu0 0.0
  %3093 = vmatprep.subr.mxu0 0.0
  %3094 = vmatpush1.msra.mxu0 0.0
  %3095 = vmatprep.subr.mxu0 0.0
  %3096 = vmatpush1.msra.mxu0 0.0
  %3097 = vmatprep.subr.mxu0 0.0
  %3098 = vmatpush1.msra.mxu0 0.0
  %3099 = vmatprep.subr.mxu0 0.0
  %3100 = vmatpush1.msra.mxu0 0.0
  %3101 = vmatprep.subr.mxu0 0.0
  %3102 = vmatpush1.msra.mxu0 0.0
  %3103 = vmatprep.subr.mxu0 0.0
  %3104 = vmatpush1.msra.mxu0 0.0
  %3105 = vmatprep.subr.mxu0 0.0
  %3106 = vmatpush1.msra.mxu0 0.0
  %3107 = vmatprep.subr.mxu0 0.0
  %3108 = vmatpush1.msra.mxu0 0.0
  %3109 = vmatprep.subr.mxu0 0.0
  %3110 = vmatpush1.msra.mxu0 0.0
  %3111 = vmatprep.subr.mxu0 0.0
  %3112 = vmatpush1.msra.mxu0 0.0
  %3113 = vmatprep.subr.mxu0 0.0
  %3114 = vmatpush1.msra.mxu0 0.0
  %3115 = vmatprep.subr.mxu0 0.0
  %3116 = vmatpush1.msra.mxu0 0.0
  %3117 = vmatprep.subr.mxu0 0.0
  %3118 = vmatpush1.msra.mxu0 0.0
  %3119 = vmatprep.subr.mxu0 0.0
  %3120 = vmatpush1.msra.mxu0 0.0
  %3121 = vmatprep.subr.mxu0 0.0
  %3122 = vmatpush1.msra.mxu0 0.0
  %3123 = vmatprep.subr.mxu0 0.0
  %3124 = vmatpush1.msra.mxu0 0.0
  %3125 = vmatprep.mubr.f32.mxu0 0.0
  %3126 = vmatmul.mubr.f32.gmra.mrb[0].mxu0 %v3014
  %v3127 = vpop.f32.mrb[0].mxu0
  %v3128 = vadd.f32 %v3012, %v3127
  %v3129 = vpop.f32.mrb[0].mxu0
  %3130 = vmatprep.mubr.f32.mxu0 0.0
  %3131 = vmatmul.mubr.f32.gmra.mrb[0].mxu0 %v3017
  %v3132 = vpop.f32.mrb[0].mxu0
  %v3133 = vadd.f32 %v3012, %v3132
  %v3134 = vpop.f32.mrb[0].mxu0
  %3135 = vmatprep.mubr.f32.mxu0 0.0
  %3136 = vmatmul.mubr.f32.gmra.mrb[0].mxu0 %v3020
  %v3137 = vpop.f32.mrb[0].mxu0
  %v3138 = vadd.f32 %v3012, %v3137
  %v3139 = vpop.f32.mrb[0].mxu0
  %3140 = vmatprep.mubr.f32.mxu0 0.0
  %3141 = vmatmul.mubr.f32.gmra.mrb[0].mxu0 %v3023
  %v3142 = vpop.f32.mrb[0].mxu0
  %v3143 = vadd.f32 %v3012, %v3142
  %v3144 = vpop.f32.mrb[0].mxu0
  %3145 = vmatprep.mubr.f32.mxu0 0.0
  %3146 = vmatmul.mubr.f32.gmra.mrb[0].mxu0 %v3026
  %v3147 = vpop.f32.mrb[0].mxu0
  %v3148 = vadd.f32 %v3012, %v3147
  %v3149 = vpop.f32.mrb[0].mxu0
  %3150 = vmatprep.mubr.f32.mxu0 0.0
  %3151 = vmatmul.mubr.f32.gmra.mrb[0].mxu0 %v3029
  %v3152 = vpop.f32.mrb[0].mxu0
  %v3153 = vadd.f32 %v3012, %v3152
  %v3154 = vpop.f32.mrb[0].mxu0
  %3155 = vmatprep.mubr.f32.mxu0 0.0
  %3156 = vmatmul.mubr.f32.gmra.mrb[0].mxu0 %v3032
  %v3157 = vpop.f32.mrb[0].mxu0
  %v3158 = vadd.f32 %v3012, %v3157
  %v3159 = vpop.f32.mrb[0].mxu0
  %3160 = vmatprep.mubr.f32.mxu0 0.0
  %3161 = vmatmul.mubr.f32.gmra.mrb[0].mxu0 %v3035
  %v3162 = vpop.f32.mrb[0].mxu0
  %v3163 = vadd.f32 %v3012, %v3162
  %v3164 = vpop.f32.mrb[0].mxu0
  %3165 = vmatprep.mubr.f32.mxu0 0.0
  %3166 = vmatmul.mubr.f32.gmra.mrb[0].mxu0 %v3038
  %v3167 = vpop.f32.mrb[0].mxu0
  %v3168 = vadd.f32 %v3012, %v3167
  %v3169 = vpop.f32.mrb[0].mxu0
  %3170 = vmatprep.mubr.f32.mxu0 0.0
  %3171 = vmatmul.mubr.f32.gmra.mrb[0].mxu0 %v3041
  %v3172 = vpop.f32.mrb[0].mxu0
  %v3173 = vadd.f32 %v3012, %v3172
  %v3174 = vpop.f32.mrb[0].mxu0
  %3175 = vmatprep.mubr.f32.mxu0 0.0
  %3176 = vmatmul.mubr.f32.gmra.mrb[0].mxu0 %v3044
  %v3177 = vpop.f32.mrb[0].mxu0
  %v3178 = vadd.f32 %v3012, %v3177
  %v3179 = vpop.f32.mrb[0].mxu0
  %3180 = vmatprep.mubr.f32.mxu0 0.0
  %3181 = vmatmul.mubr.f32.gmra.mrb[0].mxu0 %v3047
  %v3182 = vpop.f32.mrb[0].mxu0
  %v3183 = vadd.f32 %v3012, %v3182
  %v3184 = vpop.f32.mrb[0].mxu0
  %3185 = vmatprep.mubr.f32.mxu0 0.0
  %3186 = vmatmul.mubr.f32.gmra.mrb[0].mxu0 %v3050
  %v3187 = vpop.f32.mrb[0].mxu0
  %v3188 = vadd.f32 %v3012, %v3187
  %v3189 = vpop.f32.mrb[0].mxu0
  %3190 = vmatprep.mubr.f32.mxu0 0.0
  %3191 = vmatmul.mubr.f32.gmra.mrb[0].mxu0 %v3053
  %v3192 = vpop.f32.mrb[0].mxu0
  %v3193 = vadd.f32 %v3012, %v3192
  %v3194 = vpop.f32.mrb[0].mxu0
  %3195 = vmatprep.mubr.f32.mxu0 0.0
  %3196 = vmatmul.mubr.f32.gmra.mrb[0].mxu0 %v3056
  %v3197 = vpop.f32.mrb[0].mxu0
  %v3198 = vadd.f32 %v3012, %v3197
  %v3199 = vpop.f32.mrb[0].mxu0
  %3200 = vmatprep.mubr.f32.mxu0 0.0
  %3201 = vmatmul.mubr.f32.gmra.mrb[0].mxu0 %v3059
  %v3202 = vpop.f32.mrb[0].mxu0
  %v3203 = vadd.f32 %v3012, %v3202
  %v3204 = vpop.f32.mrb[0].mxu0
  %3205 = vdwg.mxu0
  %v3206 = vmax.f32 %v3128, 0.0
  %v3207 = vmax.f32 %v3133, 0.0
  %v3208 = vmax.f32 %v3138, 0.0
  %v3209 = vmax.f32 %v3143, 0.0
  %v3210 = vmax.f32 %v3148, 0.0
  %v3211 = vmax.f32 %v3153, 0.0
  %v3212 = vmax.f32 %v3158, 0.0
  %v3213 = vmax.f32 %v3163, 0.0
  %v3214 = vmax.f32 %v3168, 0.0
  %v3215 = vmax.f32 %v3173, 0.0
  %v3216 = vmax.f32 %v3178, 0.0
  %v3217 = vmax.f32 %v3183, 0.0
  %v3218 = vmax.f32 %v3188, 0.0
  %v3219 = vmax.f32 %v3193, 0.0
  %v3220 = vmax.f32 %v3198, 0.0
  %v3221 = vmax.f32 %v3203, 0.0
  %s3222 = scalar_lea.vmem %s8, 96
  %v3223 = vld [vmem:[%s3222] sm:$0xff]
  %v3224 = vld [vmem:[%s3222 + $0x8] sm:$0xff]
  %v3225 = vld [vmem:[%s3222 + $0x10] sm:$0xff]
  %v3226 = vld [vmem:[%s3222 + $0x18] sm:$0xff]
  %v3227 = vld [vmem:[%s9 + $0x2] sm:$0x1]
  %v3228 = vlaneseq
  %v3229 = vshrl.u32 %v3228, 7
  %v3230 = vsub.s32 0, %v3229
  %v3231 = vrot.slane %v3227, %v3230
  %v3233 = vsel %vm49, %v3206, 0
  %v3236 = vsel %vm49, %v3207, 0
  %v3239 = vsel %vm49, %v3208, 0
  %v3242 = vsel %vm49, %v3209, 0
  %v3245 = vsel %vm49, %v3210, 0
  %v3248 = vsel %vm49, %v3211, 0
  %v3251 = vsel %vm49, %v3212, 0
  %v3254 = vsel %vm49, %v3213, 0
  %v3257 = vsel %vm49, %v3214, 0
  %v3260 = vsel %vm49, %v3215, 0
  %v3263 = vsel %vm49, %v3216, 0
  %v3266 = vsel %vm49, %v3217, 0
  %v3269 = vsel %vm49, %v3218, 0
  %v3272 = vsel %vm49, %v3219, 0
  %v3275 = vsel %vm49, %v3220, 0
  %v3278 = vsel %vm49, %v3221, 0
  %3280 = vmatprep.subr.mxu0 0.0
  %3281 = vmatpush1.msra.mxu0 %v3223
  %3282 = vmatprep.subr.mxu0 0.0
  %3283 = vmatpush1.msra.mxu0 %v3224
  %3284 = vmatprep.subr.mxu0 0.0
  %3285 = vmatpush1.msra.mxu0 %v3225
  %3286 = vmatprep.subr.mxu0 0.0
  %3287 = vmatpush1.msra.mxu0 %v3226
  %3288 = vmatprep.subr.mxu0 0.0
  %3289 = vmatpush1.msra.mxu0 0.0
  %3290 = vmatprep.subr.mxu0 0.0
  %3291 = vmatpush1.msra.mxu0 0.0
  %3292 = vmatprep.subr.mxu0 0.0
  %3293 = vmatpush1.msra.mxu0 0.0
  %3294 = vmatprep.subr.mxu0 0.0
  %3295 = vmatpush1.msra.mxu0 0.0
  %3296 = vmatprep.subr.mxu0 0.0
  %3297 = vmatpush1.msra.mxu0 0.0
  %3298 = vmatprep.subr.mxu0 0.0
  %3299 = vmatpush1.msra.mxu0 0.0
  %3300 = vmatprep.subr.mxu0 0.0
  %3301 = vmatpush1.msra.mxu0 0.0
  %3302 = vmatprep.subr.mxu0 0.0
  %3303 = vmatpush1.msra.mxu0 0.0
  %3304 = vmatprep.subr.mxu0 0.0
  %3305 = vmatpush1.msra.mxu0 0.0
  %3306 = vmatprep.subr.mxu0 0.0
  %3307 = vmatpush1.msra.mxu0 0.0
  %3308 = vmatprep.subr.mxu0 0.0
  %3309 = vmatpush1.msra.mxu0 0.0
  %3310 = vmatprep.subr.mxu0 0.0
  %3311 = vmatpush1.msra.mxu0 0.0
  %3312 = vmatprep.subr.mxu0 0.0
  %3313 = vmatpush1.msra.mxu0 0.0
  %3314 = vmatprep.subr.mxu0 0.0
  %3315 = vmatpush1.msra.mxu0 0.0
  %3316 = vmatprep.subr.mxu0 0.0
  %3317 = vmatpush1.msra.mxu0 0.0
  %3318 = vmatprep.subr.mxu0 0.0
  %3319 = vmatpush1.msra.mxu0 0.0
  %3320 = vmatprep.subr.mxu0 0.0
  %3321 = vmatpush1.msra.mxu0 0.0
  %3322 = vmatprep.subr.mxu0 0.0
  %3323 = vmatpush1.msra.mxu0 0.0
  %3324 = vmatprep.subr.mxu0 0.0
  %3325 = vmatpush1.msra.mxu0 0.0
  %3326 = vmatprep.subr.mxu0 0.0
  %3327 = vmatpush1.msra.mxu0 0.0
  %3328 = vmatprep.subr.mxu0 0.0
  %3329 = vmatpush1.msra.mxu0 0.0
  %3330 = vmatprep.subr.mxu0 0.0
  %3331 = vmatpush1.msra.mxu0 0.0
  %3332 = vmatprep.subr.mxu0 0.0
  %3333 = vmatpush1.msra.mxu0 0.0
  %3334 = vmatprep.subr.mxu0 0.0
  %3335 = vmatpush1.msra.mxu0 0.0
  %3336 = vmatprep.subr.mxu0 0.0
  %3337 = vmatpush1.msra.mxu0 0.0
  %3338 = vmatprep.subr.mxu0 0.0
  %3339 = vmatpush1.msra.mxu0 0.0
  %3340 = vmatprep.subr.mxu0 0.0
  %3341 = vmatpush1.msra.mxu0 0.0
  %3342 = vmatprep.subr.mxu0 0.0
  %3343 = vmatpush1.msra.mxu0 0.0
  %3344 = vmatprep.mubr.f32.mxu0 0.0
  %3345 = vmatmul.mubr.f32.gmra.mrb[0].mxu0 %v3233
  %v3346 = vpop.f32.mrb[0].mxu0
  %v3347 = vadd.f32 %v3231, %v3346
  %v3348 = vpop.f32.mrb[0].mxu0
  %3349 = vmatprep.mubr.f32.mxu0 0.0
  %3350 = vmatmul.mubr.f32.gmra.mrb[0].mxu0 %v3236
  %v3351 = vpop.f32.mrb[0].mxu0
  %v3352 = vadd.f32 %v3231, %v3351
  %v3353 = vpop.f32.mrb[0].mxu0
  %3354 = vmatprep.mubr.f32.mxu0 0.0
  %3355 = vmatmul.mubr.f32.gmra.mrb[0].mxu0 %v3239
  %v3356 = vpop.f32.mrb[0].mxu0
  %v3357 = vadd.f32 %v3231, %v3356
  %v3358 = vpop.f32.mrb[0].mxu0
  %3359 = vmatprep.mubr.f32.mxu0 0.0
  %3360 = vmatmul.mubr.f32.gmra.mrb[0].mxu0 %v3242
  %v3361 = vpop.f32.mrb[0].mxu0
  %v3362 = vadd.f32 %v3231, %v3361
  %v3363 = vpop.f32.mrb[0].mxu0
  %3364 = vmatprep.mubr.f32.mxu0 0.0
  %3365 = vmatmul.mubr.f32.gmra.mrb[0].mxu0 %v3245
  %v3366 = vpop.f32.mrb[0].mxu0
  %v3367 = vadd.f32 %v3231, %v3366
  %v3368 = vpop.f32.mrb[0].mxu0
  %3369 = vmatprep.mubr.f32.mxu0 0.0
  %3370 = vmatmul.mubr.f32.gmra.mrb[0].mxu0 %v3248
  %v3371 = vpop.f32.mrb[0].mxu0
  %v3372 = vadd.f32 %v3231, %v3371
  %v3373 = vpop.f32.mrb[0].mxu0
  %3374 = vmatprep.mubr.f32.mxu0 0.0
  %3375 = vmatmul.mubr.f32.gmra.mrb[0].mxu0 %v3251
  %v3376 = vpop.f32.mrb[0].mxu0
  %v3377 = vadd.f32 %v3231, %v3376
  %v3378 = vpop.f32.mrb[0].mxu0
  %3379 = vmatprep.mubr.f32.mxu0 0.0
  %3380 = vmatmul.mubr.f32.gmra.mrb[0].mxu0 %v3254
  %v3381 = vpop.f32.mrb[0].mxu0
  %v3382 = vadd.f32 %v3231, %v3381
  %v3383 = vpop.f32.mrb[0].mxu0
  %3384 = vmatprep.mubr.f32.mxu0 0.0
  %3385 = vmatmul.mubr.f32.gmra.mrb[0].mxu0 %v3257
  %v3386 = vpop.f32.mrb[0].mxu0
  %v3387 = vadd.f32 %v3231, %v3386
  %v3388 = vpop.f32.mrb[0].mxu0
  %3389 = vmatprep.mubr.f32.mxu0 0.0
  %3390 = vmatmul.mubr.f32.gmra.mrb[0].mxu0 %v3260
  %v3391 = vpop.f32.mrb[0].mxu0
  %v3392 = vadd.f32 %v3231, %v3391
  %v3393 = vpop.f32.mrb[0].mxu0
  %3394 = vmatprep.mubr.f32.mxu0 0.0
  %3395 = vmatmul.mubr.f32.gmra.mrb[0].mxu0 %v3263
  %v3396 = vpop.f32.mrb[0].mxu0
  %v3397 = vadd.f32 %v3231, %v3396
  %v3398 = vpop.f32.mrb[0].mxu0
  %3399 = vmatprep.mubr.f32.mxu0 0.0
  %3400 = vmatmul.mubr.f32.gmra.mrb[0].mxu0 %v3266
  %v3401 = vpop.f32.mrb[0].mxu0
  %v3402 = vadd.f32 %v3231, %v3401
  %v3403 = vpop.f32.mrb[0].mxu0
  %3404 = vmatprep.mubr.f32.mxu0 0.0
  %3405 = vmatmul.mubr.f32.gmra.mrb[0].mxu0 %v3269
  %v3406 = vpop.f32.mrb[0].mxu0
  %v3407 = vadd.f32 %v3231, %v3406
  %v3408 = vpop.f32.mrb[0].mxu0
  %3409 = vmatprep.mubr.f32.mxu0 0.0
  %3410 = vmatmul.mubr.f32.gmra.mrb[0].mxu0 %v3272
  %v3411 = vpop.f32.mrb[0].mxu0
  %v3412 = vadd.f32 %v3231, %v3411
  %v3413 = vpop.f32.mrb[0].mxu0
  %3414 = vmatprep.mubr.f32.mxu0 0.0
  %3415 = vmatmul.mubr.f32.gmra.mrb[0].mxu0 %v3275
  %v3416 = vpop.f32.mrb[0].mxu0
  %v3417 = vadd.f32 %v3231, %v3416
  %v3418 = vpop.f32.mrb[0].mxu0
  %3419 = vmatprep.mubr.f32.mxu0 0.0
  %3420 = vmatmul.mubr.f32.gmra.mrb[0].mxu0 %v3278
  %v3421 = vpop.f32.mrb[0].mxu0
  %v3422 = vadd.f32 %v3231, %v3421
  %v3423 = vpop.f32.mrb[0].mxu0
  %3424 = vdwg.mxu0
  %v3425 = vmax.f32 %v3347, 0.0
  %v3426 = vmax.f32 %v3352, 0.0
  %v3427 = vmax.f32 %v3357, 0.0
  %v3428 = vmax.f32 %v3362, 0.0
  %v3429 = vmax.f32 %v3367, 0.0
  %v3430 = vmax.f32 %v3372, 0.0
  %v3431 = vmax.f32 %v3377, 0.0
  %v3432 = vmax.f32 %v3382, 0.0
  %v3433 = vmax.f32 %v3387, 0.0
  %v3434 = vmax.f32 %v3392, 0.0
  %v3435 = vmax.f32 %v3397, 0.0
  %v3436 = vmax.f32 %v3402, 0.0
  %v3437 = vmax.f32 %v3407, 0.0
  %v3438 = vmax.f32 %v3412, 0.0
  %v3439 = vmax.f32 %v3417, 0.0
  %v3440 = vmax.f32 %v3422, 0.0
  %s3441 = scalar_lea.vmem %s8, 128
  %v3442 = vld [vmem:[%s3441] sm:$0xff]
  %v3443 = vld [vmem:[%s3441 + $0x8] sm:$0xff]
  %v3444 = vld [vmem:[%s3441 + $0x10] sm:$0xff]
  %v3445 = vld [vmem:[%s3441 + $0x18] sm:$0xff]
  %v3446 = vld [vmem:[%s9 + $0x3] sm:$0x1]
  %v3447 = vlaneseq
  %v3448 = vshrl.u32 %v3447, 7
  %v3449 = vsub.s32 0, %v3448
  %v3450 = vrot.slane %v3446, %v3449
  %v3452 = vsel %vm49, %v3425, 0
  %v3455 = vsel %vm49, %v3426, 0
  %v3458 = vsel %vm49, %v3427, 0
  %v3461 = vsel %vm49, %v3428, 0
  %v3464 = vsel %vm49, %v3429, 0
  %v3467 = vsel %vm49, %v3430, 0
  %v3470 = vsel %vm49, %v3431, 0
  %v3473 = vsel %vm49, %v3432, 0
  %v3476 = vsel %vm49, %v3433, 0
  %v3479 = vsel %vm49, %v3434, 0
  %v3482 = vsel %vm49, %v3435, 0
  %v3485 = vsel %vm49, %v3436, 0
  %v3488 = vsel %vm49, %v3437, 0
  %v3491 = vsel %vm49, %v3438, 0
  %v3494 = vsel %vm49, %v3439, 0
  %v3497 = vsel %vm49, %v3440, 0
  %3499 = vmatprep.subr.mxu0 0.0
  %3500 = vmatpush1.msra.mxu0 %v3442
  %3501 = vmatprep.subr.mxu0 0.0
  %3502 = vmatpush1.msra.mxu0 %v3443
  %3503 = vmatprep.subr.mxu0 0.0
  %3504 = vmatpush1.msra.mxu0 %v3444
  %3505 = vmatprep.subr.mxu0 0.0
  %3506 = vmatpush1.msra.mxu0 %v3445
  %3507 = vmatprep.subr.mxu0 0.0
  %3508 = vmatpush1.msra.mxu0 0.0
  %3509 = vmatprep.subr.mxu0 0.0
  %3510 = vmatpush1.msra.mxu0 0.0
  %3511 = vmatprep.subr.mxu0 0.0
  %3512 = vmatpush1.msra.mxu0 0.0
  %3513 = vmatprep.subr.mxu0 0.0
  %3514 = vmatpush1.msra.mxu0 0.0
  %3515 = vmatprep.subr.mxu0 0.0
  %3516 = vmatpush1.msra.mxu0 0.0
  %3517 = vmatprep.subr.mxu0 0.0
  %3518 = vmatpush1.msra.mxu0 0.0
  %3519 = vmatprep.subr.mxu0 0.0
  %3520 = vmatpush1.msra.mxu0 0.0
  %3521 = vmatprep.subr.mxu0 0.0
  %3522 = vmatpush1.msra.mxu0 0.0
  %3523 = vmatprep.subr.mxu0 0.0
  %3524 = vmatpush1.msra.mxu0 0.0
  %3525 = vmatprep.subr.mxu0 0.0
  %3526 = vmatpush1.msra.mxu0 0.0
  %3527 = vmatprep.subr.mxu0 0.0
  %3528 = vmatpush1.msra.mxu0 0.0
  %3529 = vmatprep.subr.mxu0 0.0
  %3530 = vmatpush1.msra.mxu0 0.0
  %3531 = vmatprep.subr.mxu0 0.0
  %3532 = vmatpush1.msra.mxu0 0.0
  %3533 = vmatprep.subr.mxu0 0.0
  %3534 = vmatpush1.msra.mxu0 0.0
  %3535 = vmatprep.subr.mxu0 0.0
  %3536 = vmatpush1.msra.mxu0 0.0
  %3537 = vmatprep.subr.mxu0 0.0
  %3538 = vmatpush1.msra.mxu0 0.0
  %3539 = vmatprep.subr.mxu0 0.0
  %3540 = vmatpush1.msra.mxu0 0.0
  %3541 = vmatprep.subr.mxu0 0.0
  %3542 = vmatpush1.msra.mxu0 0.0
  %3543 = vmatprep.subr.mxu0 0.0
  %3544 = vmatpush1.msra.mxu0 0.0
  %3545 = vmatprep.subr.mxu0 0.0
  %3546 = vmatpush1.msra.mxu0 0.0
  %3547 = vmatprep.subr.mxu0 0.0
  %3548 = vmatpush1.msra.mxu0 0.0
  %3549 = vmatprep.subr.mxu0 0.0
  %3550 = vmatpush1.msra.mxu0 0.0
  %3551 = vmatprep.subr.mxu0 0.0
  %3552 = vmatpush1.msra.mxu0 0.0
  %3553 = vmatprep.subr.mxu0 0.0
  %3554 = vmatpush1.msra.mxu0 0.0
  %3555 = vmatprep.subr.mxu0 0.0
  %3556 = vmatpush1.msra.mxu0 0.0
  %3557 = vmatprep.subr.mxu0 0.0
  %3558 = vmatpush1.msra.mxu0 0.0
  %3559 = vmatprep.subr.mxu0 0.0
  %3560 = vmatpush1.msra.mxu0 0.0
  %3561 = vmatprep.subr.mxu0 0.0
  %3562 = vmatpush1.msra.mxu0 0.0
  %3563 = vmatprep.mubr.f32.mxu0 0.0
  %3564 = vmatmul.mubr.f32.gmra.mrb[0].mxu0 %v3452
  %v3565 = vpop.f32.mrb[0].mxu0
  %v3566 = vadd.f32 %v3450, %v3565
  %v3567 = vpop.f32.mrb[0].mxu0
  %3568 = vmatprep.mubr.f32.mxu0 0.0
  %3569 = vmatmul.mubr.f32.gmra.mrb[0].mxu0 %v3455
  %v3570 = vpop.f32.mrb[0].mxu0
  %v3571 = vadd.f32 %v3450, %v3570
  %v3572 = vpop.f32.mrb[0].mxu0
  %3573 = vmatprep.mubr.f32.mxu0 0.0
  %3574 = vmatmul.mubr.f32.gmra.mrb[0].mxu0 %v3458
  %v3575 = vpop.f32.mrb[0].mxu0
  %v3576 = vadd.f32 %v3450, %v3575
  %v3577 = vpop.f32.mrb[0].mxu0
  %3578 = vmatprep.mubr.f32.mxu0 0.0
  %3579 = vmatmul.mubr.f32.gmra.mrb[0].mxu0 %v3461
  %v3580 = vpop.f32.mrb[0].mxu0
  %v3581 = vadd.f32 %v3450, %v3580
  %v3582 = vpop.f32.mrb[0].mxu0
  %3583 = vmatprep.mubr.f32.mxu0 0.0
  %3584 = vmatmul.mubr.f32.gmra.mrb[0].mxu0 %v3464
  %v3585 = vpop.f32.mrb[0].mxu0
  %v3586 = vadd.f32 %v3450, %v3585
  %v3587 = vpop.f32.mrb[0].mxu0
  %3588 = vmatprep.mubr.f32.mxu0 0.0
  %3589 = vmatmul.mubr.f32.gmra.mrb[0].mxu0 %v3467
  %v3590 = vpop.f32.mrb[0].mxu0
  %v3591 = vadd.f32 %v3450, %v3590
  %v3592 = vpop.f32.mrb[0].mxu0
  %3593 = vmatprep.mubr.f32.mxu0 0.0
  %3594 = vmatmul.mubr.f32.gmra.mrb[0].mxu0 %v3470
  %v3595 = vpop.f32.mrb[0].mxu0
  %v3596 = vadd.f32 %v3450, %v3595
  %v3597 = vpop.f32.mrb[0].mxu0
  %3598 = vmatprep.mubr.f32.mxu0 0.0
  %3599 = vmatmul.mubr.f32.gmra.mrb[0].mxu0 %v3473
  %v3600 = vpop.f32.mrb[0].mxu0
  %v3601 = vadd.f32 %v3450, %v3600
  %v3602 = vpop.f32.mrb[0].mxu0
  %3603 = vmatprep.mubr.f32.mxu0 0.0
  %3604 = vmatmul.mubr.f32.gmra.mrb[0].mxu0 %v3476
  %v3605 = vpop.f32.mrb[0].mxu0
  %v3606 = vadd.f32 %v3450, %v3605
  %v3607 = vpop.f32.mrb[0].mxu0
  %3608 = vmatprep.mubr.f32.mxu0 0.0
  %3609 = vmatmul.mubr.f32.gmra.mrb[0].mxu0 %v3479
  %v3610 = vpop.f32.mrb[0].mxu0
  %v3611 = vadd.f32 %v3450, %v3610
  %v3612 = vpop.f32.mrb[0].mxu0
  %3613 = vmatprep.mubr.f32.mxu0 0.0
  %3614 = vmatmul.mubr.f32.gmra.mrb[0].mxu0 %v3482
  %v3615 = vpop.f32.mrb[0].mxu0
  %v3616 = vadd.f32 %v3450, %v3615
  %v3617 = vpop.f32.mrb[0].mxu0
  %3618 = vmatprep.mubr.f32.mxu0 0.0
  %3619 = vmatmul.mubr.f32.gmra.mrb[0].mxu0 %v3485
  %v3620 = vpop.f32.mrb[0].mxu0
  %v3621 = vadd.f32 %v3450, %v3620
  %v3622 = vpop.f32.mrb[0].mxu0
  %3623 = vmatprep.mubr.f32.mxu0 0.0
  %3624 = vmatmul.mubr.f32.gmra.mrb[0].mxu0 %v3488
  %v3625 = vpop.f32.mrb[0].mxu0
  %v3626 = vadd.f32 %v3450, %v3625
  %v3627 = vpop.f32.mrb[0].mxu0
  %3628 = vmatprep.mubr.f32.mxu0 0.0
  %3629 = vmatmul.mubr.f32.gmra.mrb[0].mxu0 %v3491
  %v3630 = vpop.f32.mrb[0].mxu0
  %v3631 = vadd.f32 %v3450, %v3630
  %v3632 = vpop.f32.mrb[0].mxu0
  %3633 = vmatprep.mubr.f32.mxu0 0.0
  %3634 = vmatmul.mubr.f32.gmra.mrb[0].mxu0 %v3494
  %v3635 = vpop.f32.mrb[0].mxu0
  %v3636 = vadd.f32 %v3450, %v3635
  %v3637 = vpop.f32.mrb[0].mxu0
  %3638 = vmatprep.mubr.f32.mxu0 0.0
  %3639 = vmatmul.mubr.f32.gmra.mrb[0].mxu0 %v3497
  %v3640 = vpop.f32.mrb[0].mxu0
  %v3641 = vadd.f32 %v3450, %v3640
  %v3642 = vpop.f32.mrb[0].mxu0
  %3643 = vdwg.mxu0
  %v3644 = vmax.f32 %v3566, 0.0
  %v3645 = vmax.f32 %v3571, 0.0
  %v3646 = vmax.f32 %v3576, 0.0
  %v3647 = vmax.f32 %v3581, 0.0
  %v3648 = vmax.f32 %v3586, 0.0
  %v3649 = vmax.f32 %v3591, 0.0
  %v3650 = vmax.f32 %v3596, 0.0
  %v3651 = vmax.f32 %v3601, 0.0
  %v3652 = vmax.f32 %v3606, 0.0
  %v3653 = vmax.f32 %v3611, 0.0
  %v3654 = vmax.f32 %v3616, 0.0
  %v3655 = vmax.f32 %v3621, 0.0
  %v3656 = vmax.f32 %v3626, 0.0
  %v3657 = vmax.f32 %v3631, 0.0
  %v3658 = vmax.f32 %v3636, 0.0
  %v3659 = vmax.f32 %v3641, 0.0
  %v3660 = vld [vmem:[%s9 + $0x4] sm:$0x1]
  %v3661 = vld [vmem:[%s9 + $0x5] sm:$0x1]
  %3663 = vset.pattern.permute.xlu0 0
  %3664 = vperm.xlu0 %3663, %v3661
  %v3665 = vpop.permute.xlu0 %3664
  %v3668 = vsel %vm49, %v3660, 0
  %v3671 = vsel %vm49, %v3644, 0
  %v3674 = vsel %vm49, %v3645, 0
  %v3677 = vsel %vm49, %v3646, 0
  %v3680 = vsel %vm49, %v3647, 0
  %v3683 = vsel %vm49, %v3648, 0
  %v3686 = vsel %vm49, %v3649, 0
  %v3689 = vsel %vm49, %v3650, 0
  %v3692 = vsel %vm49, %v3651, 0
  %v3695 = vsel %vm49, %v3652, 0
  %v3698 = vsel %vm49, %v3653, 0
  %v3701 = vsel %vm49, %v3654, 0
  %v3704 = vsel %vm49, %v3655, 0
  %v3707 = vsel %vm49, %v3656, 0
  %v3710 = vsel %vm49, %v3657, 0
  %v3713 = vsel %vm49, %v3658, 0
  %v3716 = vsel %vm49, %v3659, 0
  %3718 = vmatprep.subr.mxu0 0.0
  %3719 = vmatpush1.xpose.msra.mxu0 %v3671
  %3720 = vmatprep.subr.mxu0 0.0
  %3721 = vmatpush1.xpose.msra.mxu0 %v3674
  %3722 = vmatprep.subr.mxu0 0.0
  %3723 = vmatpush1.xpose.msra.mxu0 %v3677
  %3724 = vmatprep.subr.mxu0 0.0
  %3725 = vmatpush1.xpose.msra.mxu0 %v3680
  %3726 = vmatprep.subr.mxu0 0.0
  %3727 = vmatpush1.xpose.msra.mxu0 %v3683
  %3728 = vmatprep.subr.mxu0 0.0
  %3729 = vmatpush1.xpose.msra.mxu0 %v3686
  %3730 = vmatprep.subr.mxu0 0.0
  %3731 = vmatpush1.xpose.msra.mxu0 %v3689
  %3732 = vmatprep.subr.mxu0 0.0
  %3733 = vmatpush1.xpose.msra.mxu0 %v3692
  %3734 = vmatprep.subr.mxu0 0.0
  %3735 = vmatpush1.xpose.msra.mxu0 %v3695
  %3736 = vmatprep.subr.mxu0 0.0
  %3737 = vmatpush1.xpose.msra.mxu0 %v3698
  %3738 = vmatprep.subr.mxu0 0.0
  %3739 = vmatpush1.xpose.msra.mxu0 %v3701
  %3740 = vmatprep.subr.mxu0 0.0
  %3741 = vmatpush1.xpose.msra.mxu0 %v3704
  %3742 = vmatprep.subr.mxu0 0.0
  %3743 = vmatpush1.xpose.msra.mxu0 %v3707
  %3744 = vmatprep.subr.mxu0 0.0
  %3745 = vmatpush1.xpose.msra.mxu0 %v3710
  %3746 = vmatprep.subr.mxu0 0.0
  %3747 = vmatpush1.xpose.msra.mxu0 %v3713
  %3748 = vmatprep.subr.mxu0 0.0
  %3749 = vmatpush1.xpose.msra.mxu0 %v3716
  %3750 = vmatprep.subr.mxu0 0.0
  %3751 = vmatpush1.xpose.msra.mxu0 0.0
  %3752 = vmatprep.subr.mxu0 0.0
  %3753 = vmatpush1.xpose.msra.mxu0 0.0
  %3754 = vmatprep.subr.mxu0 0.0
  %3755 = vmatpush1.xpose.msra.mxu0 0.0
  %3756 = vmatprep.subr.mxu0 0.0
  %3757 = vmatpush1.xpose.msra.mxu0 0.0
  %3758 = vmatprep.subr.mxu0 0.0
  %3759 = vmatpush1.xpose.msra.mxu0 0.0
  %3760 = vmatprep.subr.mxu0 0.0
  %3761 = vmatpush1.xpose.msra.mxu0 0.0
  %3762 = vmatprep.subr.mxu0 0.0
  %3763 = vmatpush1.xpose.msra.mxu0 0.0
  %3764 = vmatprep.subr.mxu0 0.0
  %3765 = vmatpush1.xpose.msra.mxu0 0.0
  %3766 = vmatprep.subr.mxu0 0.0
  %3767 = vmatpush1.xpose.msra.mxu0 0.0
  %3768 = vmatprep.subr.mxu0 0.0
  %3769 = vmatpush1.xpose.msra.mxu0 0.0
  %3770 = vmatprep.subr.mxu0 0.0
  %3771 = vmatpush1.xpose.msra.mxu0 0.0
  %3772 = vmatprep.subr.mxu0 0.0
  %3773 = vmatpush1.xpose.msra.mxu0 0.0
  %3774 = vmatprep.subr.mxu0 0.0
  %3775 = vmatpush1.xpose.msra.mxu0 0.0
  %3776 = vmatprep.subr.mxu0 0.0
  %3777 = vmatpush1.xpose.msra.mxu0 0.0
  %3778 = vmatprep.subr.mxu0 0.0
  %3779 = vmatpush1.xpose.msra.mxu0 0.0
  %3780 = vmatprep.subr.mxu0 0.0
  %3781 = vmatpush1.xpose.msra.mxu0 0.0
  %3782 = vmatprep.mubr.f32.mxu0 0.0
  %3783 = vmatmul.mubr.f32.gmra.mrb[0].mxu0 %v3668
  %v3784 = vpop.f32.mrb[0].mxu0
  %v3785 = vadd.f32 %v3665, %v3784
  %v3786 = vpop.f32.mrb[0].mxu0
  %3787 = vdwg.mxu0
  %3788 = vst [vmem:[%s10] sm:$0x1] %v3785
  // Predicated region
  $region42: #{model_forward.1} parent=0 // pred_check
    _
  $region43: #{model_forward.1} parent=0 // pred_check_branch
    %3790 = sbr.rel (0) target = $region45
  $region44: #{model_forward.1} parent=0 // pred_region
    _
  $region45: #{model_forward.1} parent=0 // pred_fallthru
    _
  // Predicated region
  $region46: #{model_forward.1} parent=0 // pred_check
    _
  $region47: #{model_forward.1} parent=0 // pred_check_branch
    %3792 = sbr.rel (0) target = $region49
  $region48: #{model_forward.1} parent=0 // pred_region
    _
  $region49: #{model_forward.1} parent=0 // pred_fallthru
    _

</llo_original>
